<compile_context>
chip_gen: v5e
topology: v5e:2x2
jax: 0.10.0
libtpu: 0.0.40
codegen_flags: <defaults>
</compile_context>

<pallas_src>
import functools

import jax
import jax.numpy as jnp
import numpy as np
from jax import lax
from jax.experimental import pallas as pl
from jax.experimental.pallas import tpu as pltpu


def _round_up(x, m):
    return -(-x // m) * m


def _corr_kernel(c1_ref, p2_ref, out_ref, acc_ref, *,
                 G, s2, base, outH, outW, C, ty, n_kc):
    # c1_ref : (1, outH, outW, tc)   centre crop of input1, channels-last
    # p2_ref : (1, Hp, Wp_pad, tc)   zero-padded input2,   channels-last
    # out_ref: (1, 1, G, outH, outW) all horizontal displacements for this iy
    # acc_ref: (G, outH, outW) f32   accumulator (only used when n_kc > 1)
    iy = pl.program_id(1)                       # vertical displacement index
    kc = pl.program_id(2)                       # channel chunk index
    row0 = base + iy * s2                       # first padded-input2 row for iy
    inv = jnp.float32(1.0 / C)

    # Lane-index bit masks for the log-step shear.  Shape (1, 1, outW): they
    # broadcast over the y-tile and sublane (w) axes inside jnp.where.
    nbits = max(1, (outW - 1).bit_length())
    xi = lax.broadcasted_iota(jnp.int32, (1, 1, outW), 2)
    bit_masks = [((xi >> k) & 1) == 1 for k in range(nbits)]

    if n_kc > 1:
        @pl.when(kc == 0)
        def _init():
            acc_ref[...] = jnp.zeros_like(acc_ref)

    n_yt = outH // ty
    for yt in range(n_yt):                      # small static loop; iterations
        y0 = yt * ty                            # carry no state (no live-range blowup)

        # Row slabs.  The dynamic iy-dependent start indexes an *outer* dim of
        # the channels-last block, so there is no sublane misalignment.
        q = c1_ref[0, y0:y0 + ty, :, :]                      # (ty, outW, tc)
        a = p2_ref[0, pl.ds(row0 + y0, ty), :, :]            # (ty, Wp_pad, tc)

        # MXU: s[t, w, x] = sum_c a[t, w, c] * q[t, x, c]  (f32 accumulation).
        s = lax.dot_general(
            a, q,
            dimension_numbers=(((2,), (2,)), ((0,), (0,))),
            preferred_element_type=jnp.float32)              # (ty, Wp_pad, outW)

        # Log-step shear along w: cur[t, u, x] = s[t, (u + x) mod Wp_pad, x].
        # Implemented with concatenate-based circular shifts (unambiguous
        # semantics); see header TODO about a single strided pltpu.roll.
        cur = s
        for k in range(nbits):
            sh = 1 << k
            rolled = jnp.concatenate([cur[:, sh:, :], cur[:, :sh, :]], axis=1)
            cur = jnp.where(bit_masks[k], rolled, cur)

        # Band extraction: out[iy*G+ix, y, x] needs s[t, base+ix*s2+x, x], which
        # after the shear sits at the static row base + ix*s2.
        for ix in range(G):
            band = cur[:, base + ix * s2, :]                 # (ty, outW) f32
            if n_kc == 1:
                out_ref[0, 0, ix, y0:y0 + ty, :] = (
                    band * inv).astype(out_ref.dtype)
            else:
                acc_ref[ix, y0:y0 + ty, :] += band

    if n_kc > 1:
        @pl.when(kc == n_kc - 1)
        def _finalize():
            out_ref[0, 0, :, :, :] = (acc_ref[...] * inv).astype(out_ref.dtype)


def correlation_pallas(input1, input2, pad_size=20, kernel_size=1,
                       max_displacement=20, stride1=1, stride2=2,
                       corr_multiply=1):
    """Forward pass of the FlowNet Correlation module (NCHW in, NCHW out)."""
    assert kernel_size == 1, "only kernel_size=1 (FlowNet default) is supported"
    assert stride1 == 1, "only stride1=1 (FlowNet default) is supported"
    assert corr_multiply == 1

    B, C, H, W = input1.shape
    md, s2, p = max_displacement, stride2, pad_size
    nr = md // s2
    G = 2 * nr + 1
    D = G * G
    outH = H + 2 * p - 2 * md
    outW = W + 2 * p - 2 * md
    assert outH > 0 and outW > 0, "pad_size too small for max_displacement"
    base = md - nr * s2                    # 0 when max_displacement % stride2 == 0
    Hp, Wp = H + 2 * p, W + 2 * p
    Wp_pad = _round_up(Wp, 8)

    # Centre crop of input1 (identity for the FlowNet defaults pad == max_disp).
    if p == md:
        c1 = input1
    else:
        p1 = jnp.pad(input1, ((0, 0), (0, 0), (p, p), (p, p)))
        c1 = p1[:, :, md:md + outH, md:md + outW]

    # Channels-last staging: C on lanes (MXU contraction dim), W/C contiguous
    # per row, H as an outer dim so iy-dependent row offsets are alignment-free.
    c1_cl = jnp.transpose(c1, (0, 2, 3, 1))                  # (B, outH, outW, C)
    p2_cl = jnp.transpose(input2, (0, 2, 3, 1))              # (B, H, W, C)
    p2_cl = jnp.pad(p2_cl, ((0, 0), (p, p), (p, p + (Wp_pad - Wp)), (0, 0)))

    dtype = input1.dtype
    bpe = jnp.dtype(dtype).itemsize

    # Generation-aware VMEM budget (64 MiB on v7x vs 128 MiB on v5e/v6e).
    vmem_cap = 64 << 20
    try:
        info = pltpu.get_tpu_info()
        vmem_cap = int(getattr(info, "vmem_capacity_bytes", vmem_cap))
    except Exception:
        pass

    def in_block_bytes(tc):
        c1_b = outH * _round_up(outW, 8) * _round_up(tc, 128) * bpe
        p2_b = Hp * Wp_pad * _round_up(tc, 128) * bpe
        return c1_b + p2_b

    # Channel chunking: the double-buffered input blocks must stay inside a
    # fixed fraction of physical VMEM; full-C blocks whenever they fit.
    budget = int(0.40 * vmem_cap)
    if C <= 128 or 2 * in_block_bytes(C) <= budget:
        tc, Cp = C, C
    else:
        tc = 128                                  # multiple of 128 (lane tiling rule)
        while 2 * tc < C and 2 * in_block_bytes(2 * tc) <= budget:
            tc *= 2
        Cp = _round_up(C, tc)
    n_kc = Cp // tc
    if Cp != C:                                   # zero channels contribute nothing
        cpad = ((0, 0), (0, 0), (0, 0), (0, Cp - C))
        c1_cl = jnp.pad(c1_cl, cpad)
        p2_cl = jnp.pad(p2_cl, cpad)

    # y-tile size: 8 rows (one sublane group) when possible.
    ty = next(t for t in (8, 4, 2, 1) if outH % t == 0)

    kernel = functools.partial(_corr_kernel, G=G, s2=s2, base=base,
                               outH=outH, outW=outW, C=C, ty=ty, n_kc=n_kc)

    out_blk = G * _round_up(outH, 8) * _round_up(outW, 128) * bpe
    acc_blk = G * _round_up(outH, 8) * _round_up(outW, 128) * 4
    vmem_need = 2 * in_block_bytes(tc) + 2 * out_blk + acc_blk + (4 << 20)
    vmem_limit = int(max(16 << 20, min(vmem_need, int(0.9 * vmem_cap))))

    cost = pl.CostEstimate(
        flops=2 * B * G * outH * Wp_pad * outW * Cp,
        transcendentals=0,
        bytes_accessed=int(c1_cl.size * bpe + p2_cl.size * bpe
                           + B * D * outH * outW * bpe))

    out5 = pl.pallas_call(
        kernel,
        out_shape=jax.ShapeDtypeStruct((B, G, G, outH, outW), dtype),
        grid=(B, G, n_kc),
        in_specs=[
            pl.BlockSpec((1, outH, outW, tc), lambda b, iy, kc: (b, 0, 0, kc)),
            pl.BlockSpec((1, Hp, Wp_pad, tc), lambda b, iy, kc: (b, 0, 0, kc)),
        ],
        out_specs=pl.BlockSpec((1, 1, G, outH, outW),
                               lambda b, iy, kc: (b, iy, 0, 0, 0)),
        scratch_shapes=[pltpu.VMEM((G, outH, outW), jnp.float32)],
        compiler_params=pltpu.CompilerParams(
            dimension_semantics=("parallel", "parallel", "arbitrary"),
            vmem_limit_bytes=vmem_limit),
        cost_estimate=cost,
    )(c1_cl, p2_cl)

    # d = iy*G + ix  ->  plain contiguous reshape, no output transpose pass.
    return out5.reshape(B, D, outH, outW)


def correlation_ref(input1, input2, pad_size=20, max_displacement=20, stride2=2):
    """Pure-JAX reference (same math, for verification)."""
    B, C, H, W = input1.shape
    md, s2, p = max_displacement, stride2, pad_size
    nr = md // s2
    G = 2 * nr + 1
    outH = H + 2 * p - 2 * md
    outW = W + 2 * p - 2 * md
    base = md - nr * s2
    p1 = jnp.pad(input1, ((0, 0), (0, 0), (p, p), (p, p)))
    p2 = jnp.pad(input2, ((0, 0), (0, 0), (p, p), (p, p)))
    c1 = p1[:, :, md:md + outH, md:md + outW]
    outs = []
    for iy in range(G):
        for ix in range(G):
            win = p2[:, :,
                     base + iy * s2: base + iy * s2 + outH,
                     base + ix * s2: base + ix * s2 + outW]
            outs.append(jnp.sum(c1 * win, axis=1) / C)
    return jnp.stack(outs, axis=1)


class Correlation:
    """Correlation mentioned in FlowNet (forward only)."""

    def __init__(self, pad_size=20, kernel_size=1, max_displacement=20,
                 stride1=1, stride2=2, corr_multiply=1):
        self.pad_size = pad_size
        self.kernel_size = kernel_size
        self.max_displacement = max_displacement
        self.stride1 = stride1
        self.stride2 = stride2
        self.corr_multiply = corr_multiply

    def __call__(self, input1, input2):
        return correlation_pallas(input1, input2, self.pad_size, self.kernel_size,
                                  self.max_displacement, self.stride1,
                                  self.stride2, self.corr_multiply)


if __name__ == "__main__":
    key = jax.random.PRNGKey(0)
    k1, k2 = jax.random.split(key)
    # NCHW inputs, small shapes: batch=2, channels=4, spatial=16x16.
    # Values are snapped to the bf16 grid so the correctness check is
    # independent of how many bf16 MXU passes the compiler uses for f32 matmuls.
    x1 = jax.random.normal(k1, (2, 4, 16, 16), dtype=jnp.float32)
    x2 = jax.random.normal(k2, (2, 4, 16, 16), dtype=jnp.float32)
    x1 = x1.astype(jnp.bfloat16).astype(jnp.float32)
    x2 = x2.astype(jnp.bfloat16).astype(jnp.float32)

    corr = Correlation(pad_size=20, kernel_size=1, max_displacement=20,
                       stride1=1, stride2=2, corr_multiply=1)
    out = jax.block_until_ready(corr(x1, x2))
    assert out.shape == (2, 441, 16, 16), out.shape

    ref = jax.block_until_ready(correlation_ref(x1, x2))
    np.testing.assert_allclose(np.asarray(out), np.asarray(ref),
                               rtol=1e-5, atol=1e-5)
    print("KERNEL_OK")
</pallas_src>

<mosaic_0001>
module attributes {stable_mosaic.version = 11 : i64} {
  func.func @_corr_kernel(%arg0: i32, %arg1: i32, %arg2: i32, %arg3: memref<1x16x16x4xf32, #tpu.memory_space<vmem>>, %arg4: memref<1x56x56x4xf32, #tpu.memory_space<vmem>>, %arg5: memref<1x1x21x16x16xf32, #tpu.memory_space<vmem>>, %arg6: memref<21x16x16xf32, #tpu.memory_space<vmem>>) attributes {dimension_semantics = [#tpu.dimension_semantics<parallel>, #tpu.dimension_semantics<parallel>, #tpu.dimension_semantics<arbitrary>], iteration_bounds = array<i64: 2, 21, 1>, scalar_prefetch = 0 : i64, scratch_operands = 1 : i64, tpu.core_type = #tpu.core_type<tc>, window_params = [{transform_indices = @transform_0, window_bounds = array<i64: 1, 16, 16, 4>}, {transform_indices = @transform_1, window_bounds = array<i64: 1, 56, 56, 4>}, {transform_indices = @transform_2, window_bounds = array<i64: 1, 1, 21, 16, 16>}]} {
    %c2_i32 = arith.constant 2 : i32
    %0 = arith.muli %arg1, %c2_i32 : i32
    %c0_i32 = arith.constant 0 : i32
    %1 = arith.addi %c0_i32, %0 : i32
    %2 = tpu.iota {dimensions = array<i32: 2>} : vector<1x1x16xi32>
    %c0_i32_0 = arith.constant 0 : i32
    %3 = vector.broadcast %c0_i32_0 : i32 to vector<1x1x16xi32>
    %4 = arith.shrsi %2, %3 : vector<1x1x16xi32>
    %c1_i32 = arith.constant 1 : i32
    %5 = vector.broadcast %c1_i32 : i32 to vector<1x1x16xi32>
    %6 = arith.andi %4, %5 : vector<1x1x16xi32>
    %c1_i32_1 = arith.constant 1 : i32
    %7 = vector.broadcast %c1_i32_1 : i32 to vector<1x1x16xi32>
    %8 = arith.cmpi eq, %6, %7 : vector<1x1x16xi32>
    %c1_i32_2 = arith.constant 1 : i32
    %9 = vector.broadcast %c1_i32_2 : i32 to vector<1x1x16xi32>
    %10 = arith.shrsi %2, %9 : vector<1x1x16xi32>
    %c1_i32_3 = arith.constant 1 : i32
    %11 = vector.broadcast %c1_i32_3 : i32 to vector<1x1x16xi32>
    %12 = arith.andi %10, %11 : vector<1x1x16xi32>
    %c1_i32_4 = arith.constant 1 : i32
    %13 = vector.broadcast %c1_i32_4 : i32 to vector<1x1x16xi32>
    %14 = arith.cmpi eq, %12, %13 : vector<1x1x16xi32>
    %c2_i32_5 = arith.constant 2 : i32
    %15 = vector.broadcast %c2_i32_5 : i32 to vector<1x1x16xi32>
    %16 = arith.shrsi %2, %15 : vector<1x1x16xi32>
    %c1_i32_6 = arith.constant 1 : i32
    %17 = vector.broadcast %c1_i32_6 : i32 to vector<1x1x16xi32>
    %18 = arith.andi %16, %17 : vector<1x1x16xi32>
    %c1_i32_7 = arith.constant 1 : i32
    %19 = vector.broadcast %c1_i32_7 : i32 to vector<1x1x16xi32>
    %20 = arith.cmpi eq, %18, %19 : vector<1x1x16xi32>
    %c3_i32 = arith.constant 3 : i32
    %21 = vector.broadcast %c3_i32 : i32 to vector<1x1x16xi32>
    %22 = arith.shrsi %2, %21 : vector<1x1x16xi32>
    %c1_i32_8 = arith.constant 1 : i32
    %23 = vector.broadcast %c1_i32_8 : i32 to vector<1x1x16xi32>
    %24 = arith.andi %22, %23 : vector<1x1x16xi32>
    %c1_i32_9 = arith.constant 1 : i32
    %25 = vector.broadcast %c1_i32_9 : i32 to vector<1x1x16xi32>
    %26 = arith.cmpi eq, %24, %25 : vector<1x1x16xi32>
    %c0 = arith.constant 0 : index
    %c0_10 = arith.constant 0 : index
    %c0_11 = arith.constant 0 : index
    %c0_12 = arith.constant 0 : index
    %27 = vector.load %arg3[%c0, %c0_10, %c0_11, %c0_12] : memref<1x16x16x4xf32, #tpu.memory_space<vmem>>, vector<1x8x16x4xf32>
    %28 = vector.shape_cast %27 : vector<1x8x16x4xf32> to vector<8x16x4xf32>
    %c0_i32_13 = arith.constant 0 : i32
    %29 = arith.addi %1, %c0_i32_13 : i32
    %c0_14 = arith.constant 0 : index
    %30 = arith.index_cast %29 : i32 to index
    %c0_15 = arith.constant 0 : index
    %c0_16 = arith.constant 0 : index
    %31 = vector.load %arg4[%c0_14, %30, %c0_15, %c0_16] : memref<1x56x56x4xf32, #tpu.memory_space<vmem>>, vector<1x8x56x4xf32>
    %32 = vector.shape_cast %31 : vector<1x8x56x4xf32> to vector<8x56x4xf32>
    %cst = arith.constant dense<0.000000e+00> : vector<8x56x16xf32>
    %33 = tpu.matmul %32, %28, %cst {dimension_numbers = #tpu.dot_dimension_numbers<[2], [2], [1], [1], [0, 0, 0, 1, 1, 1], [0], [0]>} : vector<8x56x4xf32>, vector<8x16x4xf32>, vector<8x56x16xf32> -> vector<8x56x16xf32>
    %34 = vector.extract_strided_slice %33 {offsets = [0, 1, 0], sizes = [8, 55, 16], strides = [1, 1, 1]} : vector<8x56x16xf32> to vector<8x55x16xf32>
    %35 = vector.extract_strided_slice %33 {offsets = [0, 0, 0], sizes = [8, 1, 16], strides = [1, 1, 1]} : vector<8x56x16xf32> to vector<8x1x16xf32>
    %36 = tpu.concatenate %34, %35 in 1 : vector<8x55x16xf32>, vector<8x1x16xf32> -> vector<8x56x16xf32>
    %37 = vector.shape_cast %8 : vector<1x1x16xi1> to vector<1x1x16xi1>
    %38 = vector.broadcast %37 : vector<1x1x16xi1> to vector<8x56x16xi1>
    %39 = arith.select %38, %36, %33 : vector<8x56x16xi1>, vector<8x56x16xf32>
    %40 = vector.extract_strided_slice %39 {offsets = [0, 2, 0], sizes = [8, 54, 16], strides = [1, 1, 1]} : vector<8x56x16xf32> to vector<8x54x16xf32>
    %41 = vector.extract_strided_slice %39 {offsets = [0, 0, 0], sizes = [8, 2, 16], strides = [1, 1, 1]} : vector<8x56x16xf32> to vector<8x2x16xf32>
    %42 = tpu.concatenate %40, %41 in 1 : vector<8x54x16xf32>, vector<8x2x16xf32> -> vector<8x56x16xf32>
    %43 = vector.shape_cast %14 : vector<1x1x16xi1> to vector<1x1x16xi1>
    %44 = vector.broadcast %43 : vector<1x1x16xi1> to vector<8x56x16xi1>
    %45 = arith.select %44, %42, %39 : vector<8x56x16xi1>, vector<8x56x16xf32>
    %46 = vector.extract_strided_slice %45 {offsets = [0, 4, 0], sizes = [8, 52, 16], strides = [1, 1, 1]} : vector<8x56x16xf32> to vector<8x52x16xf32>
    %47 = vector.extract_strided_slice %45 {offsets = [0, 0, 0], sizes = [8, 4, 16], strides = [1, 1, 1]} : vector<8x56x16xf32> to vector<8x4x16xf32>
    %48 = tpu.concatenate %46, %47 in 1 : vector<8x52x16xf32>, vector<8x4x16xf32> -> vector<8x56x16xf32>
    %49 = vector.shape_cast %20 : vector<1x1x16xi1> to vector<1x1x16xi1>
    %50 = vector.broadcast %49 : vector<1x1x16xi1> to vector<8x56x16xi1>
    %51 = arith.select %50, %48, %45 : vector<8x56x16xi1>, vector<8x56x16xf32>
    %52 = vector.extract_strided_slice %51 {offsets = [0, 8, 0], sizes = [8, 48, 16], strides = [1, 1, 1]} : vector<8x56x16xf32> to vector<8x48x16xf32>
    %53 = vector.extract_strided_slice %51 {offsets = [0, 0, 0], sizes = [8, 8, 16], strides = [1, 1, 1]} : vector<8x56x16xf32> to vector<8x8x16xf32>
    %54 = tpu.concatenate %52, %53 in 1 : vector<8x48x16xf32>, vector<8x8x16xf32> -> vector<8x56x16xf32>
    %55 = vector.shape_cast %26 : vector<1x1x16xi1> to vector<1x1x16xi1>
    %56 = vector.broadcast %55 : vector<1x1x16xi1> to vector<8x56x16xi1>
    %57 = arith.select %56, %54, %51 : vector<8x56x16xi1>, vector<8x56x16xf32>
    %58 = vector.extract_strided_slice %57 {offsets = [0, 0, 0], sizes = [8, 1, 16], strides = [1, 1, 1]} : vector<8x56x16xf32> to vector<8x1x16xf32>
    %59 = vector.shape_cast %58 : vector<8x1x16xf32> to vector<8x16xf32>
    %cst_17 = arith.constant 2.500000e-01 : f32
    %60 = vector.broadcast %cst_17 : f32 to vector<8x16xf32>
    %61 = arith.mulf %59, %60 : vector<8x16xf32>
    %c0_18 = arith.constant 0 : index
    %c0_19 = arith.constant 0 : index
    %c0_20 = arith.constant 0 : index
    %c0_21 = arith.constant 0 : index
    %c0_22 = arith.constant 0 : index
    %62 = vector.load %arg5[%c0_18, %c0_19, %c0_20, %c0_21, %c0_22] : memref<1x1x21x16x16xf32, #tpu.memory_space<vmem>>, vector<1x1x1x8x16xf32>
    %63 = vector.shape_cast %62 : vector<1x1x1x8x16xf32> to vector<8x16xf32>
    %64 = vector.shape_cast %61 : vector<8x16xf32> to vector<1x1x1x8x16xf32>
    tpu.vector_store %arg5[%c0_18, %c0_19, %c0_20, %c0_21, %c0_22], %64 {strides = array<i32>} : memref<1x1x21x16x16xf32, #tpu.memory_space<vmem>>, vector<1x1x1x8x16xf32>,
    %65 = vector.extract_strided_slice %57 {offsets = [0, 2, 0], sizes = [8, 1, 16], strides = [1, 1, 1]} : vector<8x56x16xf32> to vector<8x1x16xf32>
    %66 = vector.shape_cast %65 : vector<8x1x16xf32> to vector<8x16xf32>
    %cst_23 = arith.constant 2.500000e-01 : f32
    %67 = vector.broadcast %cst_23 : f32 to vector<8x16xf32>
    %68 = arith.mulf %66, %67 : vector<8x16xf32>
    %c0_24 = arith.constant 0 : index
    %c0_25 = arith.constant 0 : index
    %c1 = arith.constant 1 : index
    %c0_26 = arith.constant 0 : index
    %c0_27 = arith.constant 0 : index
    %69 = vector.load %arg5[%c0_24, %c0_25, %c1, %c0_26, %c0_27] : memref<1x1x21x16x16xf32, #tpu.memory_space<vmem>>, vector<1x1x1x8x16xf32>
    %70 = vector.shape_cast %69 : vector<1x1x1x8x16xf32> to vector<8x16xf32>
    %71 = vector.shape_cast %68 : vector<8x16xf32> to vector<1x1x1x8x16xf32>
    tpu.vector_store %arg5[%c0_24, %c0_25, %c1, %c0_26, %c0_27], %71 {strides = array<i32>} : memref<1x1x21x16x16xf32, #tpu.memory_space<vmem>>, vector<1x1x1x8x16xf32>,
    %72 = vector.extract_strided_slice %57 {offsets = [0, 4, 0], sizes = [8, 1, 16], strides = [1, 1, 1]} : vector<8x56x16xf32> to vector<8x1x16xf32>
    %73 = vector.shape_cast %72 : vector<8x1x16xf32> to vector<8x16xf32>
    %cst_28 = arith.constant 2.500000e-01 : f32
    %74 = vector.broadcast %cst_28 : f32 to vector<8x16xf32>
    %75 = arith.mulf %73, %74 : vector<8x16xf32>
    %c0_29 = arith.constant 0 : index
    %c0_30 = arith.constant 0 : index
    %c2 = arith.constant 2 : index
    %c0_31 = arith.constant 0 : index
    %c0_32 = arith.constant 0 : index
    %76 = vector.load %arg5[%c0_29, %c0_30, %c2, %c0_31, %c0_32] : memref<1x1x21x16x16xf32, #tpu.memory_space<vmem>>, vector<1x1x1x8x16xf32>
    %77 = vector.shape_cast %76 : vector<1x1x1x8x16xf32> to vector<8x16xf32>
    %78 = vector.shape_cast %75 : vector<8x16xf32> to vector<1x1x1x8x16xf32>
    tpu.vector_store %arg5[%c0_29, %c0_30, %c2, %c0_31, %c0_32], %78 {strides = array<i32>} : memref<1x1x21x16x16xf32, #tpu.memory_space<vmem>>, vector<1x1x1x8x16xf32>,
    %79 = vector.extract_strided_slice %57 {offsets = [0, 6, 0], sizes = [8, 1, 16], strides = [1, 1, 1]} : vector<8x56x16xf32> to vector<8x1x16xf32>
    %80 = vector.shape_cast %79 : vector<8x1x16xf32> to vector<8x16xf32>
    %cst_33 = arith.constant 2.500000e-01 : f32
    %81 = vector.broadcast %cst_33 : f32 to vector<8x16xf32>
    %82 = arith.mulf %80, %81 : vector<8x16xf32>
    %c0_34 = arith.constant 0 : index
    %c0_35 = arith.constant 0 : index
    %c3 = arith.constant 3 : index
    %c0_36 = arith.constant 0 : index
    %c0_37 = arith.constant 0 : index
    %83 = vector.load %arg5[%c0_34, %c0_35, %c3, %c0_36, %c0_37] : memref<1x1x21x16x16xf32, #tpu.memory_space<vmem>>, vector<1x1x1x8x16xf32>
    %84 = vector.shape_cast %83 : vector<1x1x1x8x16xf32> to vector<8x16xf32>
    %85 = vector.shape_cast %82 : vector<8x16xf32> to vector<1x1x1x8x16xf32>
    tpu.vector_store %arg5[%c0_34, %c0_35, %c3, %c0_36, %c0_37], %85 {strides = array<i32>} : memref<1x1x21x16x16xf32, #tpu.memory_space<vmem>>, vector<1x1x1x8x16xf32>,
    %86 = vector.extract_strided_slice %57 {offsets = [0, 8, 0], sizes = [8, 1, 16], strides = [1, 1, 1]} : vector<8x56x16xf32> to vector<8x1x16xf32>
    %87 = vector.shape_cast %86 : vector<8x1x16xf32> to vector<8x16xf32>
    %cst_38 = arith.constant 2.500000e-01 : f32
    %88 = vector.broadcast %cst_38 : f32 to vector<8x16xf32>
    %89 = arith.mulf %87, %88 : vector<8x16xf32>
    %c0_39 = arith.constant 0 : index
    %c0_40 = arith.constant 0 : index
    %c4 = arith.constant 4 : index
    %c0_41 = arith.constant 0 : index
    %c0_42 = arith.constant 0 : index
    %90 = vector.load %arg5[%c0_39, %c0_40, %c4, %c0_41, %c0_42] : memref<1x1x21x16x16xf32, #tpu.memory_space<vmem>>, vector<1x1x1x8x16xf32>
    %91 = vector.shape_cast %90 : vector<1x1x1x8x16xf32> to vector<8x16xf32>
    %92 = vector.shape_cast %89 : vector<8x16xf32> to vector<1x1x1x8x16xf32>
    tpu.vector_store %arg5[%c0_39, %c0_40, %c4, %c0_41, %c0_42], %92 {strides = array<i32>} : memref<1x1x21x16x16xf32, #tpu.memory_space<vmem>>, vector<1x1x1x8x16xf32>,
    %93 = vector.extract_strided_slice %57 {offsets = [0, 10, 0], sizes = [8, 1, 16], strides = [1, 1, 1]} : vector<8x56x16xf32> to vector<8x1x16xf32>
    %94 = vector.shape_cast %93 : vector<8x1x16xf32> to vector<8x16xf32>
    %cst_43 = arith.constant 2.500000e-01 : f32
    %95 = vector.broadcast %cst_43 : f32 to vector<8x16xf32>
    %96 = arith.mulf %94, %95 : vector<8x16xf32>
    %c0_44 = arith.constant 0 : index
    %c0_45 = arith.constant 0 : index
    %c5 = arith.constant 5 : index
    %c0_46 = arith.constant 0 : index
    %c0_47 = arith.constant 0 : index
    %97 = vector.load %arg5[%c0_44, %c0_45, %c5, %c0_46, %c0_47] : memref<1x1x21x16x16xf32, #tpu.memory_space<vmem>>, vector<1x1x1x8x16xf32>
    %98 = vector.shape_cast %97 : vector<1x1x1x8x16xf32> to vector<8x16xf32>
    %99 = vector.shape_cast %96 : vector<8x16xf32> to vector<1x1x1x8x16xf32>
    tpu.vector_store %arg5[%c0_44, %c0_45, %c5, %c0_46, %c0_47], %99 {strides = array<i32>} : memref<1x1x21x16x16xf32, #tpu.memory_space<vmem>>, vector<1x1x1x8x16xf32>,
    %100 = vector.extract_strided_slice %57 {offsets = [0, 12, 0], sizes = [8, 1, 16], strides = [1, 1, 1]} : vector<8x56x16xf32> to vector<8x1x16xf32>
    %101 = vector.shape_cast %100 : vector<8x1x16xf32> to vector<8x16xf32>
    %cst_48 = arith.constant 2.500000e-01 : f32
    %102 = vector.broadcast %cst_48 : f32 to vector<8x16xf32>
    %103 = arith.mulf %101, %102 : vector<8x16xf32>
    %c0_49 = arith.constant 0 : index
    %c0_50 = arith.constant 0 : index
    %c6 = arith.constant 6 : index
    %c0_51 = arith.constant 0 : index
    %c0_52 = arith.constant 0 : index
    %104 = vector.load %arg5[%c0_49, %c0_50, %c6, %c0_51, %c0_52] : memref<1x1x21x16x16xf32, #tpu.memory_space<vmem>>, vector<1x1x1x8x16xf32>
    %105 = vector.shape_cast %104 : vector<1x1x1x8x16xf32> to vector<8x16xf32>
    %106 = vector.shape_cast %103 : vector<8x16xf32> to vector<1x1x1x8x16xf32>
    tpu.vector_store %arg5[%c0_49, %c0_50, %c6, %c0_51, %c0_52], %106 {strides = array<i32>} : memref<1x1x21x16x16xf32, #tpu.memory_space<vmem>>, vector<1x1x1x8x16xf32>,
    %107 = vector.extract_strided_slice %57 {offsets = [0, 14, 0], sizes = [8, 1, 16], strides = [1, 1, 1]} : vector<8x56x16xf32> to vector<8x1x16xf32>
    %108 = vector.shape_cast %107 : vector<8x1x16xf32> to vector<8x16xf32>
    %cst_53 = arith.constant 2.500000e-01 : f32
    %109 = vector.broadcast %cst_53 : f32 to vector<8x16xf32>
    %110 = arith.mulf %108, %109 : vector<8x16xf32>
    %c0_54 = arith.constant 0 : index
    %c0_55 = arith.constant 0 : index
    %c7 = arith.constant 7 : index
    %c0_56 = arith.constant 0 : index
    %c0_57 = arith.constant 0 : index
    %111 = vector.load %arg5[%c0_54, %c0_55, %c7, %c0_56, %c0_57] : memref<1x1x21x16x16xf32, #tpu.memory_space<vmem>>, vector<1x1x1x8x16xf32>
    %112 = vector.shape_cast %111 : vector<1x1x1x8x16xf32> to vector<8x16xf32>
    %113 = vector.shape_cast %110 : vector<8x16xf32> to vector<1x1x1x8x16xf32>
    tpu.vector_store %arg5[%c0_54, %c0_55, %c7, %c0_56, %c0_57], %113 {strides = array<i32>} : memref<1x1x21x16x16xf32, #tpu.memory_space<vmem>>, vector<1x1x1x8x16xf32>,
    %114 = vector.extract_strided_slice %57 {offsets = [0, 16, 0], sizes = [8, 1, 16], strides = [1, 1, 1]} : vector<8x56x16xf32> to vector<8x1x16xf32>
    %115 = vector.shape_cast %114 : vector<8x1x16xf32> to vector<8x16xf32>
    %cst_58 = arith.constant 2.500000e-01 : f32
    %116 = vector.broadcast %cst_58 : f32 to vector<8x16xf32>
    %117 = arith.mulf %115, %116 : vector<8x16xf32>
    %c0_59 = arith.constant 0 : index
    %c0_60 = arith.constant 0 : index
    %c8 = arith.constant 8 : index
    %c0_61 = arith.constant 0 : index
    %c0_62 = arith.constant 0 : index
    %118 = vector.load %arg5[%c0_59, %c0_60, %c8, %c0_61, %c0_62] : memref<1x1x21x16x16xf32, #tpu.memory_space<vmem>>, vector<1x1x1x8x16xf32>
    %119 = vector.shape_cast %118 : vector<1x1x1x8x16xf32> to vector<8x16xf32>
    %120 = vector.shape_cast %117 : vector<8x16xf32> to vector<1x1x1x8x16xf32>
    tpu.vector_store %arg5[%c0_59, %c0_60, %c8, %c0_61, %c0_62], %120 {strides = array<i32>} : memref<1x1x21x16x16xf32, #tpu.memory_space<vmem>>, vector<1x1x1x8x16xf32>,
    %121 = vector.extract_strided_slice %57 {offsets = [0, 18, 0], sizes = [8, 1, 16], strides = [1, 1, 1]} : vector<8x56x16xf32> to vector<8x1x16xf32>
    %122 = vector.shape_cast %121 : vector<8x1x16xf32> to vector<8x16xf32>
    %cst_63 = arith.constant 2.500000e-01 : f32
    %123 = vector.broadcast %cst_63 : f32 to vector<8x16xf32>
    %124 = arith.mulf %122, %123 : vector<8x16xf32>
    %c0_64 = arith.constant 0 : index
    %c0_65 = arith.constant 0 : index
    %c9 = arith.constant 9 : index
    %c0_66 = arith.constant 0 : index
    %c0_67 = arith.constant 0 : index
    %125 = vector.load %arg5[%c0_64, %c0_65, %c9, %c0_66, %c0_67] : memref<1x1x21x16x16xf32, #tpu.memory_space<vmem>>, vector<1x1x1x8x16xf32>
    %126 = vector.shape_cast %125 : vector<1x1x1x8x16xf32> to vector<8x16xf32>
    %127 = vector.shape_cast %124 : vector<8x16xf32> to vector<1x1x1x8x16xf32>
    tpu.vector_store %arg5[%c0_64, %c0_65, %c9, %c0_66, %c0_67], %127 {strides = array<i32>} : memref<1x1x21x16x16xf32, #tpu.memory_space<vmem>>, vector<1x1x1x8x16xf32>,
    %128 = vector.extract_strided_slice %57 {offsets = [0, 20, 0], sizes = [8, 1, 16], strides = [1, 1, 1]} : vector<8x56x16xf32> to vector<8x1x16xf32>
    %129 = vector.shape_cast %128 : vector<8x1x16xf32> to vector<8x16xf32>
    %cst_68 = arith.constant 2.500000e-01 : f32
    %130 = vector.broadcast %cst_68 : f32 to vector<8x16xf32>
    %131 = arith.mulf %129, %130 : vector<8x16xf32>
    %c0_69 = arith.constant 0 : index
    %c0_70 = arith.constant 0 : index
    %c10 = arith.constant 10 : index
    %c0_71 = arith.constant 0 : index
    %c0_72 = arith.constant 0 : index
    %132 = vector.load %arg5[%c0_69, %c0_70, %c10, %c0_71, %c0_72] : memref<1x1x21x16x16xf32, #tpu.memory_space<vmem>>, vector<1x1x1x8x16xf32>
    %133 = vector.shape_cast %132 : vector<1x1x1x8x16xf32> to vector<8x16xf32>
    %134 = vector.shape_cast %131 : vector<8x16xf32> to vector<1x1x1x8x16xf32>
    tpu.vector_store %arg5[%c0_69, %c0_70, %c10, %c0_71, %c0_72], %134 {strides = array<i32>} : memref<1x1x21x16x16xf32, #tpu.memory_space<vmem>>, vector<1x1x1x8x16xf32>,
    %135 = vector.extract_strided_slice %57 {offsets = [0, 22, 0], sizes = [8, 1, 16], strides = [1, 1, 1]} : vector<8x56x16xf32> to vector<8x1x16xf32>
    %136 = vector.shape_cast %135 : vector<8x1x16xf32> to vector<8x16xf32>
    %cst_73 = arith.constant 2.500000e-01 : f32
    %137 = vector.broadcast %cst_73 : f32 to vector<8x16xf32>
    %138 = arith.mulf %136, %137 : vector<8x16xf32>
    %c0_74 = arith.constant 0 : index
    %c0_75 = arith.constant 0 : index
    %c11 = arith.constant 11 : index
    %c0_76 = arith.constant 0 : index
    %c0_77 = arith.constant 0 : index
    %139 = vector.load %arg5[%c0_74, %c0_75, %c11, %c0_76, %c0_77] : memref<1x1x21x16x16xf32, #tpu.memory_space<vmem>>, vector<1x1x1x8x16xf32>
    %140 = vector.shape_cast %139 : vector<1x1x1x8x16xf32> to vector<8x16xf32>
    %141 = vector.shape_cast %138 : vector<8x16xf32> to vector<1x1x1x8x16xf32>
    tpu.vector_store %arg5[%c0_74, %c0_75, %c11, %c0_76, %c0_77], %141 {strides = array<i32>} : memref<1x1x21x16x16xf32, #tpu.memory_space<vmem>>, vector<1x1x1x8x16xf32>,
    %142 = vector.extract_strided_slice %57 {offsets = [0, 24, 0], sizes = [8, 1, 16], strides = [1, 1, 1]} : vector<8x56x16xf32> to vector<8x1x16xf32>
    %143 = vector.shape_cast %142 : vector<8x1x16xf32> to vector<8x16xf32>
    %cst_78 = arith.constant 2.500000e-01 : f32
    %144 = vector.broadcast %cst_78 : f32 to vector<8x16xf32>
    %145 = arith.mulf %143, %144 : vector<8x16xf32>
    %c0_79 = arith.constant 0 : index
    %c0_80 = arith.constant 0 : index
    %c12 = arith.constant 12 : index
    %c0_81 = arith.constant 0 : index
    %c0_82 = arith.constant 0 : index
    %146 = vector.load %arg5[%c0_79, %c0_80, %c12, %c0_81, %c0_82] : memref<1x1x21x16x16xf32, #tpu.memory_space<vmem>>, vector<1x1x1x8x16xf32>
    %147 = vector.shape_cast %146 : vector<1x1x1x8x16xf32> to vector<8x16xf32>
    %148 = vector.shape_cast %145 : vector<8x16xf32> to vector<1x1x1x8x16xf32>
    tpu.vector_store %arg5[%c0_79, %c0_80, %c12, %c0_81, %c0_82], %148 {strides = array<i32>} : memref<1x1x21x16x16xf32, #tpu.memory_space<vmem>>, vector<1x1x1x8x16xf32>,
    %149 = vector.extract_strided_slice %57 {offsets = [0, 26, 0], sizes = [8, 1, 16], strides = [1, 1, 1]} : vector<8x56x16xf32> to vector<8x1x16xf32>
    %150 = vector.shape_cast %149 : vector<8x1x16xf32> to vector<8x16xf32>
    %cst_83 = arith.constant 2.500000e-01 : f32
    %151 = vector.broadcast %cst_83 : f32 to vector<8x16xf32>
    %152 = arith.mulf %150, %151 : vector<8x16xf32>
    %c0_84 = arith.constant 0 : index
    %c0_85 = arith.constant 0 : index
    %c13 = arith.constant 13 : index
    %c0_86 = arith.constant 0 : index
    %c0_87 = arith.constant 0 : index
    %153 = vector.load %arg5[%c0_84, %c0_85, %c13, %c0_86, %c0_87] : memref<1x1x21x16x16xf32, #tpu.memory_space<vmem>>, vector<1x1x1x8x16xf32>
    %154 = vector.shape_cast %153 : vector<1x1x1x8x16xf32> to vector<8x16xf32>
    %155 = vector.shape_cast %152 : vector<8x16xf32> to vector<1x1x1x8x16xf32>
    tpu.vector_store %arg5[%c0_84, %c0_85, %c13, %c0_86, %c0_87], %155 {strides = array<i32>} : memref<1x1x21x16x16xf32, #tpu.memory_space<vmem>>, vector<1x1x1x8x16xf32>,
    %156 = vector.extract_strided_slice %57 {offsets = [0, 28, 0], sizes = [8, 1, 16], strides = [1, 1, 1]} : vector<8x56x16xf32> to vector<8x1x16xf32>
    %157 = vector.shape_cast %156 : vector<8x1x16xf32> to vector<8x16xf32>
    %cst_88 = arith.constant 2.500000e-01 : f32
    %158 = vector.broadcast %cst_88 : f32 to vector<8x16xf32>
    %159 = arith.mulf %157, %158 : vector<8x16xf32>
    %c0_89 = arith.constant 0 : index
    %c0_90 = arith.constant 0 : index
    %c14 = arith.constant 14 : index
    %c0_91 = arith.constant 0 : index
    %c0_92 = arith.constant 0 : index
    %160 = vector.load %arg5[%c0_89, %c0_90, %c14, %c0_91, %c0_92] : memref<1x1x21x16x16xf32, #tpu.memory_space<vmem>>, vector<1x1x1x8x16xf32>
    %161 = vector.shape_cast %160 : vector<1x1x1x8x16xf32> to vector<8x16xf32>
    %162 = vector.shape_cast %159 : vector<8x16xf32> to vector<1x1x1x8x16xf32>
    tpu.vector_store %arg5[%c0_89, %c0_90, %c14, %c0_91, %c0_92], %162 {strides = array<i32>} : memref<1x1x21x16x16xf32, #tpu.memory_space<vmem>>, vector<1x1x1x8x16xf32>,
    %163 = vector.extract_strided_slice %57 {offsets = [0, 30, 0], sizes = [8, 1, 16], strides = [1, 1, 1]} : vector<8x56x16xf32> to vector<8x1x16xf32>
    %164 = vector.shape_cast %163 : vector<8x1x16xf32> to vector<8x16xf32>
    %cst_93 = arith.constant 2.500000e-01 : f32
    %165 = vector.broadcast %cst_93 : f32 to vector<8x16xf32>
    %166 = arith.mulf %164, %165 : vector<8x16xf32>
    %c0_94 = arith.constant 0 : index
    %c0_95 = arith.constant 0 : index
    %c15 = arith.constant 15 : index
    %c0_96 = arith.constant 0 : index
    %c0_97 = arith.constant 0 : index
    %167 = vector.load %arg5[%c0_94, %c0_95, %c15, %c0_96, %c0_97] : memref<1x1x21x16x16xf32, #tpu.memory_space<vmem>>, vector<1x1x1x8x16xf32>
    %168 = vector.shape_cast %167 : vector<1x1x1x8x16xf32> to vector<8x16xf32>
    %169 = vector.shape_cast %166 : vector<8x16xf32> to vector<1x1x1x8x16xf32>
    tpu.vector_store %arg5[%c0_94, %c0_95, %c15, %c0_96, %c0_97], %169 {strides = array<i32>} : memref<1x1x21x16x16xf32, #tpu.memory_space<vmem>>, vector<1x1x1x8x16xf32>,
    %170 = vector.extract_strided_slice %57 {offsets = [0, 32, 0], sizes = [8, 1, 16], strides = [1, 1, 1]} : vector<8x56x16xf32> to vector<8x1x16xf32>
    %171 = vector.shape_cast %170 : vector<8x1x16xf32> to vector<8x16xf32>
    %cst_98 = arith.constant 2.500000e-01 : f32
    %172 = vector.broadcast %cst_98 : f32 to vector<8x16xf32>
    %173 = arith.mulf %171, %172 : vector<8x16xf32>
    %c0_99 = arith.constant 0 : index
    %c0_100 = arith.constant 0 : index
    %c16 = arith.constant 16 : index
    %c0_101 = arith.constant 0 : index
    %c0_102 = arith.constant 0 : index
    %174 = vector.load %arg5[%c0_99, %c0_100, %c16, %c0_101, %c0_102] : memref<1x1x21x16x16xf32, #tpu.memory_space<vmem>>, vector<1x1x1x8x16xf32>
    %175 = vector.shape_cast %174 : vector<1x1x1x8x16xf32> to vector<8x16xf32>
    %176 = vector.shape_cast %173 : vector<8x16xf32> to vector<1x1x1x8x16xf32>
    tpu.vector_store %arg5[%c0_99, %c0_100, %c16, %c0_101, %c0_102], %176 {strides = array<i32>} : memref<1x1x21x16x16xf32, #tpu.memory_space<vmem>>, vector<1x1x1x8x16xf32>,
    %177 = vector.extract_strided_slice %57 {offsets = [0, 34, 0], sizes = [8, 1, 16], strides = [1, 1, 1]} : vector<8x56x16xf32> to vector<8x1x16xf32>
    %178 = vector.shape_cast %177 : vector<8x1x16xf32> to vector<8x16xf32>
    %cst_103 = arith.constant 2.500000e-01 : f32
    %179 = vector.broadcast %cst_103 : f32 to vector<8x16xf32>
    %180 = arith.mulf %178, %179 : vector<8x16xf32>
    %c0_104 = arith.constant 0 : index
    %c0_105 = arith.constant 0 : index
    %c17 = arith.constant 17 : index
    %c0_106 = arith.constant 0 : index
    %c0_107 = arith.constant 0 : index
    %181 = vector.load %arg5[%c0_104, %c0_105, %c17, %c0_106, %c0_107] : memref<1x1x21x16x16xf32, #tpu.memory_space<vmem>>, vector<1x1x1x8x16xf32>
    %182 = vector.shape_cast %181 : vector<1x1x1x8x16xf32> to vector<8x16xf32>
    %183 = vector.shape_cast %180 : vector<8x16xf32> to vector<1x1x1x8x16xf32>
    tpu.vector_store %arg5[%c0_104, %c0_105, %c17, %c0_106, %c0_107], %183 {strides = array<i32>} : memref<1x1x21x16x16xf32, #tpu.memory_space<vmem>>, vector<1x1x1x8x16xf32>,
    %184 = vector.extract_strided_slice %57 {offsets = [0, 36, 0], sizes = [8, 1, 16], strides = [1, 1, 1]} : vector<8x56x16xf32> to vector<8x1x16xf32>
    %185 = vector.shape_cast %184 : vector<8x1x16xf32> to vector<8x16xf32>
    %cst_108 = arith.constant 2.500000e-01 : f32
    %186 = vector.broadcast %cst_108 : f32 to vector<8x16xf32>
    %187 = arith.mulf %185, %186 : vector<8x16xf32>
    %c0_109 = arith.constant 0 : index
    %c0_110 = arith.constant 0 : index
    %c18 = arith.constant 18 : index
    %c0_111 = arith.constant 0 : index
    %c0_112 = arith.constant 0 : index
    %188 = vector.load %arg5[%c0_109, %c0_110, %c18, %c0_111, %c0_112] : memref<1x1x21x16x16xf32, #tpu.memory_space<vmem>>, vector<1x1x1x8x16xf32>
    %189 = vector.shape_cast %188 : vector<1x1x1x8x16xf32> to vector<8x16xf32>
    %190 = vector.shape_cast %187 : vector<8x16xf32> to vector<1x1x1x8x16xf32>
    tpu.vector_store %arg5[%c0_109, %c0_110, %c18, %c0_111, %c0_112], %190 {strides = array<i32>} : memref<1x1x21x16x16xf32, #tpu.memory_space<vmem>>, vector<1x1x1x8x16xf32>,
    %191 = vector.extract_strided_slice %57 {offsets = [0, 38, 0], sizes = [8, 1, 16], strides = [1, 1, 1]} : vector<8x56x16xf32> to vector<8x1x16xf32>
    %192 = vector.shape_cast %191 : vector<8x1x16xf32> to vector<8x16xf32>
    %cst_113 = arith.constant 2.500000e-01 : f32
    %193 = vector.broadcast %cst_113 : f32 to vector<8x16xf32>
    %194 = arith.mulf %192, %193 : vector<8x16xf32>
    %c0_114 = arith.constant 0 : index
    %c0_115 = arith.constant 0 : index
    %c19 = arith.constant 19 : index
    %c0_116 = arith.constant 0 : index
    %c0_117 = arith.constant 0 : index
    %195 = vector.load %arg5[%c0_114, %c0_115, %c19, %c0_116, %c0_117] : memref<1x1x21x16x16xf32, #tpu.memory_space<vmem>>, vector<1x1x1x8x16xf32>
    %196 = vector.shape_cast %195 : vector<1x1x1x8x16xf32> to vector<8x16xf32>
    %197 = vector.shape_cast %194 : vector<8x16xf32> to vector<1x1x1x8x16xf32>
    tpu.vector_store %arg5[%c0_114, %c0_115, %c19, %c0_116, %c0_117], %197 {strides = array<i32>} : memref<1x1x21x16x16xf32, #tpu.memory_space<vmem>>, vector<1x1x1x8x16xf32>,
    %198 = vector.extract_strided_slice %57 {offsets = [0, 40, 0], sizes = [8, 1, 16], strides = [1, 1, 1]} : vector<8x56x16xf32> to vector<8x1x16xf32>
    %199 = vector.shape_cast %198 : vector<8x1x16xf32> to vector<8x16xf32>
    %cst_118 = arith.constant 2.500000e-01 : f32
    %200 = vector.broadcast %cst_118 : f32 to vector<8x16xf32>
    %201 = arith.mulf %199, %200 : vector<8x16xf32>
    %c0_119 = arith.constant 0 : index
    %c0_120 = arith.constant 0 : index
    %c20 = arith.constant 20 : index
    %c0_121 = arith.constant 0 : index
    %c0_122 = arith.constant 0 : index
    %202 = vector.load %arg5[%c0_119, %c0_120, %c20, %c0_121, %c0_122] : memref<1x1x21x16x16xf32, #tpu.memory_space<vmem>>, vector<1x1x1x8x16xf32>
    %203 = vector.shape_cast %202 : vector<1x1x1x8x16xf32> to vector<8x16xf32>
    %204 = vector.shape_cast %201 : vector<8x16xf32> to vector<1x1x1x8x16xf32>
    tpu.vector_store %arg5[%c0_119, %c0_120, %c20, %c0_121, %c0_122], %204 {strides = array<i32>} : memref<1x1x21x16x16xf32, #tpu.memory_space<vmem>>, vector<1x1x1x8x16xf32>,
    %c0_123 = arith.constant 0 : index
    %c8_124 = arith.constant 8 : index
    %c0_125 = arith.constant 0 : index
    %c0_126 = arith.constant 0 : index
    %205 = vector.load %arg3[%c0_123, %c8_124, %c0_125, %c0_126] : memref<1x16x16x4xf32, #tpu.memory_space<vmem>>, vector<1x8x16x4xf32>
    %206 = vector.shape_cast %205 : vector<1x8x16x4xf32> to vector<8x16x4xf32>
    %c8_i32 = arith.constant 8 : i32
    %207 = arith.addi %1, %c8_i32 : i32
    %c0_127 = arith.constant 0 : index
    %208 = arith.index_cast %207 : i32 to index
    %c0_128 = arith.constant 0 : index
    %c0_129 = arith.constant 0 : index
    %209 = vector.load %arg4[%c0_127, %208, %c0_128, %c0_129] : memref<1x56x56x4xf32, #tpu.memory_space<vmem>>, vector<1x8x56x4xf32>
    %210 = vector.shape_cast %209 : vector<1x8x56x4xf32> to vector<8x56x4xf32>
    %cst_130 = arith.constant dense<0.000000e+00> : vector<8x56x16xf32>
    %211 = tpu.matmul %210, %206, %cst_130 {dimension_numbers = #tpu.dot_dimension_numbers<[2], [2], [1], [1], [0, 0, 0, 1, 1, 1], [0], [0]>} : vector<8x56x4xf32>, vector<8x16x4xf32>, vector<8x56x16xf32> -> vector<8x56x16xf32>
    %212 = vector.extract_strided_slice %211 {offsets = [0, 1, 0], sizes = [8, 55, 16], strides = [1, 1, 1]} : vector<8x56x16xf32> to vector<8x55x16xf32>
    %213 = vector.extract_strided_slice %211 {offsets = [0, 0, 0], sizes = [8, 1, 16], strides = [1, 1, 1]} : vector<8x56x16xf32> to vector<8x1x16xf32>
    %214 = tpu.concatenate %212, %213 in 1 : vector<8x55x16xf32>, vector<8x1x16xf32> -> vector<8x56x16xf32>
    %215 = vector.shape_cast %8 : vector<1x1x16xi1> to vector<1x1x16xi1>
    %216 = vector.broadcast %215 : vector<1x1x16xi1> to vector<8x56x16xi1>
    %217 = arith.select %216, %214, %211 : vector<8x56x16xi1>, vector<8x56x16xf32>
    %218 = vector.extract_strided_slice %217 {offsets = [0, 2, 0], sizes = [8, 54, 16], strides = [1, 1, 1]} : vector<8x56x16xf32> to vector<8x54x16xf32>
    %219 = vector.extract_strided_slice %217 {offsets = [0, 0, 0], sizes = [8, 2, 16], strides = [1, 1, 1]} : vector<8x56x16xf32> to vector<8x2x16xf32>
    %220 = tpu.concatenate %218, %219 in 1 : vector<8x54x16xf32>, vector<8x2x16xf32> -> vector<8x56x16xf32>
    %221 = vector.shape_cast %14 : vector<1x1x16xi1> to vector<1x1x16xi1>
    %222 = vector.broadcast %221 : vector<1x1x16xi1> to vector<8x56x16xi1>
    %223 = arith.select %222, %220, %217 : vector<8x56x16xi1>, vector<8x56x16xf32>
    %224 = vector.extract_strided_slice %223 {offsets = [0, 4, 0], sizes = [8, 52, 16], strides = [1, 1, 1]} : vector<8x56x16xf32> to vector<8x52x16xf32>
    %225 = vector.extract_strided_slice %223 {offsets = [0, 0, 0], sizes = [8, 4, 16], strides = [1, 1, 1]} : vector<8x56x16xf32> to vector<8x4x16xf32>
    %226 = tpu.concatenate %224, %225 in 1 : vector<8x52x16xf32>, vector<8x4x16xf32> -> vector<8x56x16xf32>
    %227 = vector.shape_cast %20 : vector<1x1x16xi1> to vector<1x1x16xi1>
    %228 = vector.broadcast %227 : vector<1x1x16xi1> to vector<8x56x16xi1>
    %229 = arith.select %228, %226, %223 : vector<8x56x16xi1>, vector<8x56x16xf32>
    %230 = vector.extract_strided_slice %229 {offsets = [0, 8, 0], sizes = [8, 48, 16], strides = [1, 1, 1]} : vector<8x56x16xf32> to vector<8x48x16xf32>
    %231 = vector.extract_strided_slice %229 {offsets = [0, 0, 0], sizes = [8, 8, 16], strides = [1, 1, 1]} : vector<8x56x16xf32> to vector<8x8x16xf32>
    %232 = tpu.concatenate %230, %231 in 1 : vector<8x48x16xf32>, vector<8x8x16xf32> -> vector<8x56x16xf32>
    %233 = vector.shape_cast %26 : vector<1x1x16xi1> to vector<1x1x16xi1>
    %234 = vector.broadcast %233 : vector<1x1x16xi1> to vector<8x56x16xi1>
    %235 = arith.select %234, %232, %229 : vector<8x56x16xi1>, vector<8x56x16xf32>
    %236 = vector.extract_strided_slice %235 {offsets = [0, 0, 0], sizes = [8, 1, 16], strides = [1, 1, 1]} : vector<8x56x16xf32> to vector<8x1x16xf32>
    %237 = vector.shape_cast %236 : vector<8x1x16xf32> to vector<8x16xf32>
    %cst_131 = arith.constant 2.500000e-01 : f32
    %238 = vector.broadcast %cst_131 : f32 to vector<8x16xf32>
    %239 = arith.mulf %237, %238 : vector<8x16xf32>
    %c0_132 = arith.constant 0 : index
    %c0_133 = arith.constant 0 : index
    %c0_134 = arith.constant 0 : index
    %c8_135 = arith.constant 8 : index
    %c0_136 = arith.constant 0 : index
    %240 = vector.load %arg5[%c0_132, %c0_133, %c0_134, %c8_135, %c0_136] : memref<1x1x21x16x16xf32, #tpu.memory_space<vmem>>, vector<1x1x1x8x16xf32>
    %241 = vector.shape_cast %240 : vector<1x1x1x8x16xf32> to vector<8x16xf32>
    %242 = vector.shape_cast %239 : vector<8x16xf32> to vector<1x1x1x8x16xf32>
    tpu.vector_store %arg5[%c0_132, %c0_133, %c0_134, %c8_135, %c0_136], %242 {strides = array<i32>} : memref<1x1x21x16x16xf32, #tpu.memory_space<vmem>>, vector<1x1x1x8x16xf32>,
    %243 = vector.extract_strided_slice %235 {offsets = [0, 2, 0], sizes = [8, 1, 16], strides = [1, 1, 1]} : vector<8x56x16xf32> to vector<8x1x16xf32>
    %244 = vector.shape_cast %243 : vector<8x1x16xf32> to vector<8x16xf32>
    %cst_137 = arith.constant 2.500000e-01 : f32
    %245 = vector.broadcast %cst_137 : f32 to vector<8x16xf32>
    %246 = arith.mulf %244, %245 : vector<8x16xf32>
    %c0_138 = arith.constant 0 : index
    %c0_139 = arith.constant 0 : index
    %c1_140 = arith.constant 1 : index
    %c8_141 = arith.constant 8 : index
    %c0_142 = arith.constant 0 : index
    %247 = vector.load %arg5[%c0_138, %c0_139, %c1_140, %c8_141, %c0_142] : memref<1x1x21x16x16xf32, #tpu.memory_space<vmem>>, vector<1x1x1x8x16xf32>
    %248 = vector.shape_cast %247 : vector<1x1x1x8x16xf32> to vector<8x16xf32>
    %249 = vector.shape_cast %246 : vector<8x16xf32> to vector<1x1x1x8x16xf32>
    tpu.vector_store %arg5[%c0_138, %c0_139, %c1_140, %c8_141, %c0_142], %249 {strides = array<i32>} : memref<1x1x21x16x16xf32, #tpu.memory_space<vmem>>, vector<1x1x1x8x16xf32>,
    %250 = vector.extract_strided_slice %235 {offsets = [0, 4, 0], sizes = [8, 1, 16], strides = [1, 1, 1]} : vector<8x56x16xf32> to vector<8x1x16xf32>
    %251 = vector.shape_cast %250 : vector<8x1x16xf32> to vector<8x16xf32>
    %cst_143 = arith.constant 2.500000e-01 : f32
    %252 = vector.broadcast %cst_143 : f32 to vector<8x16xf32>
    %253 = arith.mulf %251, %252 : vector<8x16xf32>
    %c0_144 = arith.constant 0 : index
    %c0_145 = arith.constant 0 : index
    %c2_146 = arith.constant 2 : index
    %c8_147 = arith.constant 8 : index
    %c0_148 = arith.constant 0 : index
    %254 = vector.load %arg5[%c0_144, %c0_145, %c2_146, %c8_147, %c0_148] : memref<1x1x21x16x16xf32, #tpu.memory_space<vmem>>, vector<1x1x1x8x16xf32>
    %255 = vector.shape_cast %254 : vector<1x1x1x8x16xf32> to vector<8x16xf32>
    %256 = vector.shape_cast %253 : vector<8x16xf32> to vector<1x1x1x8x16xf32>
    tpu.vector_store %arg5[%c0_144, %c0_145, %c2_146, %c8_147, %c0_148], %256 {strides = array<i32>} : memref<1x1x21x16x16xf32, #tpu.memory_space<vmem>>, vector<1x1x1x8x16xf32>,
    %257 = vector.extract_strided_slice %235 {offsets = [0, 6, 0], sizes = [8, 1, 16], strides = [1, 1, 1]} : vector<8x56x16xf32> to vector<8x1x16xf32>
    %258 = vector.shape_cast %257 : vector<8x1x16xf32> to vector<8x16xf32>
    %cst_149 = arith.constant 2.500000e-01 : f32
    %259 = vector.broadcast %cst_149 : f32 to vector<8x16xf32>
    %260 = arith.mulf %258, %259 : vector<8x16xf32>
    %c0_150 = arith.constant 0 : index
    %c0_151 = arith.constant 0 : index
    %c3_152 = arith.constant 3 : index
    %c8_153 = arith.constant 8 : index
    %c0_154 = arith.constant 0 : index
    %261 = vector.load %arg5[%c0_150, %c0_151, %c3_152, %c8_153, %c0_154] : memref<1x1x21x16x16xf32, #tpu.memory_space<vmem>>, vector<1x1x1x8x16xf32>
    %262 = vector.shape_cast %261 : vector<1x1x1x8x16xf32> to vector<8x16xf32>
    %263 = vector.shape_cast %260 : vector<8x16xf32> to vector<1x1x1x8x16xf32>
    tpu.vector_store %arg5[%c0_150, %c0_151, %c3_152, %c8_153, %c0_154], %263 {strides = array<i32>} : memref<1x1x21x16x16xf32, #tpu.memory_space<vmem>>, vector<1x1x1x8x16xf32>,
    %264 = vector.extract_strided_slice %235 {offsets = [0, 8, 0], sizes = [8, 1, 16], strides = [1, 1, 1]} : vector<8x56x16xf32> to vector<8x1x16xf32>
    %265 = vector.shape_cast %264 : vector<8x1x16xf32> to vector<8x16xf32>
    %cst_155 = arith.constant 2.500000e-01 : f32
    %266 = vector.broadcast %cst_155 : f32 to vector<8x16xf32>
    %267 = arith.mulf %265, %266 : vector<8x16xf32>
    %c0_156 = arith.constant 0 : index
    %c0_157 = arith.constant 0 : index
    %c4_158 = arith.constant 4 : index
    %c8_159 = arith.constant 8 : index
    %c0_160 = arith.constant 0 : index
    %268 = vector.load %arg5[%c0_156, %c0_157, %c4_158, %c8_159, %c0_160] : memref<1x1x21x16x16xf32, #tpu.memory_space<vmem>>, vector<1x1x1x8x16xf32>
    %269 = vector.shape_cast %268 : vector<1x1x1x8x16xf32> to vector<8x16xf32>
    %270 = vector.shape_cast %267 : vector<8x16xf32> to vector<1x1x1x8x16xf32>
    tpu.vector_store %arg5[%c0_156, %c0_157, %c4_158, %c8_159, %c0_160], %270 {strides = array<i32>} : memref<1x1x21x16x16xf32, #tpu.memory_space<vmem>>, vector<1x1x1x8x16xf32>,
    %271 = vector.extract_strided_slice %235 {offsets = [0, 10, 0], sizes = [8, 1, 16], strides = [1, 1, 1]} : vector<8x56x16xf32> to vector<8x1x16xf32>
    %272 = vector.shape_cast %271 : vector<8x1x16xf32> to vector<8x16xf32>
    %cst_161 = arith.constant 2.500000e-01 : f32
    %273 = vector.broadcast %cst_161 : f32 to vector<8x16xf32>
    %274 = arith.mulf %272, %273 : vector<8x16xf32>
    %c0_162 = arith.constant 0 : index
    %c0_163 = arith.constant 0 : index
    %c5_164 = arith.constant 5 : index
    %c8_165 = arith.constant 8 : index
    %c0_166 = arith.constant 0 : index
    %275 = vector.load %arg5[%c0_162, %c0_163, %c5_164, %c8_165, %c0_166] : memref<1x1x21x16x16xf32, #tpu.memory_space<vmem>>, vector<1x1x1x8x16xf32>
    %276 = vector.shape_cast %275 : vector<1x1x1x8x16xf32> to vector<8x16xf32>
    %277 = vector.shape_cast %274 : vector<8x16xf32> to vector<1x1x1x8x16xf32>
    tpu.vector_store %arg5[%c0_162, %c0_163, %c5_164, %c8_165, %c0_166], %277 {strides = array<i32>} : memref<1x1x21x16x16xf32, #tpu.memory_space<vmem>>, vector<1x1x1x8x16xf32>,
    %278 = vector.extract_strided_slice %235 {offsets = [0, 12, 0], sizes = [8, 1, 16], strides = [1, 1, 1]} : vector<8x56x16xf32> to vector<8x1x16xf32>
    %279 = vector.shape_cast %278 : vector<8x1x16xf32> to vector<8x16xf32>
    %cst_167 = arith.constant 2.500000e-01 : f32
    %280 = vector.broadcast %cst_167 : f32 to vector<8x16xf32>
    %281 = arith.mulf %279, %280 : vector<8x16xf32>
    %c0_168 = arith.constant 0 : index
    %c0_169 = arith.constant 0 : index
    %c6_170 = arith.constant 6 : index
    %c8_171 = arith.constant 8 : index
    %c0_172 = arith.constant 0 : index
    %282 = vector.load %arg5[%c0_168, %c0_169, %c6_170, %c8_171, %c0_172] : memref<1x1x21x16x16xf32, #tpu.memory_space<vmem>>, vector<1x1x1x8x16xf32>
    %283 = vector.shape_cast %282 : vector<1x1x1x8x16xf32> to vector<8x16xf32>
    %284 = vector.shape_cast %281 : vector<8x16xf32> to vector<1x1x1x8x16xf32>
    tpu.vector_store %arg5[%c0_168, %c0_169, %c6_170, %c8_171, %c0_172], %284 {strides = array<i32>} : memref<1x1x21x16x16xf32, #tpu.memory_space<vmem>>, vector<1x1x1x8x16xf32>,
    %285 = vector.extract_strided_slice %235 {offsets = [0, 14, 0], sizes = [8, 1, 16], strides = [1, 1, 1]} : vector<8x56x16xf32> to vector<8x1x16xf32>
    %286 = vector.shape_cast %285 : vector<8x1x16xf32> to vector<8x16xf32>
    %cst_173 = arith.constant 2.500000e-01 : f32
    %287 = vector.broadcast %cst_173 : f32 to vector<8x16xf32>
    %288 = arith.mulf %286, %287 : vector<8x16xf32>
    %c0_174 = arith.constant 0 : index
    %c0_175 = arith.constant 0 : index
    %c7_176 = arith.constant 7 : index
    %c8_177 = arith.constant 8 : index
    %c0_178 = arith.constant 0 : index
    %289 = vector.load %arg5[%c0_174, %c0_175, %c7_176, %c8_177, %c0_178] : memref<1x1x21x16x16xf32, #tpu.memory_space<vmem>>, vector<1x1x1x8x16xf32>
    %290 = vector.shape_cast %289 : vector<1x1x1x8x16xf32> to vector<8x16xf32>
    %291 = vector.shape_cast %288 : vector<8x16xf32> to vector<1x1x1x8x16xf32>
    tpu.vector_store %arg5[%c0_174, %c0_175, %c7_176, %c8_177, %c0_178], %291 {strides = array<i32>} : memref<1x1x21x16x16xf32, #tpu.memory_space<vmem>>, vector<1x1x1x8x16xf32>,
    %292 = vector.extract_strided_slice %235 {offsets = [0, 16, 0], sizes = [8, 1, 16], strides = [1, 1, 1]} : vector<8x56x16xf32> to vector<8x1x16xf32>
    %293 = vector.shape_cast %292 : vector<8x1x16xf32> to vector<8x16xf32>
    %cst_179 = arith.constant 2.500000e-01 : f32
    %294 = vector.broadcast %cst_179 : f32 to vector<8x16xf32>
    %295 = arith.mulf %293, %294 : vector<8x16xf32>
    %c0_180 = arith.constant 0 : index
    %c0_181 = arith.constant 0 : index
    %c8_182 = arith.constant 8 : index
    %c8_183 = arith.constant 8 : index
    %c0_184 = arith.constant 0 : index
    %296 = vector.load %arg5[%c0_180, %c0_181, %c8_182, %c8_183, %c0_184] : memref<1x1x21x16x16xf32, #tpu.memory_space<vmem>>, vector<1x1x1x8x16xf32>
    %297 = vector.shape_cast %296 : vector<1x1x1x8x16xf32> to vector<8x16xf32>
    %298 = vector.shape_cast %295 : vector<8x16xf32> to vector<1x1x1x8x16xf32>
    tpu.vector_store %arg5[%c0_180, %c0_181, %c8_182, %c8_183, %c0_184], %298 {strides = array<i32>} : memref<1x1x21x16x16xf32, #tpu.memory_space<vmem>>, vector<1x1x1x8x16xf32>,
    %299 = vector.extract_strided_slice %235 {offsets = [0, 18, 0], sizes = [8, 1, 16], strides = [1, 1, 1]} : vector<8x56x16xf32> to vector<8x1x16xf32>
    %300 = vector.shape_cast %299 : vector<8x1x16xf32> to vector<8x16xf32>
    %cst_185 = arith.constant 2.500000e-01 : f32
    %301 = vector.broadcast %cst_185 : f32 to vector<8x16xf32>
    %302 = arith.mulf %300, %301 : vector<8x16xf32>
    %c0_186 = arith.constant 0 : index
    %c0_187 = arith.constant 0 : index
    %c9_188 = arith.constant 9 : index
    %c8_189 = arith.constant 8 : index
    %c0_190 = arith.constant 0 : index
    %303 = vector.load %arg5[%c0_186, %c0_187, %c9_188, %c8_189, %c0_190] : memref<1x1x21x16x16xf32, #tpu.memory_space<vmem>>, vector<1x1x1x8x16xf32>
    %304 = vector.shape_cast %303 : vector<1x1x1x8x16xf32> to vector<8x16xf32>
    %305 = vector.shape_cast %302 : vector<8x16xf32> to vector<1x1x1x8x16xf32>
    tpu.vector_store %arg5[%c0_186, %c0_187, %c9_188, %c8_189, %c0_190], %305 {strides = array<i32>} : memref<1x1x21x16x16xf32, #tpu.memory_space<vmem>>, vector<1x1x1x8x16xf32>,
    %306 = vector.extract_strided_slice %235 {offsets = [0, 20, 0], sizes = [8, 1, 16], strides = [1, 1, 1]} : vector<8x56x16xf32> to vector<8x1x16xf32>
    %307 = vector.shape_cast %306 : vector<8x1x16xf32> to vector<8x16xf32>
    %cst_191 = arith.constant 2.500000e-01 : f32
    %308 = vector.broadcast %cst_191 : f32 to vector<8x16xf32>
    %309 = arith.mulf %307, %308 : vector<8x16xf32>
    %c0_192 = arith.constant 0 : index
    %c0_193 = arith.constant 0 : index
    %c10_194 = arith.constant 10 : index
    %c8_195 = arith.constant 8 : index
    %c0_196 = arith.constant 0 : index
    %310 = vector.load %arg5[%c0_192, %c0_193, %c10_194, %c8_195, %c0_196] : memref<1x1x21x16x16xf32, #tpu.memory_space<vmem>>, vector<1x1x1x8x16xf32>
    %311 = vector.shape_cast %310 : vector<1x1x1x8x16xf32> to vector<8x16xf32>
    %312 = vector.shape_cast %309 : vector<8x16xf32> to vector<1x1x1x8x16xf32>
    tpu.vector_store %arg5[%c0_192, %c0_193, %c10_194, %c8_195, %c0_196], %312 {strides = array<i32>} : memref<1x1x21x16x16xf32, #tpu.memory_space<vmem>>, vector<1x1x1x8x16xf32>,
    %313 = vector.extract_strided_slice %235 {offsets = [0, 22, 0], sizes = [8, 1, 16], strides = [1, 1, 1]} : vector<8x56x16xf32> to vector<8x1x16xf32>
    %314 = vector.shape_cast %313 : vector<8x1x16xf32> to vector<8x16xf32>
    %cst_197 = arith.constant 2.500000e-01 : f32
    %315 = vector.broadcast %cst_197 : f32 to vector<8x16xf32>
    %316 = arith.mulf %314, %315 : vector<8x16xf32>
    %c0_198 = arith.constant 0 : index
    %c0_199 = arith.constant 0 : index
    %c11_200 = arith.constant 11 : index
    %c8_201 = arith.constant 8 : index
    %c0_202 = arith.constant 0 : index
    %317 = vector.load %arg5[%c0_198, %c0_199, %c11_200, %c8_201, %c0_202] : memref<1x1x21x16x16xf32, #tpu.memory_space<vmem>>, vector<1x1x1x8x16xf32>
    %318 = vector.shape_cast %317 : vector<1x1x1x8x16xf32> to vector<8x16xf32>
    %319 = vector.shape_cast %316 : vector<8x16xf32> to vector<1x1x1x8x16xf32>
    tpu.vector_store %arg5[%c0_198, %c0_199, %c11_200, %c8_201, %c0_202], %319 {strides = array<i32>} : memref<1x1x21x16x16xf32, #tpu.memory_space<vmem>>, vector<1x1x1x8x16xf32>,
    %320 = vector.extract_strided_slice %235 {offsets = [0, 24, 0], sizes = [8, 1, 16], strides = [1, 1, 1]} : vector<8x56x16xf32> to vector<8x1x16xf32>
    %321 = vector.shape_cast %320 : vector<8x1x16xf32> to vector<8x16xf32>
    %cst_203 = arith.constant 2.500000e-01 : f32
    %322 = vector.broadcast %cst_203 : f32 to vector<8x16xf32>
    %323 = arith.mulf %321, %322 : vector<8x16xf32>
    %c0_204 = arith.constant 0 : index
    %c0_205 = arith.constant 0 : index
    %c12_206 = arith.constant 12 : index
    %c8_207 = arith.constant 8 : index
    %c0_208 = arith.constant 0 : index
    %324 = vector.load %arg5[%c0_204, %c0_205, %c12_206, %c8_207, %c0_208] : memref<1x1x21x16x16xf32, #tpu.memory_space<vmem>>, vector<1x1x1x8x16xf32>
    %325 = vector.shape_cast %324 : vector<1x1x1x8x16xf32> to vector<8x16xf32>
    %326 = vector.shape_cast %323 : vector<8x16xf32> to vector<1x1x1x8x16xf32>
    tpu.vector_store %arg5[%c0_204, %c0_205, %c12_206, %c8_207, %c0_208], %326 {strides = array<i32>} : memref<1x1x21x16x16xf32, #tpu.memory_space<vmem>>, vector<1x1x1x8x16xf32>,
    %327 = vector.extract_strided_slice %235 {offsets = [0, 26, 0], sizes = [8, 1, 16], strides = [1, 1, 1]} : vector<8x56x16xf32> to vector<8x1x16xf32>
    %328 = vector.shape_cast %327 : vector<8x1x16xf32> to vector<8x16xf32>
    %cst_209 = arith.constant 2.500000e-01 : f32
    %329 = vector.broadcast %cst_209 : f32 to vector<8x16xf32>
    %330 = arith.mulf %328, %329 : vector<8x16xf32>
    %c0_210 = arith.constant 0 : index
    %c0_211 = arith.constant 0 : index
    %c13_212 = arith.constant 13 : index
    %c8_213 = arith.constant 8 : index
    %c0_214 = arith.constant 0 : index
    %331 = vector.load %arg5[%c0_210, %c0_211, %c13_212, %c8_213, %c0_214] : memref<1x1x21x16x16xf32, #tpu.memory_space<vmem>>, vector<1x1x1x8x16xf32>
    %332 = vector.shape_cast %331 : vector<1x1x1x8x16xf32> to vector<8x16xf32>
    %333 = vector.shape_cast %330 : vector<8x16xf32> to vector<1x1x1x8x16xf32>
    tpu.vector_store %arg5[%c0_210, %c0_211, %c13_212, %c8_213, %c0_214], %333 {strides = array<i32>} : memref<1x1x21x16x16xf32, #tpu.memory_space<vmem>>, vector<1x1x1x8x16xf32>,
    %334 = vector.extract_strided_slice %235 {offsets = [0, 28, 0], sizes = [8, 1, 16], strides = [1, 1, 1]} : vector<8x56x16xf32> to vector<8x1x16xf32>
    %335 = vector.shape_cast %334 : vector<8x1x16xf32> to vector<8x16xf32>
    %cst_215 = arith.constant 2.500000e-01 : f32
    %336 = vector.broadcast %cst_215 : f32 to vector<8x16xf32>
    %337 = arith.mulf %335, %336 : vector<8x16xf32>
    %c0_216 = arith.constant 0 : index
    %c0_217 = arith.constant 0 : index
    %c14_218 = arith.constant 14 : index
    %c8_219 = arith.constant 8 : index
    %c0_220 = arith.constant 0 : index
    %338 = vector.load %arg5[%c0_216, %c0_217, %c14_218, %c8_219, %c0_220] : memref<1x1x21x16x16xf32, #tpu.memory_space<vmem>>, vector<1x1x1x8x16xf32>
    %339 = vector.shape_cast %338 : vector<1x1x1x8x16xf32> to vector<8x16xf32>
    %340 = vector.shape_cast %337 : vector<8x16xf32> to vector<1x1x1x8x16xf32>
    tpu.vector_store %arg5[%c0_216, %c0_217, %c14_218, %c8_219, %c0_220], %340 {strides = array<i32>} : memref<1x1x21x16x16xf32, #tpu.memory_space<vmem>>, vector<1x1x1x8x16xf32>,
    %341 = vector.extract_strided_slice %235 {offsets = [0, 30, 0], sizes = [8, 1, 16], strides = [1, 1, 1]} : vector<8x56x16xf32> to vector<8x1x16xf32>
    %342 = vector.shape_cast %341 : vector<8x1x16xf32> to vector<8x16xf32>
    %cst_221 = arith.constant 2.500000e-01 : f32
    %343 = vector.broadcast %cst_221 : f32 to vector<8x16xf32>
    %344 = arith.mulf %342, %343 : vector<8x16xf32>
    %c0_222 = arith.constant 0 : index
    %c0_223 = arith.constant 0 : index
    %c15_224 = arith.constant 15 : index
    %c8_225 = arith.constant 8 : index
    %c0_226 = arith.constant 0 : index
    %345 = vector.load %arg5[%c0_222, %c0_223, %c15_224, %c8_225, %c0_226] : memref<1x1x21x16x16xf32, #tpu.memory_space<vmem>>, vector<1x1x1x8x16xf32>
    %346 = vector.shape_cast %345 : vector<1x1x1x8x16xf32> to vector<8x16xf32>
    %347 = vector.shape_cast %344 : vector<8x16xf32> to vector<1x1x1x8x16xf32>
    tpu.vector_store %arg5[%c0_222, %c0_223, %c15_224, %c8_225, %c0_226], %347 {strides = array<i32>} : memref<1x1x21x16x16xf32, #tpu.memory_space<vmem>>, vector<1x1x1x8x16xf32>,
    %348 = vector.extract_strided_slice %235 {offsets = [0, 32, 0], sizes = [8, 1, 16], strides = [1, 1, 1]} : vector<8x56x16xf32> to vector<8x1x16xf32>
    %349 = vector.shape_cast %348 : vector<8x1x16xf32> to vector<8x16xf32>
    %cst_227 = arith.constant 2.500000e-01 : f32
    %350 = vector.broadcast %cst_227 : f32 to vector<8x16xf32>
    %351 = arith.mulf %349, %350 : vector<8x16xf32>
    %c0_228 = arith.constant 0 : index
    %c0_229 = arith.constant 0 : index
    %c16_230 = arith.constant 16 : index
    %c8_231 = arith.constant 8 : index
    %c0_232 = arith.constant 0 : index
    %352 = vector.load %arg5[%c0_228, %c0_229, %c16_230, %c8_231, %c0_232] : memref<1x1x21x16x16xf32, #tpu.memory_space<vmem>>, vector<1x1x1x8x16xf32>
    %353 = vector.shape_cast %352 : vector<1x1x1x8x16xf32> to vector<8x16xf32>
    %354 = vector.shape_cast %351 : vector<8x16xf32> to vector<1x1x1x8x16xf32>
    tpu.vector_store %arg5[%c0_228, %c0_229, %c16_230, %c8_231, %c0_232], %354 {strides = array<i32>} : memref<1x1x21x16x16xf32, #tpu.memory_space<vmem>>, vector<1x1x1x8x16xf32>,
    %355 = vector.extract_strided_slice %235 {offsets = [0, 34, 0], sizes = [8, 1, 16], strides = [1, 1, 1]} : vector<8x56x16xf32> to vector<8x1x16xf32>
    %356 = vector.shape_cast %355 : vector<8x1x16xf32> to vector<8x16xf32>
    %cst_233 = arith.constant 2.500000e-01 : f32
    %357 = vector.broadcast %cst_233 : f32 to vector<8x16xf32>
    %358 = arith.mulf %356, %357 : vector<8x16xf32>
    %c0_234 = arith.constant 0 : index
    %c0_235 = arith.constant 0 : index
    %c17_236 = arith.constant 17 : index
    %c8_237 = arith.constant 8 : index
    %c0_238 = arith.constant 0 : index
    %359 = vector.load %arg5[%c0_234, %c0_235, %c17_236, %c8_237, %c0_238] : memref<1x1x21x16x16xf32, #tpu.memory_space<vmem>>, vector<1x1x1x8x16xf32>
    %360 = vector.shape_cast %359 : vector<1x1x1x8x16xf32> to vector<8x16xf32>
    %361 = vector.shape_cast %358 : vector<8x16xf32> to vector<1x1x1x8x16xf32>
    tpu.vector_store %arg5[%c0_234, %c0_235, %c17_236, %c8_237, %c0_238], %361 {strides = array<i32>} : memref<1x1x21x16x16xf32, #tpu.memory_space<vmem>>, vector<1x1x1x8x16xf32>,
    %362 = vector.extract_strided_slice %235 {offsets = [0, 36, 0], sizes = [8, 1, 16], strides = [1, 1, 1]} : vector<8x56x16xf32> to vector<8x1x16xf32>
    %363 = vector.shape_cast %362 : vector<8x1x16xf32> to vector<8x16xf32>
    %cst_239 = arith.constant 2.500000e-01 : f32
    %364 = vector.broadcast %cst_239 : f32 to vector<8x16xf32>
    %365 = arith.mulf %363, %364 : vector<8x16xf32>
    %c0_240 = arith.constant 0 : index
    %c0_241 = arith.constant 0 : index
    %c18_242 = arith.constant 18 : index
    %c8_243 = arith.constant 8 : index
    %c0_244 = arith.constant 0 : index
    %366 = vector.load %arg5[%c0_240, %c0_241, %c18_242, %c8_243, %c0_244] : memref<1x1x21x16x16xf32, #tpu.memory_space<vmem>>, vector<1x1x1x8x16xf32>
    %367 = vector.shape_cast %366 : vector<1x1x1x8x16xf32> to vector<8x16xf32>
    %368 = vector.shape_cast %365 : vector<8x16xf32> to vector<1x1x1x8x16xf32>
    tpu.vector_store %arg5[%c0_240, %c0_241, %c18_242, %c8_243, %c0_244], %368 {strides = array<i32>} : memref<1x1x21x16x16xf32, #tpu.memory_space<vmem>>, vector<1x1x1x8x16xf32>,
    %369 = vector.extract_strided_slice %235 {offsets = [0, 38, 0], sizes = [8, 1, 16], strides = [1, 1, 1]} : vector<8x56x16xf32> to vector<8x1x16xf32>
    %370 = vector.shape_cast %369 : vector<8x1x16xf32> to vector<8x16xf32>
    %cst_245 = arith.constant 2.500000e-01 : f32
    %371 = vector.broadcast %cst_245 : f32 to vector<8x16xf32>
    %372 = arith.mulf %370, %371 : vector<8x16xf32>
    %c0_246 = arith.constant 0 : index
    %c0_247 = arith.constant 0 : index
    %c19_248 = arith.constant 19 : index
    %c8_249 = arith.constant 8 : index
    %c0_250 = arith.constant 0 : index
    %373 = vector.load %arg5[%c0_246, %c0_247, %c19_248, %c8_249, %c0_250] : memref<1x1x21x16x16xf32, #tpu.memory_space<vmem>>, vector<1x1x1x8x16xf32>
    %374 = vector.shape_cast %373 : vector<1x1x1x8x16xf32> to vector<8x16xf32>
    %375 = vector.shape_cast %372 : vector<8x16xf32> to vector<1x1x1x8x16xf32>
    tpu.vector_store %arg5[%c0_246, %c0_247, %c19_248, %c8_249, %c0_250], %375 {strides = array<i32>} : memref<1x1x21x16x16xf32, #tpu.memory_space<vmem>>, vector<1x1x1x8x16xf32>,
    %376 = vector.extract_strided_slice %235 {offsets = [0, 40, 0], sizes = [8, 1, 16], strides = [1, 1, 1]} : vector<8x56x16xf32> to vector<8x1x16xf32>
    %377 = vector.shape_cast %376 : vector<8x1x16xf32> to vector<8x16xf32>
    %cst_251 = arith.constant 2.500000e-01 : f32
    %378 = vector.broadcast %cst_251 : f32 to vector<8x16xf32>
    %379 = arith.mulf %377, %378 : vector<8x16xf32>
    %c0_252 = arith.constant 0 : index
    %c0_253 = arith.constant 0 : index
    %c20_254 = arith.constant 20 : index
    %c8_255 = arith.constant 8 : index
    %c0_256 = arith.constant 0 : index
    %380 = vector.load %arg5[%c0_252, %c0_253, %c20_254, %c8_255, %c0_256] : memref<1x1x21x16x16xf32, #tpu.memory_space<vmem>>, vector<1x1x1x8x16xf32>
    %381 = vector.shape_cast %380 : vector<1x1x1x8x16xf32> to vector<8x16xf32>
    %382 = vector.shape_cast %379 : vector<8x16xf32> to vector<1x1x1x8x16xf32>
    tpu.vector_store %arg5[%c0_252, %c0_253, %c20_254, %c8_255, %c0_256], %382 {strides = array<i32>} : memref<1x1x21x16x16xf32, #tpu.memory_space<vmem>>, vector<1x1x1x8x16xf32>,
    return
  }
  func.func @transform_0(%arg0: i32, %arg1: i32, %arg2: i32) -> (i32, i32, i32, i32) {
    %c0_i32 = arith.constant 0 : i32
    %c0_i32_0 = arith.constant 0 : i32
    %c0_i32_1 = arith.constant 0 : i32
    return %arg0, %c0_i32, %c0_i32_0, %arg2 : i32, i32, i32, i32
  }
  func.func @transform_1(%arg0: i32, %arg1: i32, %arg2: i32) -> (i32, i32, i32, i32) {
    %c0_i32 = arith.constant 0 : i32
    %c0_i32_0 = arith.constant 0 : i32
    %c0_i32_1 = arith.constant 0 : i32
    return %arg0, %c0_i32, %c0_i32_0, %arg2 : i32, i32, i32, i32
  }
  func.func @transform_2(%arg0: i32, %arg1: i32, %arg2: i32) -> (i32, i32, i32, i32, i32) {
    %c0_i32 = arith.constant 0 : i32
    %c0_i32_0 = arith.constant 0 : i32
    %c0_i32_1 = arith.constant 0 : i32
    %c0_i32_2 = arith.constant 0 : i32
    return %arg0, %arg1, %c0_i32, %c0_i32_0, %c0_i32_1 : i32, i32, i32, i32, i32
  }
}

</mosaic_0001>

<llo_original>
// kernel: tpu_custom_call.1
$region0: #{tpu_custom_call.1}
  #allocation0 [shape = 'u32[]', space=smem, size = 0x4, offset = 0x4, fixed_abs, tag = 'smem constant byte address 0x4 - core index']
  #allocation1 [shape = 'u32[72,128]{1,0:T(1,128)}', space=vmem, size = 0x9000, scoped, tag = 'internal scratch']
  #allocation2 [shape = 'f32[21,16,16]{2,1,0:T(8,128)}', space=vmem, size = 0x2a000, scoped, tag = 'scratch operand']
  %s0 = inlined_call_operand.vmem [shape: f32[2,16,16,4], index: 0, kind: input, shape index: {}]
  %s1 = inlined_call_operand.vmem [shape: f32[2,56,56,4], index: 1, kind: input, shape index: {}]
  %s2 = inlined_call_operand.vmem [shape: f32[2,21,21,16,16], index: 2, kind: output, shape index: {}]
  %s3 = sld [smem:[#allocation0]]
  $region41: #{tpu_custom_call.1} parent=0
    _
  %s5 = ssub.s32 1, %s3
  %s6 = scalar_select 0, %s5, %s3
  loop: start=0, step=1, limit=44
  $region2: #{tpu_custom_call.1} parent=0 // loop_pre_header
    _
  $region3: #{tpu_custom_call.1} parent=0 // loop_header
    %s8 = sphi 0, %s12
    %p9 = scmp.ge.s32.totalorder %s8, 44
    %s15 = sphi 0, %s34
    %s16 = sphi 0, %s30
    %s17 = sphi 0, %s26
    %s18 = sphi 0, %s15
    %s19 = sphi 0, %s16
    %s20 = sphi 0, %s17
    %s21 = sphi 0, %s18
    %s22 = sphi 0, %s19
    %s23 = sphi 0, %s20
    %s39 = sphi 0, %s41
    %s42 = sphi 0, %s39
    %s43 = sphi 0, %s42
    %s59 = sphi 0, %s43
    %s67 = sphi 0, %s69
    %s70 = sphi 0, %s67
    %s71 = sphi 0, %s70
    %s87 = sphi 0, %s71
    %s95 = sphi 0, %s97
    %s98 = sphi 0, %s95
    %s99 = sphi 0, %s98
    %s115 = sphi 0, %s99
  $region4: #{tpu_custom_call.1} parent=0 // loop_header_branch
    %11 = sbr.rel (%p9) target = $region8
  $region5: #{tpu_custom_call.1} parent=0 // loop_body
    %s13 = ssub.s32 %s8, 1
    %s14 = ssub.s32 %s8, 2
    %s24 = sadd.s32 1, %s17
    %p25 = scmp.ge.s32.totalorder %s24, 1
    %s26 = scalar_select %p25, 0, %s24
    %s27 = sadd.s32 1, %s16
    %s28 = scalar_select %p25, %s27, %s16
    %p29 = scmp.ge.s32.totalorder %s28, 21
    %s30 = scalar_select %p29, 0, %s28
    %s31 = sadd.s32 1, %s15
    %s32 = scalar_select %p29, %s31, %s15
    %p33 = scmp.ge.s32.totalorder %s32, 2
    %s34 = scalar_select %p33, 0, %s32
    %s35 = ssub.s32 %s15, %s34
    %s36 = ssub.s32 %s17, %s26
    %s37 = sor.u32 %s35, %s36
    %p38 = scmp.eq.s32.totalorder %s37, 0
    %s40 = sadd.s32 %s39, 1
    %s41 = scalar_select %p38, %s39, %s40
    %p44 = pneg %p38
    %p45 = scmp.eq.s32.totalorder %s8, 41
    %p46 = por %p44, %p45
    %p47 = scmp.ne.s32.totalorder %s39, %s42
    %p48 = scmp.eq.s32.totalorder %s8, 0
    %p49 = por %p47, %p48
    %p50 = scmp.ne.s32.totalorder %s39, %s42
    %p51 = scmp.eq.s32.totalorder %s13, 41
    %p52 = por %p50, %p51
    %p53 = scmp.ne.s32.totalorder %s42, %s43
    %p54 = scmp.eq.s32.totalorder %s13, 0
    %p55 = por %p53, %p54
    %p56 = scmp.ne.s32.totalorder %s42, %s43
    %p57 = scmp.eq.s32.totalorder %s14, 41
    %p58 = por %p56, %p57
    %p60 = scmp.ne.s32.totalorder %s43, %s59
    %p61 = scmp.eq.s32.totalorder %s14, 0
    %p62 = por %p60, %p61
    %s63 = ssub.s32 %s15, %s34
    %s64 = ssub.s32 %s17, %s26
    %s65 = sor.u32 %s63, %s64
    %p66 = scmp.eq.s32.totalorder %s65, 0
    %s68 = sadd.s32 %s67, 1
    %s69 = scalar_select %p66, %s67, %s68
    %p72 = pneg %p66
    %p73 = scmp.eq.s32.totalorder %s8, 41
    %p74 = por %p72, %p73
    %p75 = scmp.ne.s32.totalorder %s67, %s70
    %p76 = scmp.eq.s32.totalorder %s8, 0
    %p77 = por %p75, %p76
    %p78 = scmp.ne.s32.totalorder %s67, %s70
    %p79 = scmp.eq.s32.totalorder %s13, 41
    %p80 = por %p78, %p79
    %p81 = scmp.ne.s32.totalorder %s70, %s71
    %p82 = scmp.eq.s32.totalorder %s13, 0
    %p83 = por %p81, %p82
    %p84 = scmp.ne.s32.totalorder %s70, %s71
    %p85 = scmp.eq.s32.totalorder %s14, 41
    %p86 = por %p84, %p85
    %p88 = scmp.ne.s32.totalorder %s71, %s87
    %p89 = scmp.eq.s32.totalorder %s14, 0
    %p90 = por %p88, %p89
    %s91 = ssub.s32 %s15, %s34
    %s92 = ssub.s32 %s16, %s30
    %s93 = sor.u32 %s91, %s92
    %p94 = scmp.eq.s32.totalorder %s93, 0
    %s96 = sadd.s32 %s95, 1
    %s97 = scalar_select %p94, %s95, %s96
    %p100 = pneg %p94
    %p101 = scmp.eq.s32.totalorder %s8, 41
    %p102 = por %p100, %p101
    %p103 = scmp.ne.s32.totalorder %s95, %s98
    %p104 = scmp.eq.s32.totalorder %s8, 0
    %p105 = por %p103, %p104
    %p106 = scmp.ne.s32.totalorder %s95, %s98
    %p107 = scmp.eq.s32.totalorder %s13, 41
    %p108 = por %p106, %p107
    %p109 = scmp.ne.s32.totalorder %s98, %s99
    %p110 = scmp.eq.s32.totalorder %s13, 0
    %p111 = por %p109, %p110
    %p112 = scmp.ne.s32.totalorder %s98, %s99
    %p113 = scmp.eq.s32.totalorder %s14, 41
    %p114 = por %p112, %p113
    %p116 = scmp.ne.s32.totalorder %s99, %s115
    %p117 = scmp.eq.s32.totalorder %s14, 0
    %p118 = por %p116, %p117
    %p119 = scmp.le.s32.totalorder 1, %s8
    %p120 = scmp.lt.s32.totalorder %s8, 43
    %p121 = pnand %p119, %p120
    %p122 = pneg %p121
    // Predicated region
    $region9: #{tpu_custom_call.1} parent=5 // pred_check
      _
    $region10: #{tpu_custom_call.1} parent=5 // pred_check_branch
      %124 = sbr.rel (%p121) target = $region12
    $region11: #{tpu_custom_call.1} parent=5 // pred_region
      %s125 = ssub.s32 %s8, 1
    $region12: #{tpu_custom_call.1} parent=5 // pred_fallthru
      _
    %p126 = scmp.lt.s32.totalorder %s8, 42
    // Predicated region
    $region13: #{tpu_custom_call.1} parent=5 // pred_check
      %p127 = pneg %p126
    $region14: #{tpu_custom_call.1} parent=5 // pred_check_branch
      %129 = sbr.rel (%p127) target = $region16
    $region15: #{tpu_custom_call.1} parent=5 // pred_region
      // Predicated region
      $region17: #{tpu_custom_call.1} parent=15 // pred_check
        %p130 = pneg %p49
      $region18: #{tpu_custom_call.1} parent=15 // pred_check_branch
        %132 = sbr.rel (%p130) target = $region20
      $region19: #{tpu_custom_call.1} parent=15 // pred_region
        %p133 = scmp.lt.s32.totalorder %s15, 1
        %s134 = scalar_select %p133, %s15, 1
        %p135 = scmp.lt.s32.totalorder %s17, 0
        %s136 = scalar_select %p135, %s17, 0
        %s137 = smul.addr %s134, 32
        %s138 = sadd.s32 %s136, %s137
        %s139 = smul.addr %s138, 8
        %s140 = scalar_lea.vmem %s0, %s139
      $region20: #{tpu_custom_call.1} parent=15 // pred_fallthru
        _
      // Predicated region
      $region21: #{tpu_custom_call.1} parent=15 // pred_check
        %p141 = pneg %p77
      $region22: #{tpu_custom_call.1} parent=15 // pred_check_branch
        %143 = sbr.rel (%p141) target = $region24
      $region23: #{tpu_custom_call.1} parent=15 // pred_region
        %p144 = scmp.lt.s32.totalorder %s15, 1
        %s145 = scalar_select %p144, %s15, 1
        %p146 = scmp.lt.s32.totalorder %s17, 0
        %s147 = scalar_select %p146, %s17, 0
        %s148 = smul.addr %s145, 392
        %s149 = sadd.s32 %s147, %s148
        %s150 = smul.addr %s149, 8
        %s151 = scalar_lea.vmem %s1, %s150
      $region24: #{tpu_custom_call.1} parent=15 // pred_fallthru
        _
    $region16: #{tpu_custom_call.1} parent=5 // pred_fallthru
      _
    %p152 = scmp.le.s32.totalorder 1, %s8
    %p153 = scmp.lt.s32.totalorder %s8, 43
    %p154 = pnand %p152, %p153
    %p155 = pneg %p154
    // Predicated region
    $region25: #{tpu_custom_call.1} parent=5 // pred_check
      _
    $region26: #{tpu_custom_call.1} parent=5 // pred_check_branch
      %157 = sbr.rel (%p154) target = $region28
    $region27: #{tpu_custom_call.1} parent=5 // pred_region
      %s158 = ssub.s32 %s8, 1
      %p159 = scmp.lt.s32.totalorder %s18, 1
      %s160 = scalar_select %p159, %s18, 1
      %p161 = scmp.lt.s32.totalorder %s20, 0
      %s162 = scalar_select %p161, %s20, 0
      %s163 = smul.addr %s160, 32
      %s164 = sadd.s32 %s162, %s163
      %s165 = smul.addr %s164, 8
      %s166 = scalar_lea.vmem %s0, %s165
      %p167 = pneg %p55
      %p168 = pneg %p52
      %p169 = scmp.lt.s32.totalorder %s18, 1
      %s170 = scalar_select %p169, %s18, 1
      %p171 = scmp.lt.s32.totalorder %s20, 0
      %s172 = scalar_select %p171, %s20, 0
      %s173 = smul.addr %s170, 392
      %s174 = sadd.s32 %s172, %s173
      %s175 = smul.addr %s174, 8
      %s176 = scalar_lea.vmem %s1, %s175
      %p177 = pneg %p83
      %p178 = pneg %p80
      %p179 = pneg %p111
      %p180 = pneg %p108
      %p181 = scmp.lt.s32.totalorder %s18, 1
      %s182 = scalar_select %p181, %s18, 1
      %p183 = scmp.lt.s32.totalorder %s19, 20
      %s184 = scalar_select %p183, %s19, 20
      %s185 = smul.addr %s184, 42
      %s186 = smul.addr %s182, 882
      %s187 = sadd.s32 %s185, %s186
      %s188 = smul.addr %s187, 8
      %s189 = scalar_lea.vmem %s2, %s188
      %p190 = scmp.lt.s32.totalorder %s18, 1
      %s191 = scalar_select %p190, %s18, 1
      %p192 = scmp.lt.s32.totalorder %s20, 0
      %s193 = scalar_select %p192, %s20, 0
      %s194 = smul.addr %s191, 32
      %s195 = sadd.s32 %s193, %s194
      %s196 = smul.addr %s195, 8
      %s197 = scalar_lea.vmem %s0, %s196
      %p198 = scmp.lt.s32.totalorder %s18, 1
      %s199 = scalar_select %p198, %s18, 1
      %p200 = scmp.lt.s32.totalorder %s20, 0
      %s201 = scalar_select %p200, %s20, 0
      %s202 = smul.addr %s199, 392
      %s203 = sadd.s32 %s201, %s202
      %s204 = smul.addr %s203, 8
      %s205 = scalar_lea.vmem %s1, %s204
      %p206 = scmp.lt.s32.totalorder %s18, 1
      %s207 = scalar_select %p206, %s18, 1
      %p208 = scmp.lt.s32.totalorder %s19, 20
      %s209 = scalar_select %p208, %s19, 20
      %s210 = smul.addr %s209, 42
      %s211 = smul.addr %s207, 882
      %s212 = sadd.s32 %s210, %s211
      %s213 = smul.addr %s212, 8
      %s214 = scalar_lea.vmem %s2, %s213
      %s215 = smul.u32 %s19, 2
      %v216 = vlaneseq
      %v217 = vand.u32 %v216, 127
      %v218 = vand.u32 %v217, 1
      %vm219 = vcmp.eq.s32.totalorder %v218, 1
      %v220 = vshra.s32 %v217, 1
      %v221 = vand.u32 %v220, 1
      %vm222 = vcmp.eq.s32.totalorder %v221, 1
      %v223 = vshra.s32 %v217, 2
      %v224 = vand.u32 %v223, 1
      %vm225 = vcmp.eq.s32.totalorder %v224, 1
      %v226 = vshra.s32 %v217, 3
      %v227 = vand.u32 %v226, 1
      %vm228 = vcmp.eq.s32.totalorder %v227, 1
      %v229 = vld [vmem:[%s197] sm:$0xff]
      %v230 = vld [vmem:[%s197 + $0x8] sm:$0xff]
      %v231 = vld [vmem:[%s197 + $0x10] sm:$0xff]
      %v232 = vld [vmem:[%s197 + $0x18] sm:$0xff]
      %v233 = vld [vmem:[%s197 + $0x20] sm:$0xff]
      %v234 = vld [vmem:[%s197 + $0x28] sm:$0xff]
      %v235 = vld [vmem:[%s197 + $0x30] sm:$0xff]
      %v236 = vld [vmem:[%s197 + $0x38] sm:$0xff]
      %v237 = vld [vmem:[%s197 + $0x40] sm:$0xff]
      %v238 = vld [vmem:[%s197 + $0x48] sm:$0xff]
      %v239 = vld [vmem:[%s197 + $0x50] sm:$0xff]
      %v240 = vld [vmem:[%s197 + $0x58] sm:$0xff]
      %v241 = vld [vmem:[%s197 + $0x60] sm:$0xff]
      %v242 = vld [vmem:[%s197 + $0x68] sm:$0xff]
      %v243 = vld [vmem:[%s197 + $0x70] sm:$0xff]
      %v244 = vld [vmem:[%s197 + $0x78] sm:$0xff]
      %s245 = smul.u32 %s215, 56
      %s246 = scalar_lea.vmem %s205, %s245
      %v247 = vld [vmem:[%s246] sm:$0xff]
      %v248 = vld [vmem:[%s246 + $0x8] sm:$0xff]
      %v249 = vld [vmem:[%s246 + $0x10] sm:$0xff]
      %v250 = vld [vmem:[%s246 + $0x18] sm:$0xff]
      %v251 = vld [vmem:[%s246 + $0x20] sm:$0xff]
      %v252 = vld [vmem:[%s246 + $0x28] sm:$0xff]
      %v253 = vld [vmem:[%s246 + $0x30] sm:$0xff]
      %v254 = vld [vmem:[%s246 + $0x38] sm:$0xff]
      %v255 = vld [vmem:[%s246 + $0x40] sm:$0xff]
      %v256 = vld [vmem:[%s246 + $0x48] sm:$0xff]
      %v257 = vld [vmem:[%s246 + $0x50] sm:$0xff]
      %v258 = vld [vmem:[%s246 + $0x58] sm:$0xff]
      %v259 = vld [vmem:[%s246 + $0x60] sm:$0xff]
      %v260 = vld [vmem:[%s246 + $0x68] sm:$0xff]
      %v261 = vld [vmem:[%s246 + $0x70] sm:$0xff]
      %v262 = vld [vmem:[%s246 + $0x78] sm:$0xff]
      %v263 = vld [vmem:[%s246 + $0x80] sm:$0xff]
      %v264 = vld [vmem:[%s246 + $0x88] sm:$0xff]
      %v265 = vld [vmem:[%s246 + $0x90] sm:$0xff]
      %v266 = vld [vmem:[%s246 + $0x98] sm:$0xff]
      %v267 = vld [vmem:[%s246 + $0xa0] sm:$0xff]
      %v268 = vld [vmem:[%s246 + $0xa8] sm:$0xff]
      %v269 = vld [vmem:[%s246 + $0xb0] sm:$0xff]
      %v270 = vld [vmem:[%s246 + $0xb8] sm:$0xff]
      %v271 = vld [vmem:[%s246 + $0xc0] sm:$0xff]
      %v272 = vld [vmem:[%s246 + $0xc8] sm:$0xff]
      %v273 = vld [vmem:[%s246 + $0xd0] sm:$0xff]
      %v274 = vld [vmem:[%s246 + $0xd8] sm:$0xff]
      %v275 = vld [vmem:[%s246 + $0xe0] sm:$0xff]
      %v276 = vld [vmem:[%s246 + $0xe8] sm:$0xff]
      %v277 = vld [vmem:[%s246 + $0xf0] sm:$0xff]
      %v278 = vld [vmem:[%s246 + $0xf8] sm:$0xff]
      %v279 = vld [vmem:[%s246 + $0x100] sm:$0xff]
      %v280 = vld [vmem:[%s246 + $0x108] sm:$0xff]
      %v281 = vld [vmem:[%s246 + $0x110] sm:$0xff]
      %v282 = vld [vmem:[%s246 + $0x118] sm:$0xff]
      %v283 = vld [vmem:[%s246 + $0x120] sm:$0xff]
      %v284 = vld [vmem:[%s246 + $0x128] sm:$0xff]
      %v285 = vld [vmem:[%s246 + $0x130] sm:$0xff]
      %v286 = vld [vmem:[%s246 + $0x138] sm:$0xff]
      %v287 = vld [vmem:[%s246 + $0x140] sm:$0xff]
      %v288 = vld [vmem:[%s246 + $0x148] sm:$0xff]
      %v289 = vld [vmem:[%s246 + $0x150] sm:$0xff]
      %v290 = vld [vmem:[%s246 + $0x158] sm:$0xff]
      %v291 = vld [vmem:[%s246 + $0x160] sm:$0xff]
      %v292 = vld [vmem:[%s246 + $0x168] sm:$0xff]
      %v293 = vld [vmem:[%s246 + $0x170] sm:$0xff]
      %v294 = vld [vmem:[%s246 + $0x178] sm:$0xff]
      %v295 = vld [vmem:[%s246 + $0x180] sm:$0xff]
      %v296 = vld [vmem:[%s246 + $0x188] sm:$0xff]
      %v297 = vld [vmem:[%s246 + $0x190] sm:$0xff]
      %v298 = vld [vmem:[%s246 + $0x198] sm:$0xff]
      %v299 = vld [vmem:[%s246 + $0x1a0] sm:$0xff]
      %v300 = vld [vmem:[%s246 + $0x1a8] sm:$0xff]
      %v301 = vld [vmem:[%s246 + $0x1b0] sm:$0xff]
      %v302 = vld [vmem:[%s246 + $0x1b8] sm:$0xff]
      %vm303 = vcmask 31744
      %v305 = vsel %vm303, %v247, 0
      %v308 = vsel %vm303, %v248, 0
      %v311 = vsel %vm303, %v249, 0
      %v314 = vsel %vm303, %v250, 0
      %v317 = vsel %vm303, %v251, 0
      %v320 = vsel %vm303, %v252, 0
      %v323 = vsel %vm303, %v253, 0
      %v326 = vsel %vm303, %v229, 0
      %v329 = vsel %vm303, %v230, 0
      %331 = vmatpush.xpose.msra.mxu0 0.0
      %332 = vmatpush.xpose.msra.mxu0 0.0
      %333 = vmatpush.xpose.msra.mxu0 0.0
      %334 = vmatpush.xpose.msra.mxu0 0.0
      %335 = vmatpush.xpose.msra.mxu0 0.0
      %336 = vmatpush.xpose.msra.mxu0 0.0
      %337 = vmatpush.xpose.msra.mxu0 0.0
      %338 = vmatpush.xpose.msra.mxu0 0.0
      %339 = vmatpush.xpose.msra.mxu0 0.0
      %340 = vmatpush.xpose.msra.mxu0 0.0
      %341 = vmatpush.xpose.msra.mxu0 0.0
      %342 = vmatpush.xpose.msra.mxu0 0.0
      %343 = vmatpush.xpose.msra.mxu0 0.0
      %344 = vmatpush.xpose.msra.mxu0 0.0
      %345 = vmatpush.xpose.msra.mxu0 %v329
      %346 = vmatpush.xpose.msra.mxu0 %v326
      %347 = vmatmul.f32.gmra.mxu0 %v305
      %v348 = vpop.f32.mrf.mxu0
      %v349 = vadd.f32 0.0, %v348
      %350 = vmatmul.f32.gmra.mxu0 %v308
      %v351 = vpop.f32.mrf.mxu0
      %v352 = vadd.f32 0.0, %v351
      %353 = vmatmul.f32.gmra.mxu0 %v311
      %v354 = vpop.f32.mrf.mxu0
      %v355 = vadd.f32 0.0, %v354
      %356 = vmatmul.f32.gmra.mxu0 %v314
      %v357 = vpop.f32.mrf.mxu0
      %v358 = vadd.f32 0.0, %v357
      %359 = vmatmul.f32.gmra.mxu0 %v317
      %v360 = vpop.f32.mrf.mxu0
      %v361 = vadd.f32 0.0, %v360
      %362 = vmatmul.f32.gmra.mxu0 %v320
      %v363 = vpop.f32.mrf.mxu0
      %v364 = vadd.f32 0.0, %v363
      %365 = vmatmul.f32.gmra.mxu0 %v323
      %v366 = vpop.f32.mrf.mxu0
      %v367 = vadd.f32 0.0, %v366
      %368 = vdwg.mxu0
      %v370 = vsel %vm303, %v254, 0
      %v373 = vsel %vm303, %v255, 0
      %v376 = vsel %vm303, %v256, 0
      %v379 = vsel %vm303, %v257, 0
      %v382 = vsel %vm303, %v258, 0
      %v385 = vsel %vm303, %v259, 0
      %v388 = vsel %vm303, %v260, 0
      %v391 = vsel %vm303, %v231, 0
      %v394 = vsel %vm303, %v232, 0
      %396 = vmatpush.xpose.msra.mxu0 0.0
      %397 = vmatpush.xpose.msra.mxu0 0.0
      %398 = vmatpush.xpose.msra.mxu0 0.0
      %399 = vmatpush.xpose.msra.mxu0 0.0
      %400 = vmatpush.xpose.msra.mxu0 0.0
      %401 = vmatpush.xpose.msra.mxu0 0.0
      %402 = vmatpush.xpose.msra.mxu0 0.0
      %403 = vmatpush.xpose.msra.mxu0 0.0
      %404 = vmatpush.xpose.msra.mxu0 0.0
      %405 = vmatpush.xpose.msra.mxu0 0.0
      %406 = vmatpush.xpose.msra.mxu0 0.0
      %407 = vmatpush.xpose.msra.mxu0 0.0
      %408 = vmatpush.xpose.msra.mxu0 0.0
      %409 = vmatpush.xpose.msra.mxu0 0.0
      %410 = vmatpush.xpose.msra.mxu0 %v394
      %411 = vmatpush.xpose.msra.mxu0 %v391
      %412 = vmatmul.f32.gmra.mxu0 %v370
      %v413 = vpop.f32.mrf.mxu0
      %v414 = vadd.f32 0.0, %v413
      %415 = vmatmul.f32.gmra.mxu0 %v373
      %v416 = vpop.f32.mrf.mxu0
      %v417 = vadd.f32 0.0, %v416
      %418 = vmatmul.f32.gmra.mxu0 %v376
      %v419 = vpop.f32.mrf.mxu0
      %v420 = vadd.f32 0.0, %v419
      %421 = vmatmul.f32.gmra.mxu0 %v379
      %v422 = vpop.f32.mrf.mxu0
      %v423 = vadd.f32 0.0, %v422
      %424 = vmatmul.f32.gmra.mxu0 %v382
      %v425 = vpop.f32.mrf.mxu0
      %v426 = vadd.f32 0.0, %v425
      %427 = vmatmul.f32.gmra.mxu0 %v385
      %v428 = vpop.f32.mrf.mxu0
      %v429 = vadd.f32 0.0, %v428
      %430 = vmatmul.f32.gmra.mxu0 %v388
      %v431 = vpop.f32.mrf.mxu0
      %v432 = vadd.f32 0.0, %v431
      %433 = vdwg.mxu0
      %v435 = vsel %vm303, %v261, 0
      %v438 = vsel %vm303, %v262, 0
      %v441 = vsel %vm303, %v263, 0
      %v444 = vsel %vm303, %v264, 0
      %v447 = vsel %vm303, %v265, 0
      %v450 = vsel %vm303, %v266, 0
      %v453 = vsel %vm303, %v267, 0
      %v456 = vsel %vm303, %v233, 0
      %v459 = vsel %vm303, %v234, 0
      %461 = vmatpush.xpose.msra.mxu0 0.0
      %462 = vmatpush.xpose.msra.mxu0 0.0
      %463 = vmatpush.xpose.msra.mxu0 0.0
      %464 = vmatpush.xpose.msra.mxu0 0.0
      %465 = vmatpush.xpose.msra.mxu0 0.0
      %466 = vmatpush.xpose.msra.mxu0 0.0
      %467 = vmatpush.xpose.msra.mxu0 0.0
      %468 = vmatpush.xpose.msra.mxu0 0.0
      %469 = vmatpush.xpose.msra.mxu0 0.0
      %470 = vmatpush.xpose.msra.mxu0 0.0
      %471 = vmatpush.xpose.msra.mxu0 0.0
      %472 = vmatpush.xpose.msra.mxu0 0.0
      %473 = vmatpush.xpose.msra.mxu0 0.0
      %474 = vmatpush.xpose.msra.mxu0 0.0
      %475 = vmatpush.xpose.msra.mxu0 %v459
      %476 = vmatpush.xpose.msra.mxu0 %v456
      %477 = vmatmul.f32.gmra.mxu0 %v435
      %v478 = vpop.f32.mrf.mxu0
      %v479 = vadd.f32 0.0, %v478
      %480 = vmatmul.f32.gmra.mxu0 %v438
      %v481 = vpop.f32.mrf.mxu0
      %v482 = vadd.f32 0.0, %v481
      %483 = vmatmul.f32.gmra.mxu0 %v441
      %v484 = vpop.f32.mrf.mxu0
      %v485 = vadd.f32 0.0, %v484
      %486 = vmatmul.f32.gmra.mxu0 %v444
      %v487 = vpop.f32.mrf.mxu0
      %v488 = vadd.f32 0.0, %v487
      %489 = vmatmul.f32.gmra.mxu0 %v447
      %v490 = vpop.f32.mrf.mxu0
      %v491 = vadd.f32 0.0, %v490
      %492 = vmatmul.f32.gmra.mxu0 %v450
      %v493 = vpop.f32.mrf.mxu0
      %v494 = vadd.f32 0.0, %v493
      %495 = vmatmul.f32.gmra.mxu0 %v453
      %v496 = vpop.f32.mrf.mxu0
      %v497 = vadd.f32 0.0, %v496
      %498 = vdwg.mxu0
      %v500 = vsel %vm303, %v268, 0
      %v503 = vsel %vm303, %v269, 0
      %v506 = vsel %vm303, %v270, 0
      %v509 = vsel %vm303, %v271, 0
      %v512 = vsel %vm303, %v272, 0
      %v515 = vsel %vm303, %v273, 0
      %v518 = vsel %vm303, %v274, 0
      %v521 = vsel %vm303, %v235, 0
      %v524 = vsel %vm303, %v236, 0
      %526 = vmatpush.xpose.msra.mxu0 0.0
      %527 = vmatpush.xpose.msra.mxu0 0.0
      %528 = vmatpush.xpose.msra.mxu0 0.0
      %529 = vmatpush.xpose.msra.mxu0 0.0
      %530 = vmatpush.xpose.msra.mxu0 0.0
      %531 = vmatpush.xpose.msra.mxu0 0.0
      %532 = vmatpush.xpose.msra.mxu0 0.0
      %533 = vmatpush.xpose.msra.mxu0 0.0
      %534 = vmatpush.xpose.msra.mxu0 0.0
      %535 = vmatpush.xpose.msra.mxu0 0.0
      %536 = vmatpush.xpose.msra.mxu0 0.0
      %537 = vmatpush.xpose.msra.mxu0 0.0
      %538 = vmatpush.xpose.msra.mxu0 0.0
      %539 = vmatpush.xpose.msra.mxu0 0.0
      %540 = vmatpush.xpose.msra.mxu0 %v524
      %541 = vmatpush.xpose.msra.mxu0 %v521
      %542 = vmatmul.f32.gmra.mxu0 %v500
      %v543 = vpop.f32.mrf.mxu0
      %v544 = vadd.f32 0.0, %v543
      %545 = vmatmul.f32.gmra.mxu0 %v503
      %v546 = vpop.f32.mrf.mxu0
      %v547 = vadd.f32 0.0, %v546
      %548 = vmatmul.f32.gmra.mxu0 %v506
      %v549 = vpop.f32.mrf.mxu0
      %v550 = vadd.f32 0.0, %v549
      %551 = vmatmul.f32.gmra.mxu0 %v509
      %v552 = vpop.f32.mrf.mxu0
      %v553 = vadd.f32 0.0, %v552
      %554 = vmatmul.f32.gmra.mxu0 %v512
      %v555 = vpop.f32.mrf.mxu0
      %v556 = vadd.f32 0.0, %v555
      %557 = vmatmul.f32.gmra.mxu0 %v515
      %v558 = vpop.f32.mrf.mxu0
      %v559 = vadd.f32 0.0, %v558
      %560 = vmatmul.f32.gmra.mxu0 %v518
      %v561 = vpop.f32.mrf.mxu0
      %v562 = vadd.f32 0.0, %v561
      %563 = vdwg.mxu0
      %v565 = vsel %vm303, %v275, 0
      %v568 = vsel %vm303, %v276, 0
      %v571 = vsel %vm303, %v277, 0
      %v574 = vsel %vm303, %v278, 0
      %v577 = vsel %vm303, %v279, 0
      %v580 = vsel %vm303, %v280, 0
      %v583 = vsel %vm303, %v281, 0
      %v586 = vsel %vm303, %v237, 0
      %v589 = vsel %vm303, %v238, 0
      %591 = vmatpush.xpose.msra.mxu0 0.0
      %592 = vmatpush.xpose.msra.mxu0 0.0
      %593 = vmatpush.xpose.msra.mxu0 0.0
      %594 = vmatpush.xpose.msra.mxu0 0.0
      %595 = vmatpush.xpose.msra.mxu0 0.0
      %596 = vmatpush.xpose.msra.mxu0 0.0
      %597 = vmatpush.xpose.msra.mxu0 0.0
      %598 = vmatpush.xpose.msra.mxu0 0.0
      %599 = vmatpush.xpose.msra.mxu0 0.0
      %600 = vmatpush.xpose.msra.mxu0 0.0
      %601 = vmatpush.xpose.msra.mxu0 0.0
      %602 = vmatpush.xpose.msra.mxu0 0.0
      %603 = vmatpush.xpose.msra.mxu0 0.0
      %604 = vmatpush.xpose.msra.mxu0 0.0
      %605 = vmatpush.xpose.msra.mxu0 %v589
      %606 = vmatpush.xpose.msra.mxu0 %v586
      %607 = vmatmul.f32.gmra.mxu0 %v565
      %v608 = vpop.f32.mrf.mxu0
      %v609 = vadd.f32 0.0, %v608
      %610 = vmatmul.f32.gmra.mxu0 %v568
      %v611 = vpop.f32.mrf.mxu0
      %v612 = vadd.f32 0.0, %v611
      %613 = vmatmul.f32.gmra.mxu0 %v571
      %v614 = vpop.f32.mrf.mxu0
      %v615 = vadd.f32 0.0, %v614
      %616 = vmatmul.f32.gmra.mxu0 %v574
      %v617 = vpop.f32.mrf.mxu0
      %v618 = vadd.f32 0.0, %v617
      %619 = vmatmul.f32.gmra.mxu0 %v577
      %v620 = vpop.f32.mrf.mxu0
      %v621 = vadd.f32 0.0, %v620
      %622 = vmatmul.f32.gmra.mxu0 %v580
      %v623 = vpop.f32.mrf.mxu0
      %v624 = vadd.f32 0.0, %v623
      %625 = vmatmul.f32.gmra.mxu0 %v583
      %v626 = vpop.f32.mrf.mxu0
      %v627 = vadd.f32 0.0, %v626
      %628 = vdwg.mxu0
      %v630 = vsel %vm303, %v282, 0
      %v633 = vsel %vm303, %v283, 0
      %v636 = vsel %vm303, %v284, 0
      %v639 = vsel %vm303, %v285, 0
      %v642 = vsel %vm303, %v286, 0
      %v645 = vsel %vm303, %v287, 0
      %v648 = vsel %vm303, %v288, 0
      %v651 = vsel %vm303, %v239, 0
      %v654 = vsel %vm303, %v240, 0
      %656 = vmatpush.xpose.msra.mxu0 0.0
      %657 = vmatpush.xpose.msra.mxu0 0.0
      %658 = vmatpush.xpose.msra.mxu0 0.0
      %659 = vmatpush.xpose.msra.mxu0 0.0
      %660 = vmatpush.xpose.msra.mxu0 0.0
      %661 = vmatpush.xpose.msra.mxu0 0.0
      %662 = vmatpush.xpose.msra.mxu0 0.0
      %663 = vmatpush.xpose.msra.mxu0 0.0
      %664 = vmatpush.xpose.msra.mxu0 0.0
      %665 = vmatpush.xpose.msra.mxu0 0.0
      %666 = vmatpush.xpose.msra.mxu0 0.0
      %667 = vmatpush.xpose.msra.mxu0 0.0
      %668 = vmatpush.xpose.msra.mxu0 0.0
      %669 = vmatpush.xpose.msra.mxu0 0.0
      %670 = vmatpush.xpose.msra.mxu0 %v654
      %671 = vmatpush.xpose.msra.mxu0 %v651
      %672 = vmatmul.f32.gmra.mxu0 %v630
      %v673 = vpop.f32.mrf.mxu0
      %v674 = vadd.f32 0.0, %v673
      %675 = vmatmul.f32.gmra.mxu0 %v633
      %v676 = vpop.f32.mrf.mxu0
      %v677 = vadd.f32 0.0, %v676
      %678 = vmatmul.f32.gmra.mxu0 %v636
      %v679 = vpop.f32.mrf.mxu0
      %v680 = vadd.f32 0.0, %v679
      %681 = vmatmul.f32.gmra.mxu0 %v639
      %v682 = vpop.f32.mrf.mxu0
      %v683 = vadd.f32 0.0, %v682
      %684 = vmatmul.f32.gmra.mxu0 %v642
      %v685 = vpop.f32.mrf.mxu0
      %v686 = vadd.f32 0.0, %v685
      %687 = vmatmul.f32.gmra.mxu0 %v645
      %v688 = vpop.f32.mrf.mxu0
      %v689 = vadd.f32 0.0, %v688
      %690 = vmatmul.f32.gmra.mxu0 %v648
      %v691 = vpop.f32.mrf.mxu0
      %v692 = vadd.f32 0.0, %v691
      %693 = vdwg.mxu0
      %v695 = vsel %vm303, %v289, 0
      %v698 = vsel %vm303, %v290, 0
      %v701 = vsel %vm303, %v291, 0
      %v704 = vsel %vm303, %v292, 0
      %v707 = vsel %vm303, %v293, 0
      %v710 = vsel %vm303, %v294, 0
      %v713 = vsel %vm303, %v295, 0
      %v716 = vsel %vm303, %v241, 0
      %v719 = vsel %vm303, %v242, 0
      %721 = vmatpush.xpose.msra.mxu0 0.0
      %722 = vmatpush.xpose.msra.mxu0 0.0
      %723 = vmatpush.xpose.msra.mxu0 0.0
      %724 = vmatpush.xpose.msra.mxu0 0.0
      %725 = vmatpush.xpose.msra.mxu0 0.0
      %726 = vmatpush.xpose.msra.mxu0 0.0
      %727 = vmatpush.xpose.msra.mxu0 0.0
      %728 = vmatpush.xpose.msra.mxu0 0.0
      %729 = vmatpush.xpose.msra.mxu0 0.0
      %730 = vmatpush.xpose.msra.mxu0 0.0
      %731 = vmatpush.xpose.msra.mxu0 0.0
      %732 = vmatpush.xpose.msra.mxu0 0.0
      %733 = vmatpush.xpose.msra.mxu0 0.0
      %734 = vmatpush.xpose.msra.mxu0 0.0
      %735 = vmatpush.xpose.msra.mxu0 %v719
      %736 = vmatpush.xpose.msra.mxu0 %v716
      %737 = vmatmul.f32.gmra.mxu0 %v695
      %v738 = vpop.f32.mrf.mxu0
      %v739 = vadd.f32 0.0, %v738
      %740 = vmatmul.f32.gmra.mxu0 %v698
      %v741 = vpop.f32.mrf.mxu0
      %v742 = vadd.f32 0.0, %v741
      %743 = vmatmul.f32.gmra.mxu0 %v701
      %v744 = vpop.f32.mrf.mxu0
      %v745 = vadd.f32 0.0, %v744
      %746 = vmatmul.f32.gmra.mxu0 %v704
      %v747 = vpop.f32.mrf.mxu0
      %v748 = vadd.f32 0.0, %v747
      %749 = vmatmul.f32.gmra.mxu0 %v707
      %v750 = vpop.f32.mrf.mxu0
      %v751 = vadd.f32 0.0, %v750
      %752 = vmatmul.f32.gmra.mxu0 %v710
      %v753 = vpop.f32.mrf.mxu0
      %v754 = vadd.f32 0.0, %v753
      %755 = vmatmul.f32.gmra.mxu0 %v713
      %v756 = vpop.f32.mrf.mxu0
      %v757 = vadd.f32 0.0, %v756
      %758 = vdwg.mxu0
      %v760 = vsel %vm303, %v296, 0
      %v763 = vsel %vm303, %v297, 0
      %v766 = vsel %vm303, %v298, 0
      %v769 = vsel %vm303, %v299, 0
      %v772 = vsel %vm303, %v300, 0
      %v775 = vsel %vm303, %v301, 0
      %v778 = vsel %vm303, %v302, 0
      %v781 = vsel %vm303, %v243, 0
      %v784 = vsel %vm303, %v244, 0
      %786 = vmatpush.xpose.msra.mxu0 0.0
      %787 = vmatpush.xpose.msra.mxu0 0.0
      %788 = vmatpush.xpose.msra.mxu0 0.0
      %789 = vmatpush.xpose.msra.mxu0 0.0
      %790 = vmatpush.xpose.msra.mxu0 0.0
      %791 = vmatpush.xpose.msra.mxu0 0.0
      %792 = vmatpush.xpose.msra.mxu0 0.0
      %793 = vmatpush.xpose.msra.mxu0 0.0
      %794 = vmatpush.xpose.msra.mxu0 0.0
      %795 = vmatpush.xpose.msra.mxu0 0.0
      %796 = vmatpush.xpose.msra.mxu0 0.0
      %797 = vmatpush.xpose.msra.mxu0 0.0
      %798 = vmatpush.xpose.msra.mxu0 0.0
      %799 = vmatpush.xpose.msra.mxu0 0.0
      %800 = vmatpush.xpose.msra.mxu0 %v784
      %801 = vmatpush.xpose.msra.mxu0 %v781
      %802 = vmatmul.f32.gmra.mxu0 %v760
      %v803 = vpop.f32.mrf.mxu0
      %v804 = vadd.f32 0.0, %v803
      %805 = vmatmul.f32.gmra.mxu0 %v763
      %v806 = vpop.f32.mrf.mxu0
      %v807 = vadd.f32 0.0, %v806
      %808 = vmatmul.f32.gmra.mxu0 %v766
      %v809 = vpop.f32.mrf.mxu0
      %v810 = vadd.f32 0.0, %v809
      %811 = vmatmul.f32.gmra.mxu0 %v769
      %v812 = vpop.f32.mrf.mxu0
      %v813 = vadd.f32 0.0, %v812
      %814 = vmatmul.f32.gmra.mxu0 %v772
      %v815 = vpop.f32.mrf.mxu0
      %v816 = vadd.f32 0.0, %v815
      %817 = vmatmul.f32.gmra.mxu0 %v775
      %v818 = vpop.f32.mrf.mxu0
      %v819 = vadd.f32 0.0, %v818
      %820 = vmatmul.f32.gmra.mxu0 %v778
      %v821 = vpop.f32.mrf.mxu0
      %v822 = vadd.f32 0.0, %v821
      %823 = vdwg.mxu0
      %vm880 = vcmask 1046528
      %v881 = vrot.slane %v349, 1
      %v882 = vrot.slane %v352, 1
      %v883 = vsel %vm880, %v881, %v882
      %v884 = vrot.slane %v355, 1
      %v885 = vsel %vm880, %v882, %v884
      %v886 = vrot.slane %v358, 1
      %v887 = vsel %vm880, %v884, %v886
      %v888 = vrot.slane %v361, 1
      %v889 = vsel %vm880, %v886, %v888
      %v890 = vrot.slane %v364, 1
      %v891 = vsel %vm880, %v888, %v890
      %v892 = vrot.slane %v367, 1
      %v893 = vsel %vm880, %v890, %v892
      %v894 = vrot.slane %v414, 1
      %v895 = vrot.slane %v417, 1
      %v896 = vsel %vm880, %v894, %v895
      %v897 = vrot.slane %v420, 1
      %v898 = vsel %vm880, %v895, %v897
      %v899 = vrot.slane %v423, 1
      %v900 = vsel %vm880, %v897, %v899
      %v901 = vrot.slane %v426, 1
      %v902 = vsel %vm880, %v899, %v901
      %v903 = vrot.slane %v429, 1
      %v904 = vsel %vm880, %v901, %v903
      %v905 = vrot.slane %v432, 1
      %v906 = vsel %vm880, %v903, %v905
      %v907 = vrot.slane %v479, 1
      %v908 = vrot.slane %v482, 1
      %v909 = vsel %vm880, %v907, %v908
      %v910 = vrot.slane %v485, 1
      %v911 = vsel %vm880, %v908, %v910
      %v912 = vrot.slane %v488, 1
      %v913 = vsel %vm880, %v910, %v912
      %v914 = vrot.slane %v491, 1
      %v915 = vsel %vm880, %v912, %v914
      %v916 = vrot.slane %v494, 1
      %v917 = vsel %vm880, %v914, %v916
      %v918 = vrot.slane %v497, 1
      %v919 = vsel %vm880, %v916, %v918
      %v920 = vrot.slane %v544, 1
      %v921 = vrot.slane %v547, 1
      %v922 = vsel %vm880, %v920, %v921
      %v923 = vrot.slane %v550, 1
      %v924 = vsel %vm880, %v921, %v923
      %v925 = vrot.slane %v553, 1
      %v926 = vsel %vm880, %v923, %v925
      %v927 = vrot.slane %v556, 1
      %v928 = vsel %vm880, %v925, %v927
      %v929 = vrot.slane %v559, 1
      %v930 = vsel %vm880, %v927, %v929
      %v931 = vrot.slane %v562, 1
      %v932 = vsel %vm880, %v929, %v931
      %v933 = vrot.slane %v609, 1
      %v934 = vrot.slane %v612, 1
      %v935 = vsel %vm880, %v933, %v934
      %v936 = vrot.slane %v615, 1
      %v937 = vsel %vm880, %v934, %v936
      %v938 = vrot.slane %v618, 1
      %v939 = vsel %vm880, %v936, %v938
      %v940 = vrot.slane %v621, 1
      %v941 = vsel %vm880, %v938, %v940
      %v942 = vrot.slane %v624, 1
      %v943 = vsel %vm880, %v940, %v942
      %v944 = vrot.slane %v627, 1
      %v945 = vsel %vm880, %v942, %v944
      %v946 = vrot.slane %v674, 1
      %v947 = vrot.slane %v677, 1
      %v948 = vsel %vm880, %v946, %v947
      %v949 = vrot.slane %v680, 1
      %v950 = vsel %vm880, %v947, %v949
      %v951 = vrot.slane %v683, 1
      %v952 = vsel %vm880, %v949, %v951
      %v953 = vrot.slane %v686, 1
      %v954 = vsel %vm880, %v951, %v953
      %v955 = vrot.slane %v689, 1
      %v956 = vsel %vm880, %v953, %v955
      %v957 = vrot.slane %v692, 1
      %v958 = vsel %vm880, %v955, %v957
      %v959 = vrot.slane %v739, 1
      %v960 = vrot.slane %v742, 1
      %v961 = vsel %vm880, %v959, %v960
      %v962 = vrot.slane %v745, 1
      %v963 = vsel %vm880, %v960, %v962
      %v964 = vrot.slane %v748, 1
      %v965 = vsel %vm880, %v962, %v964
      %v966 = vrot.slane %v751, 1
      %v967 = vsel %vm880, %v964, %v966
      %v968 = vrot.slane %v754, 1
      %v969 = vsel %vm880, %v966, %v968
      %v970 = vrot.slane %v757, 1
      %v971 = vsel %vm880, %v968, %v970
      %v972 = vrot.slane %v804, 1
      %v973 = vrot.slane %v807, 1
      %v974 = vsel %vm880, %v972, %v973
      %v975 = vrot.slane %v810, 1
      %v976 = vsel %vm880, %v973, %v975
      %v977 = vrot.slane %v813, 1
      %v978 = vsel %vm880, %v975, %v977
      %v979 = vrot.slane %v816, 1
      %v980 = vsel %vm880, %v977, %v979
      %v981 = vrot.slane %v819, 1
      %v982 = vsel %vm880, %v979, %v981
      %v983 = vrot.slane %v822, 1
      %v984 = vsel %vm880, %v981, %v983
      %v1049 = vsel %vm880, %v892, %v881
      %v1050 = vsel %vm880, %v905, %v894
      %v1051 = vsel %vm880, %v918, %v907
      %v1052 = vsel %vm880, %v931, %v920
      %v1053 = vsel %vm880, %v944, %v933
      %v1054 = vsel %vm880, %v957, %v946
      %v1055 = vsel %vm880, %v970, %v959
      %v1056 = vsel %vm880, %v983, %v972
      %v1057 = vsel %vm219, 1, 0
      %vm1058 = vcmp.eq.s32.totalorder %v1057, 1
      %v1059 = vsel %vm1058, %v883, %v349
      %v1060 = vsel %vm1058, %v885, %v352
      %v1061 = vsel %vm1058, %v887, %v355
      %v1062 = vsel %vm1058, %v889, %v358
      %v1063 = vsel %vm1058, %v891, %v361
      %v1064 = vsel %vm1058, %v893, %v364
      %v1065 = vsel %vm1058, %v1049, %v367
      %v1066 = vsel %vm1058, %v896, %v414
      %v1067 = vsel %vm1058, %v898, %v417
      %v1068 = vsel %vm1058, %v900, %v420
      %v1069 = vsel %vm1058, %v902, %v423
      %v1070 = vsel %vm1058, %v904, %v426
      %v1071 = vsel %vm1058, %v906, %v429
      %v1072 = vsel %vm1058, %v1050, %v432
      %v1073 = vsel %vm1058, %v909, %v479
      %v1074 = vsel %vm1058, %v911, %v482
      %v1075 = vsel %vm1058, %v913, %v485
      %v1076 = vsel %vm1058, %v915, %v488
      %v1077 = vsel %vm1058, %v917, %v491
      %v1078 = vsel %vm1058, %v919, %v494
      %v1079 = vsel %vm1058, %v1051, %v497
      %v1080 = vsel %vm1058, %v922, %v544
      %v1081 = vsel %vm1058, %v924, %v547
      %v1082 = vsel %vm1058, %v926, %v550
      %v1083 = vsel %vm1058, %v928, %v553
      %v1084 = vsel %vm1058, %v930, %v556
      %v1085 = vsel %vm1058, %v932, %v559
      %v1086 = vsel %vm1058, %v1052, %v562
      %v1087 = vsel %vm1058, %v935, %v609
      %v1088 = vsel %vm1058, %v937, %v612
      %v1089 = vsel %vm1058, %v939, %v615
      %v1090 = vsel %vm1058, %v941, %v618
      %v1091 = vsel %vm1058, %v943, %v621
      %v1092 = vsel %vm1058, %v945, %v624
      %v1093 = vsel %vm1058, %v1053, %v627
      %v1094 = vsel %vm1058, %v948, %v674
      %v1095 = vsel %vm1058, %v950, %v677
      %v1096 = vsel %vm1058, %v952, %v680
      %v1097 = vsel %vm1058, %v954, %v683
      %v1098 = vsel %vm1058, %v956, %v686
      %v1099 = vsel %vm1058, %v958, %v689
      %v1100 = vsel %vm1058, %v1054, %v692
      %v1101 = vsel %vm1058, %v961, %v739
      %v1102 = vsel %vm1058, %v963, %v742
      %v1103 = vsel %vm1058, %v965, %v745
      %v1104 = vsel %vm1058, %v967, %v748
      %v1105 = vsel %vm1058, %v969, %v751
      %v1106 = vsel %vm1058, %v971, %v754
      %v1107 = vsel %vm1058, %v1055, %v757
      %v1108 = vsel %vm1058, %v974, %v804
      %v1109 = vsel %vm1058, %v976, %v807
      %v1110 = vsel %vm1058, %v978, %v810
      %v1111 = vsel %vm1058, %v980, %v813
      %v1112 = vsel %vm1058, %v982, %v816
      %v1113 = vsel %vm1058, %v984, %v819
      %v1114 = vsel %vm1058, %v1056, %v822
      %vm1171 = vcmask 1045504
      %v1172 = vrot.slane %v1059, 2
      %v1173 = vrot.slane %v1060, 2
      %v1174 = vsel %vm1171, %v1172, %v1173
      %v1175 = vrot.slane %v1061, 2
      %v1176 = vsel %vm1171, %v1173, %v1175
      %v1177 = vrot.slane %v1062, 2
      %v1178 = vsel %vm1171, %v1175, %v1177
      %v1179 = vrot.slane %v1063, 2
      %v1180 = vsel %vm1171, %v1177, %v1179
      %v1181 = vrot.slane %v1064, 2
      %v1182 = vsel %vm1171, %v1179, %v1181
      %v1183 = vrot.slane %v1065, 2
      %v1184 = vsel %vm1171, %v1181, %v1183
      %v1185 = vrot.slane %v1066, 2
      %v1186 = vrot.slane %v1067, 2
      %v1187 = vsel %vm1171, %v1185, %v1186
      %v1188 = vrot.slane %v1068, 2
      %v1189 = vsel %vm1171, %v1186, %v1188
      %v1190 = vrot.slane %v1069, 2
      %v1191 = vsel %vm1171, %v1188, %v1190
      %v1192 = vrot.slane %v1070, 2
      %v1193 = vsel %vm1171, %v1190, %v1192
      %v1194 = vrot.slane %v1071, 2
      %v1195 = vsel %vm1171, %v1192, %v1194
      %v1196 = vrot.slane %v1072, 2
      %v1197 = vsel %vm1171, %v1194, %v1196
      %v1198 = vrot.slane %v1073, 2
      %v1199 = vrot.slane %v1074, 2
      %v1200 = vsel %vm1171, %v1198, %v1199
      %v1201 = vrot.slane %v1075, 2
      %v1202 = vsel %vm1171, %v1199, %v1201
      %v1203 = vrot.slane %v1076, 2
      %v1204 = vsel %vm1171, %v1201, %v1203
      %v1205 = vrot.slane %v1077, 2
      %v1206 = vsel %vm1171, %v1203, %v1205
      %v1207 = vrot.slane %v1078, 2
      %v1208 = vsel %vm1171, %v1205, %v1207
      %v1209 = vrot.slane %v1079, 2
      %v1210 = vsel %vm1171, %v1207, %v1209
      %v1211 = vrot.slane %v1080, 2
      %v1212 = vrot.slane %v1081, 2
      %v1213 = vsel %vm1171, %v1211, %v1212
      %v1214 = vrot.slane %v1082, 2
      %v1215 = vsel %vm1171, %v1212, %v1214
      %v1216 = vrot.slane %v1083, 2
      %v1217 = vsel %vm1171, %v1214, %v1216
      %v1218 = vrot.slane %v1084, 2
      %v1219 = vsel %vm1171, %v1216, %v1218
      %v1220 = vrot.slane %v1085, 2
      %v1221 = vsel %vm1171, %v1218, %v1220
      %v1222 = vrot.slane %v1086, 2
      %v1223 = vsel %vm1171, %v1220, %v1222
      %v1224 = vrot.slane %v1087, 2
      %v1225 = vrot.slane %v1088, 2
      %v1226 = vsel %vm1171, %v1224, %v1225
      %v1227 = vrot.slane %v1089, 2
      %v1228 = vsel %vm1171, %v1225, %v1227
      %v1229 = vrot.slane %v1090, 2
      %v1230 = vsel %vm1171, %v1227, %v1229
      %v1231 = vrot.slane %v1091, 2
      %v1232 = vsel %vm1171, %v1229, %v1231
      %v1233 = vrot.slane %v1092, 2
      %v1234 = vsel %vm1171, %v1231, %v1233
      %v1235 = vrot.slane %v1093, 2
      %v1236 = vsel %vm1171, %v1233, %v1235
      %v1237 = vrot.slane %v1094, 2
      %v1238 = vrot.slane %v1095, 2
      %v1239 = vsel %vm1171, %v1237, %v1238
      %v1240 = vrot.slane %v1096, 2
      %v1241 = vsel %vm1171, %v1238, %v1240
      %v1242 = vrot.slane %v1097, 2
      %v1243 = vsel %vm1171, %v1240, %v1242
      %v1244 = vrot.slane %v1098, 2
      %v1245 = vsel %vm1171, %v1242, %v1244
      %v1246 = vrot.slane %v1099, 2
      %v1247 = vsel %vm1171, %v1244, %v1246
      %v1248 = vrot.slane %v1100, 2
      %v1249 = vsel %vm1171, %v1246, %v1248
      %v1250 = vrot.slane %v1101, 2
      %v1251 = vrot.slane %v1102, 2
      %v1252 = vsel %vm1171, %v1250, %v1251
      %v1253 = vrot.slane %v1103, 2
      %v1254 = vsel %vm1171, %v1251, %v1253
      %v1255 = vrot.slane %v1104, 2
      %v1256 = vsel %vm1171, %v1253, %v1255
      %v1257 = vrot.slane %v1105, 2
      %v1258 = vsel %vm1171, %v1255, %v1257
      %v1259 = vrot.slane %v1106, 2
      %v1260 = vsel %vm1171, %v1257, %v1259
      %v1261 = vrot.slane %v1107, 2
      %v1262 = vsel %vm1171, %v1259, %v1261
      %v1263 = vrot.slane %v1108, 2
      %v1264 = vrot.slane %v1109, 2
      %v1265 = vsel %vm1171, %v1263, %v1264
      %v1266 = vrot.slane %v1110, 2
      %v1267 = vsel %vm1171, %v1264, %v1266
      %v1268 = vrot.slane %v1111, 2
      %v1269 = vsel %vm1171, %v1266, %v1268
      %v1270 = vrot.slane %v1112, 2
      %v1271 = vsel %vm1171, %v1268, %v1270
      %v1272 = vrot.slane %v1113, 2
      %v1273 = vsel %vm1171, %v1270, %v1272
      %v1274 = vrot.slane %v1114, 2
      %v1275 = vsel %vm1171, %v1272, %v1274
      %v1340 = vsel %vm1171, %v1183, %v1172
      %v1341 = vsel %vm1171, %v1196, %v1185
      %v1342 = vsel %vm1171, %v1209, %v1198
      %v1343 = vsel %vm1171, %v1222, %v1211
      %v1344 = vsel %vm1171, %v1235, %v1224
      %v1345 = vsel %vm1171, %v1248, %v1237
      %v1346 = vsel %vm1171, %v1261, %v1250
      %v1347 = vsel %vm1171, %v1274, %v1263
      %v1348 = vsel %vm222, 1, 0
      %vm1349 = vcmp.eq.s32.totalorder %v1348, 1
      %v1350 = vsel %vm1349, %v1174, %v1059
      %v1351 = vsel %vm1349, %v1176, %v1060
      %v1352 = vsel %vm1349, %v1178, %v1061
      %v1353 = vsel %vm1349, %v1180, %v1062
      %v1354 = vsel %vm1349, %v1182, %v1063
      %v1355 = vsel %vm1349, %v1184, %v1064
      %v1356 = vsel %vm1349, %v1340, %v1065
      %v1357 = vsel %vm1349, %v1187, %v1066
      %v1358 = vsel %vm1349, %v1189, %v1067
      %v1359 = vsel %vm1349, %v1191, %v1068
      %v1360 = vsel %vm1349, %v1193, %v1069
      %v1361 = vsel %vm1349, %v1195, %v1070
      %v1362 = vsel %vm1349, %v1197, %v1071
      %v1363 = vsel %vm1349, %v1341, %v1072
      %v1364 = vsel %vm1349, %v1200, %v1073
      %v1365 = vsel %vm1349, %v1202, %v1074
      %v1366 = vsel %vm1349, %v1204, %v1075
      %v1367 = vsel %vm1349, %v1206, %v1076
      %v1368 = vsel %vm1349, %v1208, %v1077
      %v1369 = vsel %vm1349, %v1210, %v1078
      %v1370 = vsel %vm1349, %v1342, %v1079
      %v1371 = vsel %vm1349, %v1213, %v1080
      %v1372 = vsel %vm1349, %v1215, %v1081
      %v1373 = vsel %vm1349, %v1217, %v1082
      %v1374 = vsel %vm1349, %v1219, %v1083
      %v1375 = vsel %vm1349, %v1221, %v1084
      %v1376 = vsel %vm1349, %v1223, %v1085
      %v1377 = vsel %vm1349, %v1343, %v1086
      %v1378 = vsel %vm1349, %v1226, %v1087
      %v1379 = vsel %vm1349, %v1228, %v1088
      %v1380 = vsel %vm1349, %v1230, %v1089
      %v1381 = vsel %vm1349, %v1232, %v1090
      %v1382 = vsel %vm1349, %v1234, %v1091
      %v1383 = vsel %vm1349, %v1236, %v1092
      %v1384 = vsel %vm1349, %v1344, %v1093
      %v1385 = vsel %vm1349, %v1239, %v1094
      %v1386 = vsel %vm1349, %v1241, %v1095
      %v1387 = vsel %vm1349, %v1243, %v1096
      %v1388 = vsel %vm1349, %v1245, %v1097
      %v1389 = vsel %vm1349, %v1247, %v1098
      %v1390 = vsel %vm1349, %v1249, %v1099
      %v1391 = vsel %vm1349, %v1345, %v1100
      %v1392 = vsel %vm1349, %v1252, %v1101
      %v1393 = vsel %vm1349, %v1254, %v1102
      %v1394 = vsel %vm1349, %v1256, %v1103
      %v1395 = vsel %vm1349, %v1258, %v1104
      %v1396 = vsel %vm1349, %v1260, %v1105
      %v1397 = vsel %vm1349, %v1262, %v1106
      %v1398 = vsel %vm1349, %v1346, %v1107
      %v1399 = vsel %vm1349, %v1265, %v1108
      %v1400 = vsel %vm1349, %v1267, %v1109
      %v1401 = vsel %vm1349, %v1269, %v1110
      %v1402 = vsel %vm1349, %v1271, %v1111
      %v1403 = vsel %vm1349, %v1273, %v1112
      %v1404 = vsel %vm1349, %v1275, %v1113
      %v1405 = vsel %vm1349, %v1347, %v1114
      %vm1462 = vcmask 1043456
      %v1463 = vrot.slane %v1350, 4
      %v1464 = vrot.slane %v1351, 4
      %v1465 = vsel %vm1462, %v1463, %v1464
      %v1466 = vrot.slane %v1352, 4
      %v1467 = vsel %vm1462, %v1464, %v1466
      %v1468 = vrot.slane %v1353, 4
      %v1469 = vsel %vm1462, %v1466, %v1468
      %v1470 = vrot.slane %v1354, 4
      %v1471 = vsel %vm1462, %v1468, %v1470
      %v1472 = vrot.slane %v1355, 4
      %v1473 = vsel %vm1462, %v1470, %v1472
      %v1474 = vrot.slane %v1356, 4
      %v1475 = vsel %vm1462, %v1472, %v1474
      %v1476 = vrot.slane %v1357, 4
      %v1477 = vrot.slane %v1358, 4
      %v1478 = vsel %vm1462, %v1476, %v1477
      %v1479 = vrot.slane %v1359, 4
      %v1480 = vsel %vm1462, %v1477, %v1479
      %v1481 = vrot.slane %v1360, 4
      %v1482 = vsel %vm1462, %v1479, %v1481
      %v1483 = vrot.slane %v1361, 4
      %v1484 = vsel %vm1462, %v1481, %v1483
      %v1485 = vrot.slane %v1362, 4
      %v1486 = vsel %vm1462, %v1483, %v1485
      %v1487 = vrot.slane %v1363, 4
      %v1488 = vsel %vm1462, %v1485, %v1487
      %v1489 = vrot.slane %v1364, 4
      %v1490 = vrot.slane %v1365, 4
      %v1491 = vsel %vm1462, %v1489, %v1490
      %v1492 = vrot.slane %v1366, 4
      %v1493 = vsel %vm1462, %v1490, %v1492
      %v1494 = vrot.slane %v1367, 4
      %v1495 = vsel %vm1462, %v1492, %v1494
      %v1496 = vrot.slane %v1368, 4
      %v1497 = vsel %vm1462, %v1494, %v1496
      %v1498 = vrot.slane %v1369, 4
      %v1499 = vsel %vm1462, %v1496, %v1498
      %v1500 = vrot.slane %v1370, 4
      %v1501 = vsel %vm1462, %v1498, %v1500
      %v1502 = vrot.slane %v1371, 4
      %v1503 = vrot.slane %v1372, 4
      %v1504 = vsel %vm1462, %v1502, %v1503
      %v1505 = vrot.slane %v1373, 4
      %v1506 = vsel %vm1462, %v1503, %v1505
      %v1507 = vrot.slane %v1374, 4
      %v1508 = vsel %vm1462, %v1505, %v1507
      %v1509 = vrot.slane %v1375, 4
      %v1510 = vsel %vm1462, %v1507, %v1509
      %v1511 = vrot.slane %v1376, 4
      %v1512 = vsel %vm1462, %v1509, %v1511
      %v1513 = vrot.slane %v1377, 4
      %v1514 = vsel %vm1462, %v1511, %v1513
      %v1515 = vrot.slane %v1378, 4
      %v1516 = vrot.slane %v1379, 4
      %v1517 = vsel %vm1462, %v1515, %v1516
      %v1518 = vrot.slane %v1380, 4
      %v1519 = vsel %vm1462, %v1516, %v1518
      %v1520 = vrot.slane %v1381, 4
      %v1521 = vsel %vm1462, %v1518, %v1520
      %v1522 = vrot.slane %v1382, 4
      %v1523 = vsel %vm1462, %v1520, %v1522
      %v1524 = vrot.slane %v1383, 4
      %v1525 = vsel %vm1462, %v1522, %v1524
      %v1526 = vrot.slane %v1384, 4
      %v1527 = vsel %vm1462, %v1524, %v1526
      %v1528 = vrot.slane %v1385, 4
      %v1529 = vrot.slane %v1386, 4
      %v1530 = vsel %vm1462, %v1528, %v1529
      %v1531 = vrot.slane %v1387, 4
      %v1532 = vsel %vm1462, %v1529, %v1531
      %v1533 = vrot.slane %v1388, 4
      %v1534 = vsel %vm1462, %v1531, %v1533
      %v1535 = vrot.slane %v1389, 4
      %v1536 = vsel %vm1462, %v1533, %v1535
      %v1537 = vrot.slane %v1390, 4
      %v1538 = vsel %vm1462, %v1535, %v1537
      %v1539 = vrot.slane %v1391, 4
      %v1540 = vsel %vm1462, %v1537, %v1539
      %v1541 = vrot.slane %v1392, 4
      %v1542 = vrot.slane %v1393, 4
      %v1543 = vsel %vm1462, %v1541, %v1542
      %v1544 = vrot.slane %v1394, 4
      %v1545 = vsel %vm1462, %v1542, %v1544
      %v1546 = vrot.slane %v1395, 4
      %v1547 = vsel %vm1462, %v1544, %v1546
      %v1548 = vrot.slane %v1396, 4
      %v1549 = vsel %vm1462, %v1546, %v1548
      %v1550 = vrot.slane %v1397, 4
      %v1551 = vsel %vm1462, %v1548, %v1550
      %v1552 = vrot.slane %v1398, 4
      %v1553 = vsel %vm1462, %v1550, %v1552
      %v1554 = vrot.slane %v1399, 4
      %v1555 = vrot.slane %v1400, 4
      %v1556 = vsel %vm1462, %v1554, %v1555
      %v1557 = vrot.slane %v1401, 4
      %v1558 = vsel %vm1462, %v1555, %v1557
      %v1559 = vrot.slane %v1402, 4
      %v1560 = vsel %vm1462, %v1557, %v1559
      %v1561 = vrot.slane %v1403, 4
      %v1562 = vsel %vm1462, %v1559, %v1561
      %v1563 = vrot.slane %v1404, 4
      %v1564 = vsel %vm1462, %v1561, %v1563
      %v1565 = vrot.slane %v1405, 4
      %v1566 = vsel %vm1462, %v1563, %v1565
      %v1631 = vsel %vm1462, %v1474, %v1463
      %v1632 = vsel %vm1462, %v1487, %v1476
      %v1633 = vsel %vm1462, %v1500, %v1489
      %v1634 = vsel %vm1462, %v1513, %v1502
      %v1635 = vsel %vm1462, %v1526, %v1515
      %v1636 = vsel %vm1462, %v1539, %v1528
      %v1637 = vsel %vm1462, %v1552, %v1541
      %v1638 = vsel %vm1462, %v1565, %v1554
      %v1639 = vsel %vm225, 1, 0
      %vm1640 = vcmp.eq.s32.totalorder %v1639, 1
      %v1641 = vsel %vm1640, %v1465, %v1350
      %v1642 = vsel %vm1640, %v1467, %v1351
      %v1643 = vsel %vm1640, %v1469, %v1352
      %v1644 = vsel %vm1640, %v1471, %v1353
      %v1645 = vsel %vm1640, %v1473, %v1354
      %v1646 = vsel %vm1640, %v1475, %v1355
      %v1647 = vsel %vm1640, %v1631, %v1356
      %v1648 = vsel %vm1640, %v1478, %v1357
      %v1649 = vsel %vm1640, %v1480, %v1358
      %v1650 = vsel %vm1640, %v1482, %v1359
      %v1651 = vsel %vm1640, %v1484, %v1360
      %v1652 = vsel %vm1640, %v1486, %v1361
      %v1653 = vsel %vm1640, %v1488, %v1362
      %v1654 = vsel %vm1640, %v1632, %v1363
      %v1655 = vsel %vm1640, %v1491, %v1364
      %v1656 = vsel %vm1640, %v1493, %v1365
      %v1657 = vsel %vm1640, %v1495, %v1366
      %v1658 = vsel %vm1640, %v1497, %v1367
      %v1659 = vsel %vm1640, %v1499, %v1368
      %v1660 = vsel %vm1640, %v1501, %v1369
      %v1661 = vsel %vm1640, %v1633, %v1370
      %v1662 = vsel %vm1640, %v1504, %v1371
      %v1663 = vsel %vm1640, %v1506, %v1372
      %v1664 = vsel %vm1640, %v1508, %v1373
      %v1665 = vsel %vm1640, %v1510, %v1374
      %v1666 = vsel %vm1640, %v1512, %v1375
      %v1667 = vsel %vm1640, %v1514, %v1376
      %v1668 = vsel %vm1640, %v1634, %v1377
      %v1669 = vsel %vm1640, %v1517, %v1378
      %v1670 = vsel %vm1640, %v1519, %v1379
      %v1671 = vsel %vm1640, %v1521, %v1380
      %v1672 = vsel %vm1640, %v1523, %v1381
      %v1673 = vsel %vm1640, %v1525, %v1382
      %v1674 = vsel %vm1640, %v1527, %v1383
      %v1675 = vsel %vm1640, %v1635, %v1384
      %v1676 = vsel %vm1640, %v1530, %v1385
      %v1677 = vsel %vm1640, %v1532, %v1386
      %v1678 = vsel %vm1640, %v1534, %v1387
      %v1679 = vsel %vm1640, %v1536, %v1388
      %v1680 = vsel %vm1640, %v1538, %v1389
      %v1681 = vsel %vm1640, %v1540, %v1390
      %v1682 = vsel %vm1640, %v1636, %v1391
      %v1683 = vsel %vm1640, %v1543, %v1392
      %v1684 = vsel %vm1640, %v1545, %v1393
      %v1685 = vsel %vm1640, %v1547, %v1394
      %v1686 = vsel %vm1640, %v1549, %v1395
      %v1687 = vsel %vm1640, %v1551, %v1396
      %v1688 = vsel %vm1640, %v1553, %v1397
      %v1689 = vsel %vm1640, %v1637, %v1398
      %v1690 = vsel %vm1640, %v1556, %v1399
      %v1691 = vsel %vm1640, %v1558, %v1400
      %v1692 = vsel %vm1640, %v1560, %v1401
      %v1693 = vsel %vm1640, %v1562, %v1402
      %v1694 = vsel %vm1640, %v1564, %v1403
      %v1695 = vsel %vm1640, %v1566, %v1404
      %v1696 = vsel %vm1640, %v1638, %v1405
      %v1697 = vsel %vm228, 1, 0
      %vm1698 = vcmp.eq.s32.totalorder %v1697, 1
      %v1699 = vsel %vm1698, %v1642, %v1641
      %v1700 = vsel %vm1698, %v1643, %v1642
      %v1701 = vsel %vm1698, %v1644, %v1643
      %v1702 = vsel %vm1698, %v1645, %v1644
      %v1703 = vsel %vm1698, %v1646, %v1645
      %v1704 = vsel %vm1698, %v1647, %v1646
      %v1705 = vsel %vm1698, %v1649, %v1648
      %v1706 = vsel %vm1698, %v1650, %v1649
      %v1707 = vsel %vm1698, %v1651, %v1650
      %v1708 = vsel %vm1698, %v1652, %v1651
      %v1709 = vsel %vm1698, %v1653, %v1652
      %v1710 = vsel %vm1698, %v1654, %v1653
      %v1711 = vsel %vm1698, %v1656, %v1655
      %v1712 = vsel %vm1698, %v1657, %v1656
      %v1713 = vsel %vm1698, %v1658, %v1657
      %v1714 = vsel %vm1698, %v1659, %v1658
      %v1715 = vsel %vm1698, %v1660, %v1659
      %v1716 = vsel %vm1698, %v1661, %v1660
      %v1717 = vsel %vm1698, %v1663, %v1662
      %v1718 = vsel %vm1698, %v1664, %v1663
      %v1719 = vsel %vm1698, %v1665, %v1664
      %v1720 = vsel %vm1698, %v1666, %v1665
      %v1721 = vsel %vm1698, %v1667, %v1666
      %v1722 = vsel %vm1698, %v1668, %v1667
      %v1723 = vsel %vm1698, %v1670, %v1669
      %v1724 = vsel %vm1698, %v1671, %v1670
      %v1725 = vsel %vm1698, %v1672, %v1671
      %v1726 = vsel %vm1698, %v1673, %v1672
      %v1727 = vsel %vm1698, %v1674, %v1673
      %v1728 = vsel %vm1698, %v1675, %v1674
      %v1729 = vsel %vm1698, %v1677, %v1676
      %v1730 = vsel %vm1698, %v1678, %v1677
      %v1731 = vsel %vm1698, %v1679, %v1678
      %v1732 = vsel %vm1698, %v1680, %v1679
      %v1733 = vsel %vm1698, %v1681, %v1680
      %v1734 = vsel %vm1698, %v1682, %v1681
      %v1735 = vsel %vm1698, %v1684, %v1683
      %v1736 = vsel %vm1698, %v1685, %v1684
      %v1737 = vsel %vm1698, %v1686, %v1685
      %v1738 = vsel %vm1698, %v1687, %v1686
      %v1739 = vsel %vm1698, %v1688, %v1687
      %v1740 = vsel %vm1698, %v1689, %v1688
      %v1741 = vsel %vm1698, %v1691, %v1690
      %v1742 = vsel %vm1698, %v1692, %v1691
      %v1743 = vsel %vm1698, %v1693, %v1692
      %v1744 = vsel %vm1698, %v1694, %v1693
      %v1745 = vsel %vm1698, %v1695, %v1694
      %v1746 = vsel %vm1698, %v1696, %v1695
      %v1747 = vmul.f32 %v1699, 0.25
      %v1748 = vmul.f32 %v1705, 0.25
      %v1749 = vmul.f32 %v1711, 0.25
      %v1750 = vmul.f32 %v1717, 0.25
      %v1751 = vmul.f32 %v1723, 0.25
      %v1752 = vmul.f32 %v1729, 0.25
      %v1753 = vmul.f32 %v1735, 0.25
      %v1754 = vmul.f32 %v1741, 0.25
      %v1763 = vrot.slane %v1748, 7
      %vm1764 = vcmask 1041409
      %v1765 = vsel %vm1764, %v1763, %v1747
      %v1766 = vrot.slane %v1749, 6
      %vm1767 = vcmask 1042434
      %v1768 = vsel %vm1767, %v1766, %v1765
      %v1769 = vrot.slane %v1750, 5
      %vm1770 = vcmask 1043459
      %v1771 = vsel %vm1770, %v1769, %v1768
      %v1772 = vrot.slane %v1751, 4
      %vm1773 = vcmask 1044484
      %v1774 = vsel %vm1773, %v1772, %v1771
      %v1775 = vrot.slane %v1752, 3
      %vm1776 = vcmask 1045509
      %v1777 = vsel %vm1776, %v1775, %v1774
      %v1778 = vrot.slane %v1753, 2
      %vm1779 = vcmask 1046534
      %v1780 = vsel %vm1779, %v1778, %v1777
      %v1781 = vrot.slane %v1754, 1
      %vm1782 = vcmask 1047559
      %v1783 = vsel %vm1782, %v1781, %v1780
      %vm1785 = vcmask 130048
      %1786 = vst.msk [vmem:[%s214] sm:$0xff] %vm1785, %v1783
      %v1787 = vsel %vm1770, %v1763, %v1747
      %v1788 = vsel %vm1773, %v1766, %v1787
      %v1789 = vsel %vm1776, %v1769, %v1788
      %v1790 = vsel %vm1779, %v1772, %v1789
      %v1791 = vsel %vm1782, %v1775, %v1790
      %v1792 = vsel %vm1764, %v1781, %v1778
      %s1795 = scalar_lea.vmem %s214, 16
      %vm1796 = vcmask 130050
      %1797 = vst.msk [vmem:[%s1795 - $0x2] sm:$0xfc] %vm1796, %v1791
      %vm1798 = vcmask 123904
      %1799 = vst.msk [vmem:[%s1795 + $0x6] sm:$0x3] %vm1798, %v1792
      %v1800 = vsel %vm1776, %v1763, %v1747
      %v1801 = vsel %vm1779, %v1766, %v1800
      %v1802 = vsel %vm1782, %v1769, %v1801
      %v1803 = vsel %vm1764, %v1775, %v1772
      %v1804 = vsel %vm1767, %v1778, %v1803
      %v1805 = vsel %vm1770, %v1781, %v1804
      %s1808 = scalar_lea.vmem %s214, 32
      %vm1809 = vcmask 130052
      %1810 = vst.msk [vmem:[%s1808 - $0x4] sm:$0xf0] %vm1809, %v1802
      %vm1811 = vcmask 125952
      %1812 = vst.msk [vmem:[%s1808 + $0x4] sm:$0xf] %vm1811, %v1805
      %v1813 = vsel %vm1782, %v1763, %v1747
      %v1814 = vsel %vm1764, %v1769, %v1766
      %v1815 = vsel %vm1767, %v1772, %v1814
      %v1816 = vsel %vm1770, %v1775, %v1815
      %v1817 = vsel %vm1773, %v1778, %v1816
      %v1818 = vsel %vm1776, %v1781, %v1817
      %s1821 = scalar_lea.vmem %s214, 48
      %vm1822 = vcmask 130054
      %1823 = vst.msk [vmem:[%s1821 - $0x6] sm:$0xc0] %vm1822, %v1813
      %vm1824 = vcmask 128000
      %1825 = vst.msk [vmem:[%s1821 + $0x2] sm:$0x3f] %vm1824, %v1818
      %v1826 = vmul.f32 %v1700, 0.25
      %v1827 = vmul.f32 %v1706, 0.25
      %v1828 = vmul.f32 %v1712, 0.25
      %v1829 = vmul.f32 %v1718, 0.25
      %v1830 = vmul.f32 %v1724, 0.25
      %v1831 = vmul.f32 %v1730, 0.25
      %v1832 = vmul.f32 %v1736, 0.25
      %v1833 = vmul.f32 %v1742, 0.25
      %v1842 = vrot.slane %v1827, 7
      %v1843 = vsel %vm1764, %v1842, %v1826
      %v1844 = vrot.slane %v1828, 6
      %v1845 = vsel %vm1767, %v1844, %v1843
      %v1846 = vrot.slane %v1829, 5
      %v1847 = vsel %vm1770, %v1846, %v1845
      %v1848 = vrot.slane %v1830, 4
      %v1849 = vsel %vm1773, %v1848, %v1847
      %v1850 = vrot.slane %v1831, 3
      %v1851 = vsel %vm1776, %v1850, %v1849
      %v1852 = vrot.slane %v1832, 2
      %v1853 = vsel %vm1779, %v1852, %v1851
      %v1854 = vrot.slane %v1833, 1
      %v1855 = vsel %vm1782, %v1854, %v1853
      %s1857 = scalar_lea.vmem %s214, 64
      %1858 = vst.msk [vmem:[%s1857] sm:$0xff] %vm1785, %v1855
      %v1859 = vsel %vm1770, %v1842, %v1826
      %v1860 = vsel %vm1773, %v1844, %v1859
      %v1861 = vsel %vm1776, %v1846, %v1860
      %v1862 = vsel %vm1779, %v1848, %v1861
      %v1863 = vsel %vm1782, %v1850, %v1862
      %v1864 = vsel %vm1764, %v1854, %v1852
      %s1867 = scalar_lea.vmem %s214, 80
      %1868 = vst.msk [vmem:[%s1867 - $0x2] sm:$0xfc] %vm1796, %v1863
      %1869 = vst.msk [vmem:[%s1867 + $0x6] sm:$0x3] %vm1798, %v1864
      %v1870 = vsel %vm1776, %v1842, %v1826
      %v1871 = vsel %vm1779, %v1844, %v1870
      %v1872 = vsel %vm1782, %v1846, %v1871
      %v1873 = vsel %vm1764, %v1850, %v1848
      %v1874 = vsel %vm1767, %v1852, %v1873
      %v1875 = vsel %vm1770, %v1854, %v1874
      %s1878 = scalar_lea.vmem %s214, 96
      %1879 = vst.msk [vmem:[%s1878 - $0x4] sm:$0xf0] %vm1809, %v1872
      %1880 = vst.msk [vmem:[%s1878 + $0x4] sm:$0xf] %vm1811, %v1875
      %v1881 = vsel %vm1782, %v1842, %v1826
      %v1882 = vsel %vm1764, %v1846, %v1844
      %v1883 = vsel %vm1767, %v1848, %v1882
      %v1884 = vsel %vm1770, %v1850, %v1883
      %v1885 = vsel %vm1773, %v1852, %v1884
      %v1886 = vsel %vm1776, %v1854, %v1885
      %s1889 = scalar_lea.vmem %s214, 112
      %1890 = vst.msk [vmem:[%s1889 - $0x6] sm:$0xc0] %vm1822, %v1881
      %1891 = vst.msk [vmem:[%s1889 + $0x2] sm:$0x3f] %vm1824, %v1886
      %v1892 = vmul.f32 %v1701, 0.25
      %v1893 = vmul.f32 %v1707, 0.25
      %v1894 = vmul.f32 %v1713, 0.25
      %v1895 = vmul.f32 %v1719, 0.25
      %v1896 = vmul.f32 %v1725, 0.25
      %v1897 = vmul.f32 %v1731, 0.25
      %v1898 = vmul.f32 %v1737, 0.25
      %v1899 = vmul.f32 %v1743, 0.25
      %v1908 = vrot.slane %v1893, 7
      %v1909 = vsel %vm1764, %v1908, %v1892
      %v1910 = vrot.slane %v1894, 6
      %v1911 = vsel %vm1767, %v1910, %v1909
      %v1912 = vrot.slane %v1895, 5
      %v1913 = vsel %vm1770, %v1912, %v1911
      %v1914 = vrot.slane %v1896, 4
      %v1915 = vsel %vm1773, %v1914, %v1913
      %v1916 = vrot.slane %v1897, 3
      %v1917 = vsel %vm1776, %v1916, %v1915
      %v1918 = vrot.slane %v1898, 2
      %v1919 = vsel %vm1779, %v1918, %v1917
      %v1920 = vrot.slane %v1899, 1
      %v1921 = vsel %vm1782, %v1920, %v1919
      %s1923 = scalar_lea.vmem %s214, 128
      %1924 = vst.msk [vmem:[%s1923] sm:$0xff] %vm1785, %v1921
      %v1925 = vsel %vm1770, %v1908, %v1892
      %v1926 = vsel %vm1773, %v1910, %v1925
      %v1927 = vsel %vm1776, %v1912, %v1926
      %v1928 = vsel %vm1779, %v1914, %v1927
      %v1929 = vsel %vm1782, %v1916, %v1928
      %v1930 = vsel %vm1764, %v1920, %v1918
      %s1933 = scalar_lea.vmem %s214, 144
      %1934 = vst.msk [vmem:[%s1933 - $0x2] sm:$0xfc] %vm1796, %v1929
      %1935 = vst.msk [vmem:[%s1933 + $0x6] sm:$0x3] %vm1798, %v1930
      %v1936 = vsel %vm1776, %v1908, %v1892
      %v1937 = vsel %vm1779, %v1910, %v1936
      %v1938 = vsel %vm1782, %v1912, %v1937
      %v1939 = vsel %vm1764, %v1916, %v1914
      %v1940 = vsel %vm1767, %v1918, %v1939
      %v1941 = vsel %vm1770, %v1920, %v1940
      %s1944 = scalar_lea.vmem %s214, 160
      %1945 = vst.msk [vmem:[%s1944 - $0x4] sm:$0xf0] %vm1809, %v1938
      %1946 = vst.msk [vmem:[%s1944 + $0x4] sm:$0xf] %vm1811, %v1941
      %v1947 = vsel %vm1782, %v1908, %v1892
      %v1948 = vsel %vm1764, %v1912, %v1910
      %v1949 = vsel %vm1767, %v1914, %v1948
      %v1950 = vsel %vm1770, %v1916, %v1949
      %v1951 = vsel %vm1773, %v1918, %v1950
      %v1952 = vsel %vm1776, %v1920, %v1951
      %s1955 = scalar_lea.vmem %s214, 176
      %1956 = vst.msk [vmem:[%s1955 - $0x6] sm:$0xc0] %vm1822, %v1947
      %1957 = vst.msk [vmem:[%s1955 + $0x2] sm:$0x3f] %vm1824, %v1952
      %v1958 = vmul.f32 %v1702, 0.25
      %v1959 = vmul.f32 %v1708, 0.25
      %v1960 = vmul.f32 %v1714, 0.25
      %v1961 = vmul.f32 %v1720, 0.25
      %v1962 = vmul.f32 %v1726, 0.25
      %v1963 = vmul.f32 %v1732, 0.25
      %v1964 = vmul.f32 %v1738, 0.25
      %v1965 = vmul.f32 %v1744, 0.25
      %v1974 = vrot.slane %v1959, 7
      %v1975 = vsel %vm1764, %v1974, %v1958
      %v1976 = vrot.slane %v1960, 6
      %v1977 = vsel %vm1767, %v1976, %v1975
      %v1978 = vrot.slane %v1961, 5
      %v1979 = vsel %vm1770, %v1978, %v1977
      %v1980 = vrot.slane %v1962, 4
      %v1981 = vsel %vm1773, %v1980, %v1979
      %v1982 = vrot.slane %v1963, 3
      %v1983 = vsel %vm1776, %v1982, %v1981
      %v1984 = vrot.slane %v1964, 2
      %v1985 = vsel %vm1779, %v1984, %v1983
      %v1986 = vrot.slane %v1965, 1
      %v1987 = vsel %vm1782, %v1986, %v1985
      %s1989 = scalar_lea.vmem %s214, 192
      %1990 = vst.msk [vmem:[%s1989] sm:$0xff] %vm1785, %v1987
      %v1991 = vsel %vm1770, %v1974, %v1958
      %v1992 = vsel %vm1773, %v1976, %v1991
      %v1993 = vsel %vm1776, %v1978, %v1992
      %v1994 = vsel %vm1779, %v1980, %v1993
      %v1995 = vsel %vm1782, %v1982, %v1994
      %v1996 = vsel %vm1764, %v1986, %v1984
      %s1999 = scalar_lea.vmem %s214, 208
      %2000 = vst.msk [vmem:[%s1999 - $0x2] sm:$0xfc] %vm1796, %v1995
      %2001 = vst.msk [vmem:[%s1999 + $0x6] sm:$0x3] %vm1798, %v1996
      %v2002 = vsel %vm1776, %v1974, %v1958
      %v2003 = vsel %vm1779, %v1976, %v2002
      %v2004 = vsel %vm1782, %v1978, %v2003
      %v2005 = vsel %vm1764, %v1982, %v1980
      %v2006 = vsel %vm1767, %v1984, %v2005
      %v2007 = vsel %vm1770, %v1986, %v2006
      %s2010 = scalar_lea.vmem %s214, 224
      %2011 = vst.msk [vmem:[%s2010 - $0x4] sm:$0xf0] %vm1809, %v2004
      %2012 = vst.msk [vmem:[%s2010 + $0x4] sm:$0xf] %vm1811, %v2007
      %v2013 = vsel %vm1782, %v1974, %v1958
      %v2014 = vsel %vm1764, %v1978, %v1976
      %v2015 = vsel %vm1767, %v1980, %v2014
      %v2016 = vsel %vm1770, %v1982, %v2015
      %v2017 = vsel %vm1773, %v1984, %v2016
      %v2018 = vsel %vm1776, %v1986, %v2017
      %s2021 = scalar_lea.vmem %s214, 240
      %2022 = vst.msk [vmem:[%s2021 - $0x6] sm:$0xc0] %vm1822, %v2013
      %2023 = vst.msk [vmem:[%s2021 + $0x2] sm:$0x3f] %vm1824, %v2018
      %v2024 = vmul.f32 %v1703, 0.25
      %v2025 = vmul.f32 %v1709, 0.25
      %v2026 = vmul.f32 %v1715, 0.25
      %v2027 = vmul.f32 %v1721, 0.25
      %v2028 = vmul.f32 %v1727, 0.25
      %v2029 = vmul.f32 %v1733, 0.25
      %v2030 = vmul.f32 %v1739, 0.25
      %v2031 = vmul.f32 %v1745, 0.25
      %v2040 = vrot.slane %v2025, 7
      %v2041 = vsel %vm1764, %v2040, %v2024
      %v2042 = vrot.slane %v2026, 6
      %v2043 = vsel %vm1767, %v2042, %v2041
      %v2044 = vrot.slane %v2027, 5
      %v2045 = vsel %vm1770, %v2044, %v2043
      %v2046 = vrot.slane %v2028, 4
      %v2047 = vsel %vm1773, %v2046, %v2045
      %v2048 = vrot.slane %v2029, 3
      %v2049 = vsel %vm1776, %v2048, %v2047
      %v2050 = vrot.slane %v2030, 2
      %v2051 = vsel %vm1779, %v2050, %v2049
      %v2052 = vrot.slane %v2031, 1
      %v2053 = vsel %vm1782, %v2052, %v2051
      %s2055 = scalar_lea.vmem %s214, 256
      %2056 = vst.msk [vmem:[%s2055] sm:$0xff] %vm1785, %v2053
      %v2057 = vsel %vm1770, %v2040, %v2024
      %v2058 = vsel %vm1773, %v2042, %v2057
      %v2059 = vsel %vm1776, %v2044, %v2058
      %v2060 = vsel %vm1779, %v2046, %v2059
      %v2061 = vsel %vm1782, %v2048, %v2060
      %v2062 = vsel %vm1764, %v2052, %v2050
      %s2065 = scalar_lea.vmem %s214, 272
      %2066 = vst.msk [vmem:[%s2065 - $0x2] sm:$0xfc] %vm1796, %v2061
      %2067 = vst.msk [vmem:[%s2065 + $0x6] sm:$0x3] %vm1798, %v2062
      %v2068 = vsel %vm1776, %v2040, %v2024
      %v2069 = vsel %vm1779, %v2042, %v2068
      %v2070 = vsel %vm1782, %v2044, %v2069
      %v2071 = vsel %vm1764, %v2048, %v2046
      %v2072 = vsel %vm1767, %v2050, %v2071
      %v2073 = vsel %vm1770, %v2052, %v2072
      %s2076 = scalar_lea.vmem %s214, 288
      %2077 = vst.msk [vmem:[%s2076 - $0x4] sm:$0xf0] %vm1809, %v2070
      %2078 = vst.msk [vmem:[%s2076 + $0x4] sm:$0xf] %vm1811, %v2073
      %v2079 = vsel %vm1782, %v2040, %v2024
      %v2080 = vsel %vm1764, %v2044, %v2042
      %v2081 = vsel %vm1767, %v2046, %v2080
      %v2082 = vsel %vm1770, %v2048, %v2081
      %v2083 = vsel %vm1773, %v2050, %v2082
      %v2084 = vsel %vm1776, %v2052, %v2083
      %s2087 = scalar_lea.vmem %s214, 304
      %2088 = vst.msk [vmem:[%s2087 - $0x6] sm:$0xc0] %vm1822, %v2079
      %2089 = vst.msk [vmem:[%s2087 + $0x2] sm:$0x3f] %vm1824, %v2084
      %v2090 = vmul.f32 %v1704, 0.25
      %v2091 = vmul.f32 %v1710, 0.25
      %v2092 = vmul.f32 %v1716, 0.25
      %v2093 = vmul.f32 %v1722, 0.25
      %v2094 = vmul.f32 %v1728, 0.25
      %v2095 = vmul.f32 %v1734, 0.25
      %v2096 = vmul.f32 %v1740, 0.25
      %v2097 = vmul.f32 %v1746, 0.25
      %v2106 = vrot.slane %v2091, 7
      %v2107 = vsel %vm1764, %v2106, %v2090
      %v2108 = vrot.slane %v2092, 6
      %v2109 = vsel %vm1767, %v2108, %v2107
      %v2110 = vrot.slane %v2093, 5
      %v2111 = vsel %vm1770, %v2110, %v2109
      %v2112 = vrot.slane %v2094, 4
      %v2113 = vsel %vm1773, %v2112, %v2111
      %v2114 = vrot.slane %v2095, 3
      %v2115 = vsel %vm1776, %v2114, %v2113
      %v2116 = vrot.slane %v2096, 2
      %v2117 = vsel %vm1779, %v2116, %v2115
      %v2118 = vrot.slane %v2097, 1
      %v2119 = vsel %vm1782, %v2118, %v2117
      %s2121 = scalar_lea.vmem %s214, 320
      %2122 = vst.msk [vmem:[%s2121] sm:$0xff] %vm1785, %v2119
      %s2123 = scalar_lea.vmem %s197, 128
      %v2124 = vld [vmem:[%s2123] sm:$0xff]
      %v2125 = vld [vmem:[%s2123 + $0x8] sm:$0xff]
      %v2126 = vld [vmem:[%s2123 + $0x10] sm:$0xff]
      %v2127 = vld [vmem:[%s2123 + $0x18] sm:$0xff]
      %v2128 = vld [vmem:[%s2123 + $0x20] sm:$0xff]
      %v2129 = vld [vmem:[%s2123 + $0x28] sm:$0xff]
      %v2130 = vld [vmem:[%s2123 + $0x30] sm:$0xff]
      %v2131 = vld [vmem:[%s2123 + $0x38] sm:$0xff]
      %v2132 = vld [vmem:[%s2123 + $0x40] sm:$0xff]
      %v2133 = vld [vmem:[%s2123 + $0x48] sm:$0xff]
      %v2134 = vld [vmem:[%s2123 + $0x50] sm:$0xff]
      %v2135 = vld [vmem:[%s2123 + $0x58] sm:$0xff]
      %v2136 = vld [vmem:[%s2123 + $0x60] sm:$0xff]
      %v2137 = vld [vmem:[%s2123 + $0x68] sm:$0xff]
      %v2138 = vld [vmem:[%s2123 + $0x70] sm:$0xff]
      %v2139 = vld [vmem:[%s2123 + $0x78] sm:$0xff]
      %s2140 = sadd.s32 %s215, 8
      %s2141 = smul.u32 %s2140, 56
      %s2142 = scalar_lea.vmem %s205, %s2141
      %v2143 = vld [vmem:[%s2142] sm:$0xff]
      %v2144 = vld [vmem:[%s2142 + $0x8] sm:$0xff]
      %v2145 = vld [vmem:[%s2142 + $0x10] sm:$0xff]
      %v2146 = vld [vmem:[%s2142 + $0x18] sm:$0xff]
      %v2147 = vld [vmem:[%s2142 + $0x20] sm:$0xff]
      %v2148 = vld [vmem:[%s2142 + $0x28] sm:$0xff]
      %v2149 = vld [vmem:[%s2142 + $0x30] sm:$0xff]
      %v2150 = vld [vmem:[%s2142 + $0x38] sm:$0xff]
      %v2151 = vld [vmem:[%s2142 + $0x40] sm:$0xff]
      %v2152 = vld [vmem:[%s2142 + $0x48] sm:$0xff]
      %v2153 = vld [vmem:[%s2142 + $0x50] sm:$0xff]
      %v2154 = vld [vmem:[%s2142 + $0x58] sm:$0xff]
      %v2155 = vld [vmem:[%s2142 + $0x60] sm:$0xff]
      %v2156 = vld [vmem:[%s2142 + $0x68] sm:$0xff]
      %v2157 = vld [vmem:[%s2142 + $0x70] sm:$0xff]
      %v2158 = vld [vmem:[%s2142 + $0x78] sm:$0xff]
      %v2159 = vld [vmem:[%s2142 + $0x80] sm:$0xff]
      %v2160 = vld [vmem:[%s2142 + $0x88] sm:$0xff]
      %v2161 = vld [vmem:[%s2142 + $0x90] sm:$0xff]
      %v2162 = vld [vmem:[%s2142 + $0x98] sm:$0xff]
      %v2163 = vld [vmem:[%s2142 + $0xa0] sm:$0xff]
      %v2164 = vld [vmem:[%s2142 + $0xa8] sm:$0xff]
      %v2165 = vld [vmem:[%s2142 + $0xb0] sm:$0xff]
      %v2166 = vld [vmem:[%s2142 + $0xb8] sm:$0xff]
      %v2167 = vld [vmem:[%s2142 + $0xc0] sm:$0xff]
      %v2168 = vld [vmem:[%s2142 + $0xc8] sm:$0xff]
      %v2169 = vld [vmem:[%s2142 + $0xd0] sm:$0xff]
      %v2170 = vld [vmem:[%s2142 + $0xd8] sm:$0xff]
      %v2171 = vld [vmem:[%s2142 + $0xe0] sm:$0xff]
      %v2172 = vld [vmem:[%s2142 + $0xe8] sm:$0xff]
      %v2173 = vld [vmem:[%s2142 + $0xf0] sm:$0xff]
      %v2174 = vld [vmem:[%s2142 + $0xf8] sm:$0xff]
      %v2175 = vld [vmem:[%s2142 + $0x100] sm:$0xff]
      %v2176 = vld [vmem:[%s2142 + $0x108] sm:$0xff]
      %v2177 = vld [vmem:[%s2142 + $0x110] sm:$0xff]
      %v2178 = vld [vmem:[%s2142 + $0x118] sm:$0xff]
      %v2179 = vld [vmem:[%s2142 + $0x120] sm:$0xff]
      %v2180 = vld [vmem:[%s2142 + $0x128] sm:$0xff]
      %v2181 = vld [vmem:[%s2142 + $0x130] sm:$0xff]
      %v2182 = vld [vmem:[%s2142 + $0x138] sm:$0xff]
      %v2183 = vld [vmem:[%s2142 + $0x140] sm:$0xff]
      %v2184 = vld [vmem:[%s2142 + $0x148] sm:$0xff]
      %v2185 = vld [vmem:[%s2142 + $0x150] sm:$0xff]
      %v2186 = vld [vmem:[%s2142 + $0x158] sm:$0xff]
      %v2187 = vld [vmem:[%s2142 + $0x160] sm:$0xff]
      %v2188 = vld [vmem:[%s2142 + $0x168] sm:$0xff]
      %v2189 = vld [vmem:[%s2142 + $0x170] sm:$0xff]
      %v2190 = vld [vmem:[%s2142 + $0x178] sm:$0xff]
      %v2191 = vld [vmem:[%s2142 + $0x180] sm:$0xff]
      %v2192 = vld [vmem:[%s2142 + $0x188] sm:$0xff]
      %v2193 = vld [vmem:[%s2142 + $0x190] sm:$0xff]
      %v2194 = vld [vmem:[%s2142 + $0x198] sm:$0xff]
      %v2195 = vld [vmem:[%s2142 + $0x1a0] sm:$0xff]
      %v2196 = vld [vmem:[%s2142 + $0x1a8] sm:$0xff]
      %v2197 = vld [vmem:[%s2142 + $0x1b0] sm:$0xff]
      %v2198 = vld [vmem:[%s2142 + $0x1b8] sm:$0xff]
      %v2200 = vsel %vm303, %v2143, 0
      %v2203 = vsel %vm303, %v2144, 0
      %v2206 = vsel %vm303, %v2145, 0
      %v2209 = vsel %vm303, %v2146, 0
      %v2212 = vsel %vm303, %v2147, 0
      %v2215 = vsel %vm303, %v2148, 0
      %v2218 = vsel %vm303, %v2149, 0
      %v2221 = vsel %vm303, %v2124, 0
      %v2224 = vsel %vm303, %v2125, 0
      %2226 = vmatpush.xpose.msra.mxu0 0.0
      %2227 = vmatpush.xpose.msra.mxu0 0.0
      %2228 = vmatpush.xpose.msra.mxu0 0.0
      %2229 = vmatpush.xpose.msra.mxu0 0.0
      %2230 = vmatpush.xpose.msra.mxu0 0.0
      %2231 = vmatpush.xpose.msra.mxu0 0.0
      %2232 = vmatpush.xpose.msra.mxu0 0.0
      %2233 = vmatpush.xpose.msra.mxu0 0.0
      %2234 = vmatpush.xpose.msra.mxu0 0.0
      %2235 = vmatpush.xpose.msra.mxu0 0.0
      %2236 = vmatpush.xpose.msra.mxu0 0.0
      %2237 = vmatpush.xpose.msra.mxu0 0.0
      %2238 = vmatpush.xpose.msra.mxu0 0.0
      %2239 = vmatpush.xpose.msra.mxu0 0.0
      %2240 = vmatpush.xpose.msra.mxu0 %v2224
      %2241 = vmatpush.xpose.msra.mxu0 %v2221
      %2242 = vmatmul.f32.gmra.mxu0 %v2200
      %v2243 = vpop.f32.mrf.mxu0
      %v2244 = vadd.f32 0.0, %v2243
      %2245 = vmatmul.f32.gmra.mxu0 %v2203
      %v2246 = vpop.f32.mrf.mxu0
      %v2247 = vadd.f32 0.0, %v2246
      %2248 = vmatmul.f32.gmra.mxu0 %v2206
      %v2249 = vpop.f32.mrf.mxu0
      %v2250 = vadd.f32 0.0, %v2249
      %2251 = vmatmul.f32.gmra.mxu0 %v2209
      %v2252 = vpop.f32.mrf.mxu0
      %v2253 = vadd.f32 0.0, %v2252
      %2254 = vmatmul.f32.gmra.mxu0 %v2212
      %v2255 = vpop.f32.mrf.mxu0
      %v2256 = vadd.f32 0.0, %v2255
      %2257 = vmatmul.f32.gmra.mxu0 %v2215
      %v2258 = vpop.f32.mrf.mxu0
      %v2259 = vadd.f32 0.0, %v2258
      %2260 = vmatmul.f32.gmra.mxu0 %v2218
      %v2261 = vpop.f32.mrf.mxu0
      %v2262 = vadd.f32 0.0, %v2261
      %2263 = vdwg.mxu0
      %v2265 = vsel %vm303, %v2150, 0
      %v2268 = vsel %vm303, %v2151, 0
      %v2271 = vsel %vm303, %v2152, 0
      %v2274 = vsel %vm303, %v2153, 0
      %v2277 = vsel %vm303, %v2154, 0
      %v2280 = vsel %vm303, %v2155, 0
      %v2283 = vsel %vm303, %v2156, 0
      %v2286 = vsel %vm303, %v2126, 0
      %v2289 = vsel %vm303, %v2127, 0
      %2291 = vmatpush.xpose.msra.mxu0 0.0
      %2292 = vmatpush.xpose.msra.mxu0 0.0
      %2293 = vmatpush.xpose.msra.mxu0 0.0
      %2294 = vmatpush.xpose.msra.mxu0 0.0
      %2295 = vmatpush.xpose.msra.mxu0 0.0
      %2296 = vmatpush.xpose.msra.mxu0 0.0
      %2297 = vmatpush.xpose.msra.mxu0 0.0
      %2298 = vmatpush.xpose.msra.mxu0 0.0
      %2299 = vmatpush.xpose.msra.mxu0 0.0
      %2300 = vmatpush.xpose.msra.mxu0 0.0
      %2301 = vmatpush.xpose.msra.mxu0 0.0
      %2302 = vmatpush.xpose.msra.mxu0 0.0
      %2303 = vmatpush.xpose.msra.mxu0 0.0
      %2304 = vmatpush.xpose.msra.mxu0 0.0
      %2305 = vmatpush.xpose.msra.mxu0 %v2289
      %2306 = vmatpush.xpose.msra.mxu0 %v2286
      %2307 = vmatmul.f32.gmra.mxu0 %v2265
      %v2308 = vpop.f32.mrf.mxu0
      %v2309 = vadd.f32 0.0, %v2308
      %2310 = vmatmul.f32.gmra.mxu0 %v2268
      %v2311 = vpop.f32.mrf.mxu0
      %v2312 = vadd.f32 0.0, %v2311
      %2313 = vmatmul.f32.gmra.mxu0 %v2271
      %v2314 = vpop.f32.mrf.mxu0
      %v2315 = vadd.f32 0.0, %v2314
      %2316 = vmatmul.f32.gmra.mxu0 %v2274
      %v2317 = vpop.f32.mrf.mxu0
      %v2318 = vadd.f32 0.0, %v2317
      %2319 = vmatmul.f32.gmra.mxu0 %v2277
      %v2320 = vpop.f32.mrf.mxu0
      %v2321 = vadd.f32 0.0, %v2320
      %2322 = vmatmul.f32.gmra.mxu0 %v2280
      %v2323 = vpop.f32.mrf.mxu0
      %v2324 = vadd.f32 0.0, %v2323
      %2325 = vmatmul.f32.gmra.mxu0 %v2283
      %v2326 = vpop.f32.mrf.mxu0
      %v2327 = vadd.f32 0.0, %v2326
      %2328 = vdwg.mxu0
      %v2330 = vsel %vm303, %v2157, 0
      %v2333 = vsel %vm303, %v2158, 0
      %v2336 = vsel %vm303, %v2159, 0
      %v2339 = vsel %vm303, %v2160, 0
      %v2342 = vsel %vm303, %v2161, 0
      %v2345 = vsel %vm303, %v2162, 0
      %v2348 = vsel %vm303, %v2163, 0
      %v2351 = vsel %vm303, %v2128, 0
      %v2354 = vsel %vm303, %v2129, 0
      %2356 = vmatpush.xpose.msra.mxu0 0.0
      %2357 = vmatpush.xpose.msra.mxu0 0.0
      %2358 = vmatpush.xpose.msra.mxu0 0.0
      %2359 = vmatpush.xpose.msra.mxu0 0.0
      %2360 = vmatpush.xpose.msra.mxu0 0.0
      %2361 = vmatpush.xpose.msra.mxu0 0.0
      %2362 = vmatpush.xpose.msra.mxu0 0.0
      %2363 = vmatpush.xpose.msra.mxu0 0.0
      %2364 = vmatpush.xpose.msra.mxu0 0.0
      %2365 = vmatpush.xpose.msra.mxu0 0.0
      %2366 = vmatpush.xpose.msra.mxu0 0.0
      %2367 = vmatpush.xpose.msra.mxu0 0.0
      %2368 = vmatpush.xpose.msra.mxu0 0.0
      %2369 = vmatpush.xpose.msra.mxu0 0.0
      %2370 = vmatpush.xpose.msra.mxu0 %v2354
      %2371 = vmatpush.xpose.msra.mxu0 %v2351
      %2372 = vmatmul.f32.gmra.mxu0 %v2330
      %v2373 = vpop.f32.mrf.mxu0
      %v2374 = vadd.f32 0.0, %v2373
      %2375 = vmatmul.f32.gmra.mxu0 %v2333
      %v2376 = vpop.f32.mrf.mxu0
      %v2377 = vadd.f32 0.0, %v2376
      %2378 = vmatmul.f32.gmra.mxu0 %v2336
      %v2379 = vpop.f32.mrf.mxu0
      %v2380 = vadd.f32 0.0, %v2379
      %2381 = vmatmul.f32.gmra.mxu0 %v2339
      %v2382 = vpop.f32.mrf.mxu0
      %v2383 = vadd.f32 0.0, %v2382
      %2384 = vmatmul.f32.gmra.mxu0 %v2342
      %v2385 = vpop.f32.mrf.mxu0
      %v2386 = vadd.f32 0.0, %v2385
      %2387 = vmatmul.f32.gmra.mxu0 %v2345
      %v2388 = vpop.f32.mrf.mxu0
      %v2389 = vadd.f32 0.0, %v2388
      %2390 = vmatmul.f32.gmra.mxu0 %v2348
      %v2391 = vpop.f32.mrf.mxu0
      %v2392 = vadd.f32 0.0, %v2391
      %2393 = vdwg.mxu0
      %v2395 = vsel %vm303, %v2164, 0
      %v2398 = vsel %vm303, %v2165, 0
      %v2401 = vsel %vm303, %v2166, 0
      %v2404 = vsel %vm303, %v2167, 0
      %v2407 = vsel %vm303, %v2168, 0
      %v2410 = vsel %vm303, %v2169, 0
      %v2413 = vsel %vm303, %v2170, 0
      %v2416 = vsel %vm303, %v2130, 0
      %v2419 = vsel %vm303, %v2131, 0
      %2421 = vmatpush.xpose.msra.mxu0 0.0
      %2422 = vmatpush.xpose.msra.mxu0 0.0
      %2423 = vmatpush.xpose.msra.mxu0 0.0
      %2424 = vmatpush.xpose.msra.mxu0 0.0
      %2425 = vmatpush.xpose.msra.mxu0 0.0
      %2426 = vmatpush.xpose.msra.mxu0 0.0
      %2427 = vmatpush.xpose.msra.mxu0 0.0
      %2428 = vmatpush.xpose.msra.mxu0 0.0
      %2429 = vmatpush.xpose.msra.mxu0 0.0
      %2430 = vmatpush.xpose.msra.mxu0 0.0
      %2431 = vmatpush.xpose.msra.mxu0 0.0
      %2432 = vmatpush.xpose.msra.mxu0 0.0
      %2433 = vmatpush.xpose.msra.mxu0 0.0
      %2434 = vmatpush.xpose.msra.mxu0 0.0
      %2435 = vmatpush.xpose.msra.mxu0 %v2419
      %2436 = vmatpush.xpose.msra.mxu0 %v2416
      %2437 = vmatmul.f32.gmra.mxu0 %v2395
      %v2438 = vpop.f32.mrf.mxu0
      %v2439 = vadd.f32 0.0, %v2438
      %2440 = vmatmul.f32.gmra.mxu0 %v2398
      %v2441 = vpop.f32.mrf.mxu0
      %v2442 = vadd.f32 0.0, %v2441
      %2443 = vmatmul.f32.gmra.mxu0 %v2401
      %v2444 = vpop.f32.mrf.mxu0
      %v2445 = vadd.f32 0.0, %v2444
      %2446 = vmatmul.f32.gmra.mxu0 %v2404
      %v2447 = vpop.f32.mrf.mxu0
      %v2448 = vadd.f32 0.0, %v2447
      %2449 = vmatmul.f32.gmra.mxu0 %v2407
      %v2450 = vpop.f32.mrf.mxu0
      %v2451 = vadd.f32 0.0, %v2450
      %2452 = vmatmul.f32.gmra.mxu0 %v2410
      %v2453 = vpop.f32.mrf.mxu0
      %v2454 = vadd.f32 0.0, %v2453
      %2455 = vmatmul.f32.gmra.mxu0 %v2413
      %v2456 = vpop.f32.mrf.mxu0
      %v2457 = vadd.f32 0.0, %v2456
      %2458 = vdwg.mxu0
      %v2460 = vsel %vm303, %v2171, 0
      %v2463 = vsel %vm303, %v2172, 0
      %v2466 = vsel %vm303, %v2173, 0
      %v2469 = vsel %vm303, %v2174, 0
      %v2472 = vsel %vm303, %v2175, 0
      %v2475 = vsel %vm303, %v2176, 0
      %v2478 = vsel %vm303, %v2177, 0
      %v2481 = vsel %vm303, %v2132, 0
      %v2484 = vsel %vm303, %v2133, 0
      %2486 = vmatpush.xpose.msra.mxu0 0.0
      %2487 = vmatpush.xpose.msra.mxu0 0.0
      %2488 = vmatpush.xpose.msra.mxu0 0.0
      %2489 = vmatpush.xpose.msra.mxu0 0.0
      %2490 = vmatpush.xpose.msra.mxu0 0.0
      %2491 = vmatpush.xpose.msra.mxu0 0.0
      %2492 = vmatpush.xpose.msra.mxu0 0.0
      %2493 = vmatpush.xpose.msra.mxu0 0.0
      %2494 = vmatpush.xpose.msra.mxu0 0.0
      %2495 = vmatpush.xpose.msra.mxu0 0.0
      %2496 = vmatpush.xpose.msra.mxu0 0.0
      %2497 = vmatpush.xpose.msra.mxu0 0.0
      %2498 = vmatpush.xpose.msra.mxu0 0.0
      %2499 = vmatpush.xpose.msra.mxu0 0.0
      %2500 = vmatpush.xpose.msra.mxu0 %v2484
      %2501 = vmatpush.xpose.msra.mxu0 %v2481
      %2502 = vmatmul.f32.gmra.mxu0 %v2460
      %v2503 = vpop.f32.mrf.mxu0
      %v2504 = vadd.f32 0.0, %v2503
      %2505 = vmatmul.f32.gmra.mxu0 %v2463
      %v2506 = vpop.f32.mrf.mxu0
      %v2507 = vadd.f32 0.0, %v2506
      %2508 = vmatmul.f32.gmra.mxu0 %v2466
      %v2509 = vpop.f32.mrf.mxu0
      %v2510 = vadd.f32 0.0, %v2509
      %2511 = vmatmul.f32.gmra.mxu0 %v2469
      %v2512 = vpop.f32.mrf.mxu0
      %v2513 = vadd.f32 0.0, %v2512
      %2514 = vmatmul.f32.gmra.mxu0 %v2472
      %v2515 = vpop.f32.mrf.mxu0
      %v2516 = vadd.f32 0.0, %v2515
      %2517 = vmatmul.f32.gmra.mxu0 %v2475
      %v2518 = vpop.f32.mrf.mxu0
      %v2519 = vadd.f32 0.0, %v2518
      %2520 = vmatmul.f32.gmra.mxu0 %v2478
      %v2521 = vpop.f32.mrf.mxu0
      %v2522 = vadd.f32 0.0, %v2521
      %2523 = vdwg.mxu0
      %v2525 = vsel %vm303, %v2178, 0
      %v2528 = vsel %vm303, %v2179, 0
      %v2531 = vsel %vm303, %v2180, 0
      %v2534 = vsel %vm303, %v2181, 0
      %v2537 = vsel %vm303, %v2182, 0
      %v2540 = vsel %vm303, %v2183, 0
      %v2543 = vsel %vm303, %v2184, 0
      %v2546 = vsel %vm303, %v2134, 0
      %v2549 = vsel %vm303, %v2135, 0
      %2551 = vmatpush.xpose.msra.mxu0 0.0
      %2552 = vmatpush.xpose.msra.mxu0 0.0
      %2553 = vmatpush.xpose.msra.mxu0 0.0
      %2554 = vmatpush.xpose.msra.mxu0 0.0
      %2555 = vmatpush.xpose.msra.mxu0 0.0
      %2556 = vmatpush.xpose.msra.mxu0 0.0
      %2557 = vmatpush.xpose.msra.mxu0 0.0
      %2558 = vmatpush.xpose.msra.mxu0 0.0
      %2559 = vmatpush.xpose.msra.mxu0 0.0
      %2560 = vmatpush.xpose.msra.mxu0 0.0
      %2561 = vmatpush.xpose.msra.mxu0 0.0
      %2562 = vmatpush.xpose.msra.mxu0 0.0
      %2563 = vmatpush.xpose.msra.mxu0 0.0
      %2564 = vmatpush.xpose.msra.mxu0 0.0
      %2565 = vmatpush.xpose.msra.mxu0 %v2549
      %2566 = vmatpush.xpose.msra.mxu0 %v2546
      %2567 = vmatmul.f32.gmra.mxu0 %v2525
      %v2568 = vpop.f32.mrf.mxu0
      %v2569 = vadd.f32 0.0, %v2568
      %2570 = vmatmul.f32.gmra.mxu0 %v2528
      %v2571 = vpop.f32.mrf.mxu0
      %v2572 = vadd.f32 0.0, %v2571
      %2573 = vmatmul.f32.gmra.mxu0 %v2531
      %v2574 = vpop.f32.mrf.mxu0
      %v2575 = vadd.f32 0.0, %v2574
      %2576 = vmatmul.f32.gmra.mxu0 %v2534
      %v2577 = vpop.f32.mrf.mxu0
      %v2578 = vadd.f32 0.0, %v2577
      %2579 = vmatmul.f32.gmra.mxu0 %v2537
      %v2580 = vpop.f32.mrf.mxu0
      %v2581 = vadd.f32 0.0, %v2580
      %2582 = vmatmul.f32.gmra.mxu0 %v2540
      %v2583 = vpop.f32.mrf.mxu0
      %v2584 = vadd.f32 0.0, %v2583
      %2585 = vmatmul.f32.gmra.mxu0 %v2543
      %v2586 = vpop.f32.mrf.mxu0
      %v2587 = vadd.f32 0.0, %v2586
      %2588 = vdwg.mxu0
      %v2590 = vsel %vm303, %v2185, 0
      %v2593 = vsel %vm303, %v2186, 0
      %v2596 = vsel %vm303, %v2187, 0
      %v2599 = vsel %vm303, %v2188, 0
      %v2602 = vsel %vm303, %v2189, 0
      %v2605 = vsel %vm303, %v2190, 0
      %v2608 = vsel %vm303, %v2191, 0
      %v2611 = vsel %vm303, %v2136, 0
      %v2614 = vsel %vm303, %v2137, 0
      %2616 = vmatpush.xpose.msra.mxu0 0.0
      %2617 = vmatpush.xpose.msra.mxu0 0.0
      %2618 = vmatpush.xpose.msra.mxu0 0.0
      %2619 = vmatpush.xpose.msra.mxu0 0.0
      %2620 = vmatpush.xpose.msra.mxu0 0.0
      %2621 = vmatpush.xpose.msra.mxu0 0.0
      %2622 = vmatpush.xpose.msra.mxu0 0.0
      %2623 = vmatpush.xpose.msra.mxu0 0.0
      %2624 = vmatpush.xpose.msra.mxu0 0.0
      %2625 = vmatpush.xpose.msra.mxu0 0.0
      %2626 = vmatpush.xpose.msra.mxu0 0.0
      %2627 = vmatpush.xpose.msra.mxu0 0.0
      %2628 = vmatpush.xpose.msra.mxu0 0.0
      %2629 = vmatpush.xpose.msra.mxu0 0.0
      %2630 = vmatpush.xpose.msra.mxu0 %v2614
      %2631 = vmatpush.xpose.msra.mxu0 %v2611
      %2632 = vmatmul.f32.gmra.mxu0 %v2590
      %v2633 = vpop.f32.mrf.mxu0
      %v2634 = vadd.f32 0.0, %v2633
      %2635 = vmatmul.f32.gmra.mxu0 %v2593
      %v2636 = vpop.f32.mrf.mxu0
      %v2637 = vadd.f32 0.0, %v2636
      %2638 = vmatmul.f32.gmra.mxu0 %v2596
      %v2639 = vpop.f32.mrf.mxu0
      %v2640 = vadd.f32 0.0, %v2639
      %2641 = vmatmul.f32.gmra.mxu0 %v2599
      %v2642 = vpop.f32.mrf.mxu0
      %v2643 = vadd.f32 0.0, %v2642
      %2644 = vmatmul.f32.gmra.mxu0 %v2602
      %v2645 = vpop.f32.mrf.mxu0
      %v2646 = vadd.f32 0.0, %v2645
      %2647 = vmatmul.f32.gmra.mxu0 %v2605
      %v2648 = vpop.f32.mrf.mxu0
      %v2649 = vadd.f32 0.0, %v2648
      %2650 = vmatmul.f32.gmra.mxu0 %v2608
      %v2651 = vpop.f32.mrf.mxu0
      %v2652 = vadd.f32 0.0, %v2651
      %2653 = vdwg.mxu0
      %v2655 = vsel %vm303, %v2192, 0
      %v2658 = vsel %vm303, %v2193, 0
      %v2661 = vsel %vm303, %v2194, 0
      %v2664 = vsel %vm303, %v2195, 0
      %v2667 = vsel %vm303, %v2196, 0
      %v2670 = vsel %vm303, %v2197, 0
      %v2673 = vsel %vm303, %v2198, 0
      %v2676 = vsel %vm303, %v2138, 0
      %v2679 = vsel %vm303, %v2139, 0
      %2681 = vmatpush.xpose.msra.mxu0 0.0
      %2682 = vmatpush.xpose.msra.mxu0 0.0
      %2683 = vmatpush.xpose.msra.mxu0 0.0
      %2684 = vmatpush.xpose.msra.mxu0 0.0
      %2685 = vmatpush.xpose.msra.mxu0 0.0
      %2686 = vmatpush.xpose.msra.mxu0 0.0
      %2687 = vmatpush.xpose.msra.mxu0 0.0
      %2688 = vmatpush.xpose.msra.mxu0 0.0
      %2689 = vmatpush.xpose.msra.mxu0 0.0
      %2690 = vmatpush.xpose.msra.mxu0 0.0
      %2691 = vmatpush.xpose.msra.mxu0 0.0
      %2692 = vmatpush.xpose.msra.mxu0 0.0
      %2693 = vmatpush.xpose.msra.mxu0 0.0
      %2694 = vmatpush.xpose.msra.mxu0 0.0
      %2695 = vmatpush.xpose.msra.mxu0 %v2679
      %2696 = vmatpush.xpose.msra.mxu0 %v2676
      %2697 = vmatmul.f32.gmra.mxu0 %v2655
      %v2698 = vpop.f32.mrf.mxu0
      %v2699 = vadd.f32 0.0, %v2698
      %2700 = vmatmul.f32.gmra.mxu0 %v2658
      %v2701 = vpop.f32.mrf.mxu0
      %v2702 = vadd.f32 0.0, %v2701
      %2703 = vmatmul.f32.gmra.mxu0 %v2661
      %v2704 = vpop.f32.mrf.mxu0
      %v2705 = vadd.f32 0.0, %v2704
      %2706 = vmatmul.f32.gmra.mxu0 %v2664
      %v2707 = vpop.f32.mrf.mxu0
      %v2708 = vadd.f32 0.0, %v2707
      %2709 = vmatmul.f32.gmra.mxu0 %v2667
      %v2710 = vpop.f32.mrf.mxu0
      %v2711 = vadd.f32 0.0, %v2710
      %2712 = vmatmul.f32.gmra.mxu0 %v2670
      %v2713 = vpop.f32.mrf.mxu0
      %v2714 = vadd.f32 0.0, %v2713
      %2715 = vmatmul.f32.gmra.mxu0 %v2673
      %v2716 = vpop.f32.mrf.mxu0
      %v2717 = vadd.f32 0.0, %v2716
      %2718 = vdwg.mxu0
      %v2775 = vrot.slane %v2244, 1
      %v2776 = vrot.slane %v2247, 1
      %v2777 = vsel %vm880, %v2775, %v2776
      %v2778 = vrot.slane %v2250, 1
      %v2779 = vsel %vm880, %v2776, %v2778
      %v2780 = vrot.slane %v2253, 1
      %v2781 = vsel %vm880, %v2778, %v2780
      %v2782 = vrot.slane %v2256, 1
      %v2783 = vsel %vm880, %v2780, %v2782
      %v2784 = vrot.slane %v2259, 1
      %v2785 = vsel %vm880, %v2782, %v2784
      %v2786 = vrot.slane %v2262, 1
      %v2787 = vsel %vm880, %v2784, %v2786
      %v2788 = vrot.slane %v2309, 1
      %v2789 = vrot.slane %v2312, 1
      %v2790 = vsel %vm880, %v2788, %v2789
      %v2791 = vrot.slane %v2315, 1
      %v2792 = vsel %vm880, %v2789, %v2791
      %v2793 = vrot.slane %v2318, 1
      %v2794 = vsel %vm880, %v2791, %v2793
      %v2795 = vrot.slane %v2321, 1
      %v2796 = vsel %vm880, %v2793, %v2795
      %v2797 = vrot.slane %v2324, 1
      %v2798 = vsel %vm880, %v2795, %v2797
      %v2799 = vrot.slane %v2327, 1
      %v2800 = vsel %vm880, %v2797, %v2799
      %v2801 = vrot.slane %v2374, 1
      %v2802 = vrot.slane %v2377, 1
      %v2803 = vsel %vm880, %v2801, %v2802
      %v2804 = vrot.slane %v2380, 1
      %v2805 = vsel %vm880, %v2802, %v2804
      %v2806 = vrot.slane %v2383, 1
      %v2807 = vsel %vm880, %v2804, %v2806
      %v2808 = vrot.slane %v2386, 1
      %v2809 = vsel %vm880, %v2806, %v2808
      %v2810 = vrot.slane %v2389, 1
      %v2811 = vsel %vm880, %v2808, %v2810
      %v2812 = vrot.slane %v2392, 1
      %v2813 = vsel %vm880, %v2810, %v2812
      %v2814 = vrot.slane %v2439, 1
      %v2815 = vrot.slane %v2442, 1
      %v2816 = vsel %vm880, %v2814, %v2815
      %v2817 = vrot.slane %v2445, 1
      %v2818 = vsel %vm880, %v2815, %v2817
      %v2819 = vrot.slane %v2448, 1
      %v2820 = vsel %vm880, %v2817, %v2819
      %v2821 = vrot.slane %v2451, 1
      %v2822 = vsel %vm880, %v2819, %v2821
      %v2823 = vrot.slane %v2454, 1
      %v2824 = vsel %vm880, %v2821, %v2823
      %v2825 = vrot.slane %v2457, 1
      %v2826 = vsel %vm880, %v2823, %v2825
      %v2827 = vrot.slane %v2504, 1
      %v2828 = vrot.slane %v2507, 1
      %v2829 = vsel %vm880, %v2827, %v2828
      %v2830 = vrot.slane %v2510, 1
      %v2831 = vsel %vm880, %v2828, %v2830
      %v2832 = vrot.slane %v2513, 1
      %v2833 = vsel %vm880, %v2830, %v2832
      %v2834 = vrot.slane %v2516, 1
      %v2835 = vsel %vm880, %v2832, %v2834
      %v2836 = vrot.slane %v2519, 1
      %v2837 = vsel %vm880, %v2834, %v2836
      %v2838 = vrot.slane %v2522, 1
      %v2839 = vsel %vm880, %v2836, %v2838
      %v2840 = vrot.slane %v2569, 1
      %v2841 = vrot.slane %v2572, 1
      %v2842 = vsel %vm880, %v2840, %v2841
      %v2843 = vrot.slane %v2575, 1
      %v2844 = vsel %vm880, %v2841, %v2843
      %v2845 = vrot.slane %v2578, 1
      %v2846 = vsel %vm880, %v2843, %v2845
      %v2847 = vrot.slane %v2581, 1
      %v2848 = vsel %vm880, %v2845, %v2847
      %v2849 = vrot.slane %v2584, 1
      %v2850 = vsel %vm880, %v2847, %v2849
      %v2851 = vrot.slane %v2587, 1
      %v2852 = vsel %vm880, %v2849, %v2851
      %v2853 = vrot.slane %v2634, 1
      %v2854 = vrot.slane %v2637, 1
      %v2855 = vsel %vm880, %v2853, %v2854
      %v2856 = vrot.slane %v2640, 1
      %v2857 = vsel %vm880, %v2854, %v2856
      %v2858 = vrot.slane %v2643, 1
      %v2859 = vsel %vm880, %v2856, %v2858
      %v2860 = vrot.slane %v2646, 1
      %v2861 = vsel %vm880, %v2858, %v2860
      %v2862 = vrot.slane %v2649, 1
      %v2863 = vsel %vm880, %v2860, %v2862
      %v2864 = vrot.slane %v2652, 1
      %v2865 = vsel %vm880, %v2862, %v2864
      %v2866 = vrot.slane %v2699, 1
      %v2867 = vrot.slane %v2702, 1
      %v2868 = vsel %vm880, %v2866, %v2867
      %v2869 = vrot.slane %v2705, 1
      %v2870 = vsel %vm880, %v2867, %v2869
      %v2871 = vrot.slane %v2708, 1
      %v2872 = vsel %vm880, %v2869, %v2871
      %v2873 = vrot.slane %v2711, 1
      %v2874 = vsel %vm880, %v2871, %v2873
      %v2875 = vrot.slane %v2714, 1
      %v2876 = vsel %vm880, %v2873, %v2875
      %v2877 = vrot.slane %v2717, 1
      %v2878 = vsel %vm880, %v2875, %v2877
      %v2943 = vsel %vm880, %v2786, %v2775
      %v2944 = vsel %vm880, %v2799, %v2788
      %v2945 = vsel %vm880, %v2812, %v2801
      %v2946 = vsel %vm880, %v2825, %v2814
      %v2947 = vsel %vm880, %v2838, %v2827
      %v2948 = vsel %vm880, %v2851, %v2840
      %v2949 = vsel %vm880, %v2864, %v2853
      %v2950 = vsel %vm880, %v2877, %v2866
      %v2951 = vsel %vm1058, %v2777, %v2244
      %v2952 = vsel %vm1058, %v2779, %v2247
      %v2953 = vsel %vm1058, %v2781, %v2250
      %v2954 = vsel %vm1058, %v2783, %v2253
      %v2955 = vsel %vm1058, %v2785, %v2256
      %v2956 = vsel %vm1058, %v2787, %v2259
      %v2957 = vsel %vm1058, %v2943, %v2262
      %v2958 = vsel %vm1058, %v2790, %v2309
      %v2959 = vsel %vm1058, %v2792, %v2312
      %v2960 = vsel %vm1058, %v2794, %v2315
      %v2961 = vsel %vm1058, %v2796, %v2318
      %v2962 = vsel %vm1058, %v2798, %v2321
      %v2963 = vsel %vm1058, %v2800, %v2324
      %v2964 = vsel %vm1058, %v2944, %v2327
      %v2965 = vsel %vm1058, %v2803, %v2374
      %v2966 = vsel %vm1058, %v2805, %v2377
      %v2967 = vsel %vm1058, %v2807, %v2380
      %v2968 = vsel %vm1058, %v2809, %v2383
      %v2969 = vsel %vm1058, %v2811, %v2386
      %v2970 = vsel %vm1058, %v2813, %v2389
      %v2971 = vsel %vm1058, %v2945, %v2392
      %v2972 = vsel %vm1058, %v2816, %v2439
      %v2973 = vsel %vm1058, %v2818, %v2442
      %v2974 = vsel %vm1058, %v2820, %v2445
      %v2975 = vsel %vm1058, %v2822, %v2448
      %v2976 = vsel %vm1058, %v2824, %v2451
      %v2977 = vsel %vm1058, %v2826, %v2454
      %v2978 = vsel %vm1058, %v2946, %v2457
      %v2979 = vsel %vm1058, %v2829, %v2504
      %v2980 = vsel %vm1058, %v2831, %v2507
      %v2981 = vsel %vm1058, %v2833, %v2510
      %v2982 = vsel %vm1058, %v2835, %v2513
      %v2983 = vsel %vm1058, %v2837, %v2516
      %v2984 = vsel %vm1058, %v2839, %v2519
      %v2985 = vsel %vm1058, %v2947, %v2522
      %v2986 = vsel %vm1058, %v2842, %v2569
      %v2987 = vsel %vm1058, %v2844, %v2572
      %v2988 = vsel %vm1058, %v2846, %v2575
      %v2989 = vsel %vm1058, %v2848, %v2578
      %v2990 = vsel %vm1058, %v2850, %v2581
      %v2991 = vsel %vm1058, %v2852, %v2584
      %v2992 = vsel %vm1058, %v2948, %v2587
      %v2993 = vsel %vm1058, %v2855, %v2634
      %v2994 = vsel %vm1058, %v2857, %v2637
      %v2995 = vsel %vm1058, %v2859, %v2640
      %v2996 = vsel %vm1058, %v2861, %v2643
      %v2997 = vsel %vm1058, %v2863, %v2646
      %v2998 = vsel %vm1058, %v2865, %v2649
      %v2999 = vsel %vm1058, %v2949, %v2652
      %v3000 = vsel %vm1058, %v2868, %v2699
      %v3001 = vsel %vm1058, %v2870, %v2702
      %v3002 = vsel %vm1058, %v2872, %v2705
      %v3003 = vsel %vm1058, %v2874, %v2708
      %v3004 = vsel %vm1058, %v2876, %v2711
      %v3005 = vsel %vm1058, %v2878, %v2714
      %v3006 = vsel %vm1058, %v2950, %v2717
      %v3063 = vrot.slane %v2951, 2
      %v3064 = vrot.slane %v2952, 2
      %v3065 = vsel %vm1171, %v3063, %v3064
      %v3066 = vrot.slane %v2953, 2
      %v3067 = vsel %vm1171, %v3064, %v3066
      %v3068 = vrot.slane %v2954, 2
      %v3069 = vsel %vm1171, %v3066, %v3068
      %v3070 = vrot.slane %v2955, 2
      %v3071 = vsel %vm1171, %v3068, %v3070
      %v3072 = vrot.slane %v2956, 2
      %v3073 = vsel %vm1171, %v3070, %v3072
      %v3074 = vrot.slane %v2957, 2
      %v3075 = vsel %vm1171, %v3072, %v3074
      %v3076 = vrot.slane %v2958, 2
      %v3077 = vrot.slane %v2959, 2
      %v3078 = vsel %vm1171, %v3076, %v3077
      %v3079 = vrot.slane %v2960, 2
      %v3080 = vsel %vm1171, %v3077, %v3079
      %v3081 = vrot.slane %v2961, 2
      %v3082 = vsel %vm1171, %v3079, %v3081
      %v3083 = vrot.slane %v2962, 2
      %v3084 = vsel %vm1171, %v3081, %v3083
      %v3085 = vrot.slane %v2963, 2
      %v3086 = vsel %vm1171, %v3083, %v3085
      %v3087 = vrot.slane %v2964, 2
      %v3088 = vsel %vm1171, %v3085, %v3087
      %v3089 = vrot.slane %v2965, 2
      %v3090 = vrot.slane %v2966, 2
      %v3091 = vsel %vm1171, %v3089, %v3090
      %v3092 = vrot.slane %v2967, 2
      %v3093 = vsel %vm1171, %v3090, %v3092
      %v3094 = vrot.slane %v2968, 2
      %v3095 = vsel %vm1171, %v3092, %v3094
      %v3096 = vrot.slane %v2969, 2
      %v3097 = vsel %vm1171, %v3094, %v3096
      %v3098 = vrot.slane %v2970, 2
      %v3099 = vsel %vm1171, %v3096, %v3098
      %v3100 = vrot.slane %v2971, 2
      %v3101 = vsel %vm1171, %v3098, %v3100
      %v3102 = vrot.slane %v2972, 2
      %v3103 = vrot.slane %v2973, 2
      %v3104 = vsel %vm1171, %v3102, %v3103
      %v3105 = vrot.slane %v2974, 2
      %v3106 = vsel %vm1171, %v3103, %v3105
      %v3107 = vrot.slane %v2975, 2
      %v3108 = vsel %vm1171, %v3105, %v3107
      %v3109 = vrot.slane %v2976, 2
      %v3110 = vsel %vm1171, %v3107, %v3109
      %v3111 = vrot.slane %v2977, 2
      %v3112 = vsel %vm1171, %v3109, %v3111
      %v3113 = vrot.slane %v2978, 2
      %v3114 = vsel %vm1171, %v3111, %v3113
      %v3115 = vrot.slane %v2979, 2
      %v3116 = vrot.slane %v2980, 2
      %v3117 = vsel %vm1171, %v3115, %v3116
      %v3118 = vrot.slane %v2981, 2
      %v3119 = vsel %vm1171, %v3116, %v3118
      %v3120 = vrot.slane %v2982, 2
      %v3121 = vsel %vm1171, %v3118, %v3120
      %v3122 = vrot.slane %v2983, 2
      %v3123 = vsel %vm1171, %v3120, %v3122
      %v3124 = vrot.slane %v2984, 2
      %v3125 = vsel %vm1171, %v3122, %v3124
      %v3126 = vrot.slane %v2985, 2
      %v3127 = vsel %vm1171, %v3124, %v3126
      %v3128 = vrot.slane %v2986, 2
      %v3129 = vrot.slane %v2987, 2
      %v3130 = vsel %vm1171, %v3128, %v3129
      %v3131 = vrot.slane %v2988, 2
      %v3132 = vsel %vm1171, %v3129, %v3131
      %v3133 = vrot.slane %v2989, 2
      %v3134 = vsel %vm1171, %v3131, %v3133
      %v3135 = vrot.slane %v2990, 2
      %v3136 = vsel %vm1171, %v3133, %v3135
      %v3137 = vrot.slane %v2991, 2
      %v3138 = vsel %vm1171, %v3135, %v3137
      %v3139 = vrot.slane %v2992, 2
      %v3140 = vsel %vm1171, %v3137, %v3139
      %v3141 = vrot.slane %v2993, 2
      %v3142 = vrot.slane %v2994, 2
      %v3143 = vsel %vm1171, %v3141, %v3142
      %v3144 = vrot.slane %v2995, 2
      %v3145 = vsel %vm1171, %v3142, %v3144
      %v3146 = vrot.slane %v2996, 2
      %v3147 = vsel %vm1171, %v3144, %v3146
      %v3148 = vrot.slane %v2997, 2
      %v3149 = vsel %vm1171, %v3146, %v3148
      %v3150 = vrot.slane %v2998, 2
      %v3151 = vsel %vm1171, %v3148, %v3150
      %v3152 = vrot.slane %v2999, 2
      %v3153 = vsel %vm1171, %v3150, %v3152
      %v3154 = vrot.slane %v3000, 2
      %v3155 = vrot.slane %v3001, 2
      %v3156 = vsel %vm1171, %v3154, %v3155
      %v3157 = vrot.slane %v3002, 2
      %v3158 = vsel %vm1171, %v3155, %v3157
      %v3159 = vrot.slane %v3003, 2
      %v3160 = vsel %vm1171, %v3157, %v3159
      %v3161 = vrot.slane %v3004, 2
      %v3162 = vsel %vm1171, %v3159, %v3161
      %v3163 = vrot.slane %v3005, 2
      %v3164 = vsel %vm1171, %v3161, %v3163
      %v3165 = vrot.slane %v3006, 2
      %v3166 = vsel %vm1171, %v3163, %v3165
      %v3231 = vsel %vm1171, %v3074, %v3063
      %v3232 = vsel %vm1171, %v3087, %v3076
      %v3233 = vsel %vm1171, %v3100, %v3089
      %v3234 = vsel %vm1171, %v3113, %v3102
      %v3235 = vsel %vm1171, %v3126, %v3115
      %v3236 = vsel %vm1171, %v3139, %v3128
      %v3237 = vsel %vm1171, %v3152, %v3141
      %v3238 = vsel %vm1171, %v3165, %v3154
      %v3239 = vsel %vm1349, %v3065, %v2951
      %v3240 = vsel %vm1349, %v3067, %v2952
      %v3241 = vsel %vm1349, %v3069, %v2953
      %v3242 = vsel %vm1349, %v3071, %v2954
      %v3243 = vsel %vm1349, %v3073, %v2955
      %v3244 = vsel %vm1349, %v3075, %v2956
      %v3245 = vsel %vm1349, %v3231, %v2957
      %v3246 = vsel %vm1349, %v3078, %v2958
      %v3247 = vsel %vm1349, %v3080, %v2959
      %v3248 = vsel %vm1349, %v3082, %v2960
      %v3249 = vsel %vm1349, %v3084, %v2961
      %v3250 = vsel %vm1349, %v3086, %v2962
      %v3251 = vsel %vm1349, %v3088, %v2963
      %v3252 = vsel %vm1349, %v3232, %v2964
      %v3253 = vsel %vm1349, %v3091, %v2965
      %v3254 = vsel %vm1349, %v3093, %v2966
      %v3255 = vsel %vm1349, %v3095, %v2967
      %v3256 = vsel %vm1349, %v3097, %v2968
      %v3257 = vsel %vm1349, %v3099, %v2969
      %v3258 = vsel %vm1349, %v3101, %v2970
      %v3259 = vsel %vm1349, %v3233, %v2971
      %v3260 = vsel %vm1349, %v3104, %v2972
      %v3261 = vsel %vm1349, %v3106, %v2973
      %v3262 = vsel %vm1349, %v3108, %v2974
      %v3263 = vsel %vm1349, %v3110, %v2975
      %v3264 = vsel %vm1349, %v3112, %v2976
      %v3265 = vsel %vm1349, %v3114, %v2977
      %v3266 = vsel %vm1349, %v3234, %v2978
      %v3267 = vsel %vm1349, %v3117, %v2979
      %v3268 = vsel %vm1349, %v3119, %v2980
      %v3269 = vsel %vm1349, %v3121, %v2981
      %v3270 = vsel %vm1349, %v3123, %v2982
      %v3271 = vsel %vm1349, %v3125, %v2983
      %v3272 = vsel %vm1349, %v3127, %v2984
      %v3273 = vsel %vm1349, %v3235, %v2985
      %v3274 = vsel %vm1349, %v3130, %v2986
      %v3275 = vsel %vm1349, %v3132, %v2987
      %v3276 = vsel %vm1349, %v3134, %v2988
      %v3277 = vsel %vm1349, %v3136, %v2989
      %v3278 = vsel %vm1349, %v3138, %v2990
      %v3279 = vsel %vm1349, %v3140, %v2991
      %v3280 = vsel %vm1349, %v3236, %v2992
      %v3281 = vsel %vm1349, %v3143, %v2993
      %v3282 = vsel %vm1349, %v3145, %v2994
      %v3283 = vsel %vm1349, %v3147, %v2995
      %v3284 = vsel %vm1349, %v3149, %v2996
      %v3285 = vsel %vm1349, %v3151, %v2997
      %v3286 = vsel %vm1349, %v3153, %v2998
      %v3287 = vsel %vm1349, %v3237, %v2999
      %v3288 = vsel %vm1349, %v3156, %v3000
      %v3289 = vsel %vm1349, %v3158, %v3001
      %v3290 = vsel %vm1349, %v3160, %v3002
      %v3291 = vsel %vm1349, %v3162, %v3003
      %v3292 = vsel %vm1349, %v3164, %v3004
      %v3293 = vsel %vm1349, %v3166, %v3005
      %v3294 = vsel %vm1349, %v3238, %v3006
      %v3351 = vrot.slane %v3239, 4
      %v3352 = vrot.slane %v3240, 4
      %v3353 = vsel %vm1462, %v3351, %v3352
      %v3354 = vrot.slane %v3241, 4
      %v3355 = vsel %vm1462, %v3352, %v3354
      %v3356 = vrot.slane %v3242, 4
      %v3357 = vsel %vm1462, %v3354, %v3356
      %v3358 = vrot.slane %v3243, 4
      %v3359 = vsel %vm1462, %v3356, %v3358
      %v3360 = vrot.slane %v3244, 4
      %v3361 = vsel %vm1462, %v3358, %v3360
      %v3362 = vrot.slane %v3245, 4
      %v3363 = vsel %vm1462, %v3360, %v3362
      %v3364 = vrot.slane %v3246, 4
      %v3365 = vrot.slane %v3247, 4
      %v3366 = vsel %vm1462, %v3364, %v3365
      %v3367 = vrot.slane %v3248, 4
      %v3368 = vsel %vm1462, %v3365, %v3367
      %v3369 = vrot.slane %v3249, 4
      %v3370 = vsel %vm1462, %v3367, %v3369
      %v3371 = vrot.slane %v3250, 4
      %v3372 = vsel %vm1462, %v3369, %v3371
      %v3373 = vrot.slane %v3251, 4
      %v3374 = vsel %vm1462, %v3371, %v3373
      %v3375 = vrot.slane %v3252, 4
      %v3376 = vsel %vm1462, %v3373, %v3375
      %v3377 = vrot.slane %v3253, 4
      %v3378 = vrot.slane %v3254, 4
      %v3379 = vsel %vm1462, %v3377, %v3378
      %v3380 = vrot.slane %v3255, 4
      %v3381 = vsel %vm1462, %v3378, %v3380
      %v3382 = vrot.slane %v3256, 4
      %v3383 = vsel %vm1462, %v3380, %v3382
      %v3384 = vrot.slane %v3257, 4
      %v3385 = vsel %vm1462, %v3382, %v3384
      %v3386 = vrot.slane %v3258, 4
      %v3387 = vsel %vm1462, %v3384, %v3386
      %v3388 = vrot.slane %v3259, 4
      %v3389 = vsel %vm1462, %v3386, %v3388
      %v3390 = vrot.slane %v3260, 4
      %v3391 = vrot.slane %v3261, 4
      %v3392 = vsel %vm1462, %v3390, %v3391
      %v3393 = vrot.slane %v3262, 4
      %v3394 = vsel %vm1462, %v3391, %v3393
      %v3395 = vrot.slane %v3263, 4
      %v3396 = vsel %vm1462, %v3393, %v3395
      %v3397 = vrot.slane %v3264, 4
      %v3398 = vsel %vm1462, %v3395, %v3397
      %v3399 = vrot.slane %v3265, 4
      %v3400 = vsel %vm1462, %v3397, %v3399
      %v3401 = vrot.slane %v3266, 4
      %v3402 = vsel %vm1462, %v3399, %v3401
      %v3403 = vrot.slane %v3267, 4
      %v3404 = vrot.slane %v3268, 4
      %v3405 = vsel %vm1462, %v3403, %v3404
      %v3406 = vrot.slane %v3269, 4
      %v3407 = vsel %vm1462, %v3404, %v3406
      %v3408 = vrot.slane %v3270, 4
      %v3409 = vsel %vm1462, %v3406, %v3408
      %v3410 = vrot.slane %v3271, 4
      %v3411 = vsel %vm1462, %v3408, %v3410
      %v3412 = vrot.slane %v3272, 4
      %v3413 = vsel %vm1462, %v3410, %v3412
      %v3414 = vrot.slane %v3273, 4
      %v3415 = vsel %vm1462, %v3412, %v3414
      %v3416 = vrot.slane %v3274, 4
      %v3417 = vrot.slane %v3275, 4
      %v3418 = vsel %vm1462, %v3416, %v3417
      %v3419 = vrot.slane %v3276, 4
      %v3420 = vsel %vm1462, %v3417, %v3419
      %v3421 = vrot.slane %v3277, 4
      %v3422 = vsel %vm1462, %v3419, %v3421
      %v3423 = vrot.slane %v3278, 4
      %v3424 = vsel %vm1462, %v3421, %v3423
      %v3425 = vrot.slane %v3279, 4
      %v3426 = vsel %vm1462, %v3423, %v3425
      %v3427 = vrot.slane %v3280, 4
      %v3428 = vsel %vm1462, %v3425, %v3427
      %v3429 = vrot.slane %v3281, 4
      %v3430 = vrot.slane %v3282, 4
      %v3431 = vsel %vm1462, %v3429, %v3430
      %v3432 = vrot.slane %v3283, 4
      %v3433 = vsel %vm1462, %v3430, %v3432
      %v3434 = vrot.slane %v3284, 4
      %v3435 = vsel %vm1462, %v3432, %v3434
      %v3436 = vrot.slane %v3285, 4
      %v3437 = vsel %vm1462, %v3434, %v3436
      %v3438 = vrot.slane %v3286, 4
      %v3439 = vsel %vm1462, %v3436, %v3438
      %v3440 = vrot.slane %v3287, 4
      %v3441 = vsel %vm1462, %v3438, %v3440
      %v3442 = vrot.slane %v3288, 4
      %v3443 = vrot.slane %v3289, 4
      %v3444 = vsel %vm1462, %v3442, %v3443
      %v3445 = vrot.slane %v3290, 4
      %v3446 = vsel %vm1462, %v3443, %v3445
      %v3447 = vrot.slane %v3291, 4
      %v3448 = vsel %vm1462, %v3445, %v3447
      %v3449 = vrot.slane %v3292, 4
      %v3450 = vsel %vm1462, %v3447, %v3449
      %v3451 = vrot.slane %v3293, 4
      %v3452 = vsel %vm1462, %v3449, %v3451
      %v3453 = vrot.slane %v3294, 4
      %v3454 = vsel %vm1462, %v3451, %v3453
      %v3519 = vsel %vm1462, %v3362, %v3351
      %v3520 = vsel %vm1462, %v3375, %v3364
      %v3521 = vsel %vm1462, %v3388, %v3377
      %v3522 = vsel %vm1462, %v3401, %v3390
      %v3523 = vsel %vm1462, %v3414, %v3403
      %v3524 = vsel %vm1462, %v3427, %v3416
      %v3525 = vsel %vm1462, %v3440, %v3429
      %v3526 = vsel %vm1462, %v3453, %v3442
      %v3527 = vsel %vm1640, %v3353, %v3239
      %v3528 = vsel %vm1640, %v3355, %v3240
      %v3529 = vsel %vm1640, %v3357, %v3241
      %v3530 = vsel %vm1640, %v3359, %v3242
      %v3531 = vsel %vm1640, %v3361, %v3243
      %v3532 = vsel %vm1640, %v3363, %v3244
      %v3533 = vsel %vm1640, %v3519, %v3245
      %v3534 = vsel %vm1640, %v3366, %v3246
      %v3535 = vsel %vm1640, %v3368, %v3247
      %v3536 = vsel %vm1640, %v3370, %v3248
      %v3537 = vsel %vm1640, %v3372, %v3249
      %v3538 = vsel %vm1640, %v3374, %v3250
      %v3539 = vsel %vm1640, %v3376, %v3251
      %v3540 = vsel %vm1640, %v3520, %v3252
      %v3541 = vsel %vm1640, %v3379, %v3253
      %v3542 = vsel %vm1640, %v3381, %v3254
      %v3543 = vsel %vm1640, %v3383, %v3255
      %v3544 = vsel %vm1640, %v3385, %v3256
      %v3545 = vsel %vm1640, %v3387, %v3257
      %v3546 = vsel %vm1640, %v3389, %v3258
      %v3547 = vsel %vm1640, %v3521, %v3259
      %v3548 = vsel %vm1640, %v3392, %v3260
      %v3549 = vsel %vm1640, %v3394, %v3261
      %v3550 = vsel %vm1640, %v3396, %v3262
      %v3551 = vsel %vm1640, %v3398, %v3263
      %v3552 = vsel %vm1640, %v3400, %v3264
      %v3553 = vsel %vm1640, %v3402, %v3265
      %v3554 = vsel %vm1640, %v3522, %v3266
      %v3555 = vsel %vm1640, %v3405, %v3267
      %v3556 = vsel %vm1640, %v3407, %v3268
      %v3557 = vsel %vm1640, %v3409, %v3269
      %v3558 = vsel %vm1640, %v3411, %v3270
      %v3559 = vsel %vm1640, %v3413, %v3271
      %v3560 = vsel %vm1640, %v3415, %v3272
      %v3561 = vsel %vm1640, %v3523, %v3273
      %v3562 = vsel %vm1640, %v3418, %v3274
      %v3563 = vsel %vm1640, %v3420, %v3275
      %v3564 = vsel %vm1640, %v3422, %v3276
      %v3565 = vsel %vm1640, %v3424, %v3277
      %v3566 = vsel %vm1640, %v3426, %v3278
      %v3567 = vsel %vm1640, %v3428, %v3279
      %v3568 = vsel %vm1640, %v3524, %v3280
      %v3569 = vsel %vm1640, %v3431, %v3281
      %v3570 = vsel %vm1640, %v3433, %v3282
      %v3571 = vsel %vm1640, %v3435, %v3283
      %v3572 = vsel %vm1640, %v3437, %v3284
      %v3573 = vsel %vm1640, %v3439, %v3285
      %v3574 = vsel %vm1640, %v3441, %v3286
      %v3575 = vsel %vm1640, %v3525, %v3287
      %v3576 = vsel %vm1640, %v3444, %v3288
      %v3577 = vsel %vm1640, %v3446, %v3289
      %v3578 = vsel %vm1640, %v3448, %v3290
      %v3579 = vsel %vm1640, %v3450, %v3291
      %v3580 = vsel %vm1640, %v3452, %v3292
      %v3581 = vsel %vm1640, %v3454, %v3293
      %v3582 = vsel %vm1640, %v3526, %v3294
      %v3583 = vsel %vm1698, %v3528, %v3527
      %v3584 = vsel %vm1698, %v3529, %v3528
      %v3585 = vsel %vm1698, %v3530, %v3529
      %v3586 = vsel %vm1698, %v3531, %v3530
      %v3587 = vsel %vm1698, %v3532, %v3531
      %v3588 = vsel %vm1698, %v3533, %v3532
      %v3589 = vsel %vm1698, %v3535, %v3534
      %v3590 = vsel %vm1698, %v3536, %v3535
      %v3591 = vsel %vm1698, %v3537, %v3536
      %v3592 = vsel %vm1698, %v3538, %v3537
      %v3593 = vsel %vm1698, %v3539, %v3538
      %v3594 = vsel %vm1698, %v3540, %v3539
      %v3595 = vsel %vm1698, %v3542, %v3541
      %v3596 = vsel %vm1698, %v3543, %v3542
      %v3597 = vsel %vm1698, %v3544, %v3543
      %v3598 = vsel %vm1698, %v3545, %v3544
      %v3599 = vsel %vm1698, %v3546, %v3545
      %v3600 = vsel %vm1698, %v3547, %v3546
      %v3601 = vsel %vm1698, %v3549, %v3548
      %v3602 = vsel %vm1698, %v3550, %v3549
      %v3603 = vsel %vm1698, %v3551, %v3550
      %v3604 = vsel %vm1698, %v3552, %v3551
      %v3605 = vsel %vm1698, %v3553, %v3552
      %v3606 = vsel %vm1698, %v3554, %v3553
      %v3607 = vsel %vm1698, %v3556, %v3555
      %v3608 = vsel %vm1698, %v3557, %v3556
      %v3609 = vsel %vm1698, %v3558, %v3557
      %v3610 = vsel %vm1698, %v3559, %v3558
      %v3611 = vsel %vm1698, %v3560, %v3559
      %v3612 = vsel %vm1698, %v3561, %v3560
      %v3613 = vsel %vm1698, %v3563, %v3562
      %v3614 = vsel %vm1698, %v3564, %v3563
      %v3615 = vsel %vm1698, %v3565, %v3564
      %v3616 = vsel %vm1698, %v3566, %v3565
      %v3617 = vsel %vm1698, %v3567, %v3566
      %v3618 = vsel %vm1698, %v3568, %v3567
      %v3619 = vsel %vm1698, %v3570, %v3569
      %v3620 = vsel %vm1698, %v3571, %v3570
      %v3621 = vsel %vm1698, %v3572, %v3571
      %v3622 = vsel %vm1698, %v3573, %v3572
      %v3623 = vsel %vm1698, %v3574, %v3573
      %v3624 = vsel %vm1698, %v3575, %v3574
      %v3625 = vsel %vm1698, %v3577, %v3576
      %v3626 = vsel %vm1698, %v3578, %v3577
      %v3627 = vsel %vm1698, %v3579, %v3578
      %v3628 = vsel %vm1698, %v3580, %v3579
      %v3629 = vsel %vm1698, %v3581, %v3580
      %v3630 = vsel %vm1698, %v3582, %v3581
      %v3631 = vmul.f32 %v3583, 0.25
      %v3632 = vmul.f32 %v3589, 0.25
      %v3633 = vmul.f32 %v3595, 0.25
      %v3634 = vmul.f32 %v3601, 0.25
      %v3635 = vmul.f32 %v3607, 0.25
      %v3636 = vmul.f32 %v3613, 0.25
      %v3637 = vmul.f32 %v3619, 0.25
      %v3638 = vmul.f32 %v3625, 0.25
      %v3647 = vrot.slane %v3632, 7
      %v3648 = vsel %vm1764, %v3647, %v3631
      %v3649 = vrot.slane %v3633, 6
      %v3650 = vsel %vm1767, %v3649, %v3648
      %v3651 = vrot.slane %v3634, 5
      %v3652 = vsel %vm1770, %v3651, %v3650
      %v3653 = vrot.slane %v3635, 4
      %v3654 = vsel %vm1773, %v3653, %v3652
      %v3655 = vrot.slane %v3636, 3
      %v3656 = vsel %vm1776, %v3655, %v3654
      %v3657 = vrot.slane %v3637, 2
      %v3658 = vsel %vm1779, %v3657, %v3656
      %v3659 = vrot.slane %v3638, 1
      %v3660 = vsel %vm1782, %v3659, %v3658
      %3662 = vst.msk [vmem:[%s214 + $0x8] sm:$0xff] %vm1785, %v3660
      %v3663 = vsel %vm1770, %v3647, %v3631
      %v3664 = vsel %vm1773, %v3649, %v3663
      %v3665 = vsel %vm1776, %v3651, %v3664
      %v3666 = vsel %vm1779, %v3653, %v3665
      %v3667 = vsel %vm1782, %v3655, %v3666
      %v3668 = vsel %vm1764, %v3659, %v3657
      %3671 = vst.msk [vmem:[%s1795 + $0x6] sm:$0xfc] %vm1796, %v3667
      %3672 = vst.msk [vmem:[%s1795 + $0xe] sm:$0x3] %vm1798, %v3668
      %v3673 = vsel %vm1776, %v3647, %v3631
      %v3674 = vsel %vm1779, %v3649, %v3673
      %v3675 = vsel %vm1782, %v3651, %v3674
      %v3676 = vsel %vm1764, %v3655, %v3653
      %v3677 = vsel %vm1767, %v3657, %v3676
      %v3678 = vsel %vm1770, %v3659, %v3677
      %3681 = vst.msk [vmem:[%s1808 + $0x4] sm:$0xf0] %vm1809, %v3675
      %3682 = vst.msk [vmem:[%s1808 + $0xc] sm:$0xf] %vm1811, %v3678
      %v3683 = vsel %vm1782, %v3647, %v3631
      %v3684 = vsel %vm1764, %v3651, %v3649
      %v3685 = vsel %vm1767, %v3653, %v3684
      %v3686 = vsel %vm1770, %v3655, %v3685
      %v3687 = vsel %vm1773, %v3657, %v3686
      %v3688 = vsel %vm1776, %v3659, %v3687
      %3691 = vst.msk [vmem:[%s1821 + $0x2] sm:$0xc0] %vm1822, %v3683
      %3692 = vst.msk [vmem:[%s1821 + $0xa] sm:$0x3f] %vm1824, %v3688
      %v3693 = vmul.f32 %v3584, 0.25
      %v3694 = vmul.f32 %v3590, 0.25
      %v3695 = vmul.f32 %v3596, 0.25
      %v3696 = vmul.f32 %v3602, 0.25
      %v3697 = vmul.f32 %v3608, 0.25
      %v3698 = vmul.f32 %v3614, 0.25
      %v3699 = vmul.f32 %v3620, 0.25
      %v3700 = vmul.f32 %v3626, 0.25
      %v3709 = vrot.slane %v3694, 7
      %v3710 = vsel %vm1764, %v3709, %v3693
      %v3711 = vrot.slane %v3695, 6
      %v3712 = vsel %vm1767, %v3711, %v3710
      %v3713 = vrot.slane %v3696, 5
      %v3714 = vsel %vm1770, %v3713, %v3712
      %v3715 = vrot.slane %v3697, 4
      %v3716 = vsel %vm1773, %v3715, %v3714
      %v3717 = vrot.slane %v3698, 3
      %v3718 = vsel %vm1776, %v3717, %v3716
      %v3719 = vrot.slane %v3699, 2
      %v3720 = vsel %vm1779, %v3719, %v3718
      %v3721 = vrot.slane %v3700, 1
      %v3722 = vsel %vm1782, %v3721, %v3720
      %3724 = vst.msk [vmem:[%s1857 + $0x8] sm:$0xff] %vm1785, %v3722
      %v3725 = vsel %vm1770, %v3709, %v3693
      %v3726 = vsel %vm1773, %v3711, %v3725
      %v3727 = vsel %vm1776, %v3713, %v3726
      %v3728 = vsel %vm1779, %v3715, %v3727
      %v3729 = vsel %vm1782, %v3717, %v3728
      %v3730 = vsel %vm1764, %v3721, %v3719
      %3733 = vst.msk [vmem:[%s1867 + $0x6] sm:$0xfc] %vm1796, %v3729
      %3734 = vst.msk [vmem:[%s1867 + $0xe] sm:$0x3] %vm1798, %v3730
      %v3735 = vsel %vm1776, %v3709, %v3693
      %v3736 = vsel %vm1779, %v3711, %v3735
      %v3737 = vsel %vm1782, %v3713, %v3736
      %v3738 = vsel %vm1764, %v3717, %v3715
      %v3739 = vsel %vm1767, %v3719, %v3738
      %v3740 = vsel %vm1770, %v3721, %v3739
      %3743 = vst.msk [vmem:[%s1878 + $0x4] sm:$0xf0] %vm1809, %v3737
      %3744 = vst.msk [vmem:[%s1878 + $0xc] sm:$0xf] %vm1811, %v3740
      %v3745 = vsel %vm1782, %v3709, %v3693
      %v3746 = vsel %vm1764, %v3713, %v3711
      %v3747 = vsel %vm1767, %v3715, %v3746
      %v3748 = vsel %vm1770, %v3717, %v3747
      %v3749 = vsel %vm1773, %v3719, %v3748
      %v3750 = vsel %vm1776, %v3721, %v3749
      %3753 = vst.msk [vmem:[%s1889 + $0x2] sm:$0xc0] %vm1822, %v3745
      %3754 = vst.msk [vmem:[%s1889 + $0xa] sm:$0x3f] %vm1824, %v3750
      %v3755 = vmul.f32 %v3585, 0.25
      %v3756 = vmul.f32 %v3591, 0.25
      %v3757 = vmul.f32 %v3597, 0.25
      %v3758 = vmul.f32 %v3603, 0.25
      %v3759 = vmul.f32 %v3609, 0.25
      %v3760 = vmul.f32 %v3615, 0.25
      %v3761 = vmul.f32 %v3621, 0.25
      %v3762 = vmul.f32 %v3627, 0.25
      %v3771 = vrot.slane %v3756, 7
      %v3772 = vsel %vm1764, %v3771, %v3755
      %v3773 = vrot.slane %v3757, 6
      %v3774 = vsel %vm1767, %v3773, %v3772
      %v3775 = vrot.slane %v3758, 5
      %v3776 = vsel %vm1770, %v3775, %v3774
      %v3777 = vrot.slane %v3759, 4
      %v3778 = vsel %vm1773, %v3777, %v3776
      %v3779 = vrot.slane %v3760, 3
      %v3780 = vsel %vm1776, %v3779, %v3778
      %v3781 = vrot.slane %v3761, 2
      %v3782 = vsel %vm1779, %v3781, %v3780
      %v3783 = vrot.slane %v3762, 1
      %v3784 = vsel %vm1782, %v3783, %v3782
      %3786 = vst.msk [vmem:[%s1923 + $0x8] sm:$0xff] %vm1785, %v3784
      %v3787 = vsel %vm1770, %v3771, %v3755
      %v3788 = vsel %vm1773, %v3773, %v3787
      %v3789 = vsel %vm1776, %v3775, %v3788
      %v3790 = vsel %vm1779, %v3777, %v3789
      %v3791 = vsel %vm1782, %v3779, %v3790
      %v3792 = vsel %vm1764, %v3783, %v3781
      %3795 = vst.msk [vmem:[%s1933 + $0x6] sm:$0xfc] %vm1796, %v3791
      %3796 = vst.msk [vmem:[%s1933 + $0xe] sm:$0x3] %vm1798, %v3792
      %v3797 = vsel %vm1776, %v3771, %v3755
      %v3798 = vsel %vm1779, %v3773, %v3797
      %v3799 = vsel %vm1782, %v3775, %v3798
      %v3800 = vsel %vm1764, %v3779, %v3777
      %v3801 = vsel %vm1767, %v3781, %v3800
      %v3802 = vsel %vm1770, %v3783, %v3801
      %3805 = vst.msk [vmem:[%s1944 + $0x4] sm:$0xf0] %vm1809, %v3799
      %3806 = vst.msk [vmem:[%s1944 + $0xc] sm:$0xf] %vm1811, %v3802
      %v3807 = vsel %vm1782, %v3771, %v3755
      %v3808 = vsel %vm1764, %v3775, %v3773
      %v3809 = vsel %vm1767, %v3777, %v3808
      %v3810 = vsel %vm1770, %v3779, %v3809
      %v3811 = vsel %vm1773, %v3781, %v3810
      %v3812 = vsel %vm1776, %v3783, %v3811
      %3815 = vst.msk [vmem:[%s1955 + $0x2] sm:$0xc0] %vm1822, %v3807
      %3816 = vst.msk [vmem:[%s1955 + $0xa] sm:$0x3f] %vm1824, %v3812
      %v3817 = vmul.f32 %v3586, 0.25
      %v3818 = vmul.f32 %v3592, 0.25
      %v3819 = vmul.f32 %v3598, 0.25
      %v3820 = vmul.f32 %v3604, 0.25
      %v3821 = vmul.f32 %v3610, 0.25
      %v3822 = vmul.f32 %v3616, 0.25
      %v3823 = vmul.f32 %v3622, 0.25
      %v3824 = vmul.f32 %v3628, 0.25
      %v3833 = vrot.slane %v3818, 7
      %v3834 = vsel %vm1764, %v3833, %v3817
      %v3835 = vrot.slane %v3819, 6
      %v3836 = vsel %vm1767, %v3835, %v3834
      %v3837 = vrot.slane %v3820, 5
      %v3838 = vsel %vm1770, %v3837, %v3836
      %v3839 = vrot.slane %v3821, 4
      %v3840 = vsel %vm1773, %v3839, %v3838
      %v3841 = vrot.slane %v3822, 3
      %v3842 = vsel %vm1776, %v3841, %v3840
      %v3843 = vrot.slane %v3823, 2
      %v3844 = vsel %vm1779, %v3843, %v3842
      %v3845 = vrot.slane %v3824, 1
      %v3846 = vsel %vm1782, %v3845, %v3844
      %3848 = vst.msk [vmem:[%s1989 + $0x8] sm:$0xff] %vm1785, %v3846
      %v3849 = vsel %vm1770, %v3833, %v3817
      %v3850 = vsel %vm1773, %v3835, %v3849
      %v3851 = vsel %vm1776, %v3837, %v3850
      %v3852 = vsel %vm1779, %v3839, %v3851
      %v3853 = vsel %vm1782, %v3841, %v3852
      %v3854 = vsel %vm1764, %v3845, %v3843
      %3857 = vst.msk [vmem:[%s1999 + $0x6] sm:$0xfc] %vm1796, %v3853
      %3858 = vst.msk [vmem:[%s1999 + $0xe] sm:$0x3] %vm1798, %v3854
      %v3859 = vsel %vm1776, %v3833, %v3817
      %v3860 = vsel %vm1779, %v3835, %v3859
      %v3861 = vsel %vm1782, %v3837, %v3860
      %v3862 = vsel %vm1764, %v3841, %v3839
      %v3863 = vsel %vm1767, %v3843, %v3862
      %v3864 = vsel %vm1770, %v3845, %v3863
      %3867 = vst.msk [vmem:[%s2010 + $0x4] sm:$0xf0] %vm1809, %v3861
      %3868 = vst.msk [vmem:[%s2010 + $0xc] sm:$0xf] %vm1811, %v3864
      %v3869 = vsel %vm1782, %v3833, %v3817
      %v3870 = vsel %vm1764, %v3837, %v3835
      %v3871 = vsel %vm1767, %v3839, %v3870
      %v3872 = vsel %vm1770, %v3841, %v3871
      %v3873 = vsel %vm1773, %v3843, %v3872
      %v3874 = vsel %vm1776, %v3845, %v3873
      %3877 = vst.msk [vmem:[%s2021 + $0x2] sm:$0xc0] %vm1822, %v3869
      %3878 = vst.msk [vmem:[%s2021 + $0xa] sm:$0x3f] %vm1824, %v3874
      %v3879 = vmul.f32 %v3587, 0.25
      %v3880 = vmul.f32 %v3593, 0.25
      %v3881 = vmul.f32 %v3599, 0.25
      %v3882 = vmul.f32 %v3605, 0.25
      %v3883 = vmul.f32 %v3611, 0.25
      %v3884 = vmul.f32 %v3617, 0.25
      %v3885 = vmul.f32 %v3623, 0.25
      %v3886 = vmul.f32 %v3629, 0.25
      %v3895 = vrot.slane %v3880, 7
      %v3896 = vsel %vm1764, %v3895, %v3879
      %v3897 = vrot.slane %v3881, 6
      %v3898 = vsel %vm1767, %v3897, %v3896
      %v3899 = vrot.slane %v3882, 5
      %v3900 = vsel %vm1770, %v3899, %v3898
      %v3901 = vrot.slane %v3883, 4
      %v3902 = vsel %vm1773, %v3901, %v3900
      %v3903 = vrot.slane %v3884, 3
      %v3904 = vsel %vm1776, %v3903, %v3902
      %v3905 = vrot.slane %v3885, 2
      %v3906 = vsel %vm1779, %v3905, %v3904
      %v3907 = vrot.slane %v3886, 1
      %v3908 = vsel %vm1782, %v3907, %v3906
      %3910 = vst.msk [vmem:[%s2055 + $0x8] sm:$0xff] %vm1785, %v3908
      %v3911 = vsel %vm1770, %v3895, %v3879
      %v3912 = vsel %vm1773, %v3897, %v3911
      %v3913 = vsel %vm1776, %v3899, %v3912
      %v3914 = vsel %vm1779, %v3901, %v3913
      %v3915 = vsel %vm1782, %v3903, %v3914
      %v3916 = vsel %vm1764, %v3907, %v3905
      %3919 = vst.msk [vmem:[%s2065 + $0x6] sm:$0xfc] %vm1796, %v3915
      %3920 = vst.msk [vmem:[%s2065 + $0xe] sm:$0x3] %vm1798, %v3916
      %v3921 = vsel %vm1776, %v3895, %v3879
      %v3922 = vsel %vm1779, %v3897, %v3921
      %v3923 = vsel %vm1782, %v3899, %v3922
      %v3924 = vsel %vm1764, %v3903, %v3901
      %v3925 = vsel %vm1767, %v3905, %v3924
      %v3926 = vsel %vm1770, %v3907, %v3925
      %3929 = vst.msk [vmem:[%s2076 + $0x4] sm:$0xf0] %vm1809, %v3923
      %3930 = vst.msk [vmem:[%s2076 + $0xc] sm:$0xf] %vm1811, %v3926
      %v3931 = vsel %vm1782, %v3895, %v3879
      %v3932 = vsel %vm1764, %v3899, %v3897
      %v3933 = vsel %vm1767, %v3901, %v3932
      %v3934 = vsel %vm1770, %v3903, %v3933
      %v3935 = vsel %vm1773, %v3905, %v3934
      %v3936 = vsel %vm1776, %v3907, %v3935
      %3939 = vst.msk [vmem:[%s2087 + $0x2] sm:$0xc0] %vm1822, %v3931
      %3940 = vst.msk [vmem:[%s2087 + $0xa] sm:$0x3f] %vm1824, %v3936
      %v3941 = vmul.f32 %v3588, 0.25
      %v3942 = vmul.f32 %v3594, 0.25
      %v3943 = vmul.f32 %v3600, 0.25
      %v3944 = vmul.f32 %v3606, 0.25
      %v3945 = vmul.f32 %v3612, 0.25
      %v3946 = vmul.f32 %v3618, 0.25
      %v3947 = vmul.f32 %v3624, 0.25
      %v3948 = vmul.f32 %v3630, 0.25
      %v3957 = vrot.slane %v3942, 7
      %v3958 = vsel %vm1764, %v3957, %v3941
      %v3959 = vrot.slane %v3943, 6
      %v3960 = vsel %vm1767, %v3959, %v3958
      %v3961 = vrot.slane %v3944, 5
      %v3962 = vsel %vm1770, %v3961, %v3960
      %v3963 = vrot.slane %v3945, 4
      %v3964 = vsel %vm1773, %v3963, %v3962
      %v3965 = vrot.slane %v3946, 3
      %v3966 = vsel %vm1776, %v3965, %v3964
      %v3967 = vrot.slane %v3947, 2
      %v3968 = vsel %vm1779, %v3967, %v3966
      %v3969 = vrot.slane %v3948, 1
      %v3970 = vsel %vm1782, %v3969, %v3968
      %3972 = vst.msk [vmem:[%s2121 + $0x8] sm:$0xff] %vm1785, %v3970
      %p3973 = scmp.lt.s32.totalorder %s18, 1
      %s3974 = scalar_select %p3973, %s18, 1
      %p3975 = scmp.lt.s32.totalorder %s19, 20
      %s3976 = scalar_select %p3975, %s19, 20
      %s3977 = smul.addr %s3976, 42
      %s3978 = smul.addr %s3974, 882
      %s3979 = sadd.s32 %s3977, %s3978
      %s3980 = smul.addr %s3979, 8
      %s3981 = scalar_lea.vmem %s2, %s3980
      // Predicated region
      $region29: #{tpu_custom_call.1} parent=27 // pred_check
        %p3982 = pneg %p108
      $region30: #{tpu_custom_call.1} parent=27 // pred_check_branch
        %3984 = sbr.rel (%p3982) target = $region32
      $region31: #{tpu_custom_call.1} parent=27 // pred_region
        _
      $region32: #{tpu_custom_call.1} parent=27 // pred_fallthru
        _
    $region28: #{tpu_custom_call.1} parent=5 // pred_fallthru
      _
    %p3985 = scmp.le.s32.totalorder 2, %s8
    // Predicated region
    $region33: #{tpu_custom_call.1} parent=5 // pred_check
      %p3986 = pneg %p3985
    $region34: #{tpu_custom_call.1} parent=5 // pred_check_branch
      %3988 = sbr.rel (%p3986) target = $region36
    $region35: #{tpu_custom_call.1} parent=5 // pred_region
      %s3989 = ssub.s32 %s8, 2
      // Predicated region
      $region37: #{tpu_custom_call.1} parent=35 // pred_check
        %p3990 = pneg %p114
      $region38: #{tpu_custom_call.1} parent=35 // pred_check_branch
        %3992 = sbr.rel (%p3990) target = $region40
      $region39: #{tpu_custom_call.1} parent=35 // pred_region
        %p3993 = scmp.lt.s32.totalorder %s21, 1
        %s3994 = scalar_select %p3993, %s21, 1
        %p3995 = scmp.lt.s32.totalorder %s22, 20
        %s3996 = scalar_select %p3995, %s22, 20
        %s3997 = smul.addr %s3996, 42
        %s3998 = smul.addr %s3994, 882
        %s3999 = sadd.s32 %s3997, %s3998
        %s4000 = smul.addr %s3999, 8
        %s4001 = scalar_lea.vmem %s2, %s4000
      $region40: #{tpu_custom_call.1} parent=35 // pred_fallthru
        _
    $region36: #{tpu_custom_call.1} parent=5 // pred_fallthru
      _
  $region6: #{tpu_custom_call.1} parent=0 // loop_footer
    %s12 = sadd.s32 1, %s8
  $region7: #{tpu_custom_call.1} parent=0 // loop_footer_branch
    %7 = sbr.rel target = $region3
  $region8: #{tpu_custom_call.1} parent=0 // loop_exit
    _

</llo_original>
